<compile_context>
chip_gen: v5e
topology: v5e:2x2
jax: 0.10.0
libtpu: 0.0.40
codegen_flags: <defaults>
</compile_context>

<pallas_src>
import math

import jax
import jax.numpy as jnp
from jax.experimental import pallas as pl
from jax.experimental.pallas import tpu as pltpu


def _siren_kernel(x_ref, w_ref, b_ref, o_ref, *, w0):
    # x_ref: (tm, K)   w_ref: (K, N)   b_ref: (1, N) f32   o_ref: (tm, N)
    z = jnp.dot(x_ref[...], w_ref[...], preferred_element_type=jnp.float32)
    z = z + b_ref[...]                       # broadcast bias row over tm rows
    if w0 != 1.0:                            # static Python branch
        z = w0 * z
    o_ref[...] = jnp.sin(z).astype(o_ref.dtype)


def siren_layer(x, weight_t, bias, *, w0=30.0, tm=512, out_dtype=None,
                vmem_budget_bytes=28 * 1024 * 1024):
    """SIREN layer forward: sin(w0 * (x @ weight_t + bias)).

    x: (..., dim_in); weight_t: (dim_in, dim_out) (PyTorch weight transposed);
    bias: (dim_out,).  Returns (..., dim_out) in `out_dtype` (defaults to
    x.dtype).
    """
    orig_shape = x.shape
    K = orig_shape[-1]
    x2d = x.reshape(-1, K)
    M = x2d.shape[0]
    Kw, N = weight_t.shape
    assert K == Kw, (K, Kw)

    out_dtype = x.dtype if out_dtype is None else out_dtype
    bias2d = bias.reshape(1, N).astype(jnp.float32)

    x_bpe = jnp.dtype(x2d.dtype).itemsize
    w_bpe = jnp.dtype(weight_t.dtype).itemsize
    o_bpe = jnp.dtype(out_dtype).itemsize

    # --- choose the M tile: as big as possible while double-buffered x / out
    # tiles + the resident weight & bias fit inside the scoped-VMEM budget. ---
    resident_bytes = 2 * K * N * w_bpe + 2 * N * 4      # weight + bias (2 bufs)

    def footprint(t):
        return resident_bytes + 2 * t * K * x_bpe + 2 * t * N * o_bpe

    tm = min(tm, M)
    if tm < M:
        tm = max(8, (tm // 8) * 8)                       # (8,128) sub-block rule
    while 8 < tm < M and footprint(tm) > vmem_budget_bytes:
        tm = max(8, ((tm // 2) // 8) * 8)
    need = footprint(tm)
    vmem_limit = None if need <= (16 << 20) else int(min(need + (4 << 20), 60 << 20))

    grid = (pl.cdiv(M, tm),)
    cost = pl.CostEstimate(
        flops=2 * M * K * N,
        transcendentals=M * N,                           # sin epilogue
        bytes_accessed=M * K * x_bpe + K * N * w_bpe + N * 4 + M * N * o_bpe,
    )
    kernel = lambda xr, wr, br, orf: _siren_kernel(xr, wr, br, orf, w0=float(w0))

    out2d = pl.pallas_call(
        kernel,
        out_shape=jax.ShapeDtypeStruct((M, N), out_dtype),
        grid_spec=pltpu.PrefetchScalarGridSpec(
            num_scalar_prefetch=0,
            grid=grid,
            in_specs=[
                pl.BlockSpec((tm, K), lambda i: (i, 0)),   # streamed x tile
                pl.BlockSpec((K, N), lambda i: (0, 0)),    # weight: VMEM-resident
                pl.BlockSpec((1, N), lambda i: (0, 0)),    # bias row: resident
            ],
            out_specs=pl.BlockSpec((tm, N), lambda i: (i, 0)),
        ),
        compiler_params=pltpu.CompilerParams(
            dimension_semantics=("parallel",),
            vmem_limit_bytes=vmem_limit,
        ),
        cost_estimate=cost,
    )(x2d, weight_t, bias2d)

    return out2d.reshape(orig_shape[:-1] + (N,))


def init_siren_params(key, dim_in, dim_out, *, w0=30.0, c=6.0, is_first=False,
                      dtype=jnp.float32):
    """SIREN init matching nn.init.uniform_(-w_std, w_std) from the module."""
    w_std = (1.0 / dim_in) if is_first else (math.sqrt(c / dim_in) / w0)
    kw, kb = jax.random.split(key)
    # PyTorch stores weight as (dim_out, dim_in); we keep the transposed layout.
    weight_t = jax.random.uniform(
        kw, (dim_in, dim_out), jnp.float32, minval=-w_std, maxval=w_std)
    bias = jax.random.uniform(
        kb, (dim_out,), jnp.float32, minval=-w_std, maxval=w_std)
    return weight_t.astype(dtype), bias


if __name__ == "__main__":
    key = jax.random.PRNGKey(0)
    kx, kp = jax.random.split(key)

    M, dim_in, dim_out = 256, 32, 64
    w0 = 30.0

    x = jax.random.normal(kx, (M, dim_in), jnp.float32)
    weight_t, bias = init_siren_params(kp, dim_in, dim_out, w0=w0, is_first=False)

    # f32 path — exactly the module's forward: sin(w0 * (x @ W^T + b)).
    out = siren_layer(x, weight_t, bias, w0=w0, tm=512)
    out = jax.block_until_ready(out)

    ref = jnp.sin(w0 * (x @ weight_t + bias[None, :]))
    assert out.shape == (M, dim_out)
    assert jnp.allclose(out, ref, atol=1e-4, rtol=1e-4)

    # Batched input (leading dims flattened inside the wrapper).
    xb = x.reshape(2, 8, 16, dim_in)
    out_b = jax.block_until_ready(siren_layer(xb, weight_t, bias, w0=w0))
    assert out_b.shape == (2, 8, 16, dim_out)
    assert jnp.allclose(out_b.reshape(M, dim_out), ref, atol=1e-4, rtol=1e-4)

    # bf16 inputs/weights (halves HBM traffic); f32 accumulation inside the MXU.
    out_bf16 = siren_layer(
        x.astype(jnp.bfloat16), weight_t.astype(jnp.bfloat16), bias,
        w0=w0, tm=512, out_dtype=jnp.float32)
    out_bf16 = jax.block_until_ready(out_bf16)
    assert jnp.allclose(out_bf16, ref, atol=5e-2)

    print("KERNEL_OK")
</pallas_src>

<mosaic_0001>
module attributes {stable_mosaic.version = 11 : i64} {
  func.func @_lambda_(%arg0: i32, %arg1: memref<256x32xf32, #tpu.memory_space<vmem>>, %arg2: memref<32x64xf32, #tpu.memory_space<vmem>>, %arg3: memref<1x64xf32, #tpu.memory_space<vmem>>, %arg4: memref<256x64xf32, #tpu.memory_space<vmem>>) attributes {dimension_semantics = [#tpu.dimension_semantics<parallel>], iteration_bounds = array<i64: 1>, scalar_prefetch = 0 : i64, scratch_operands = 0 : i64, tpu.core_type = #tpu.core_type<tc>, window_params = [{transform_indices = @transform_0, window_bounds = array<i64: 256, 32>}, {pipeline_mode = #tpu.pipeline_mode<synchronous>, transform_indices = @transform_1, window_bounds = array<i64: 32, 64>}, {pipeline_mode = #tpu.pipeline_mode<synchronous>, transform_indices = @transform_2, window_bounds = array<i64: 1, 64>}, {transform_indices = @transform_3, window_bounds = array<i64: 256, 64>}]} {
    %c0 = arith.constant 0 : index
    %c0_0 = arith.constant 0 : index
    %0 = vector.load %arg1[%c0, %c0_0] : memref<256x32xf32, #tpu.memory_space<vmem>>, vector<256x32xf32>
    %c0_1 = arith.constant 0 : index
    %c0_2 = arith.constant 0 : index
    %1 = vector.load %arg2[%c0_1, %c0_2] : memref<32x64xf32, #tpu.memory_space<vmem>>, vector<32x64xf32>
    %cst = arith.constant dense<0.000000e+00> : vector<256x64xf32>
    %2 = tpu.matmul %0, %1, %cst {dimension_numbers = #tpu.dot_dimension_numbers<[1], [0], [0], [1], [0, 0, 1, 1], [], []>} : vector<256x32xf32>, vector<32x64xf32>, vector<256x64xf32> -> vector<256x64xf32>
    %c0_3 = arith.constant 0 : index
    %c0_4 = arith.constant 0 : index
    %3 = vector.load %arg3[%c0_3, %c0_4] : memref<1x64xf32, #tpu.memory_space<vmem>>, vector<1x64xf32>
    %4 = vector.broadcast %3 : vector<1x64xf32> to vector<256x64xf32>
    %5 = arith.addf %2, %4 : vector<256x64xf32>
    %cst_5 = arith.constant 3.000000e+01 : f32
    %6 = vector.broadcast %cst_5 : f32 to vector<256x64xf32>
    %7 = arith.mulf %6, %5 : vector<256x64xf32>
    %8 = math.sin %7 : vector<256x64xf32>
    %c0_6 = arith.constant 0 : index
    %c0_7 = arith.constant 0 : index
    %9 = vector.load %arg4[%c0_6, %c0_7] : memref<256x64xf32, #tpu.memory_space<vmem>>, vector<256x64xf32>
    tpu.vector_store %arg4[%c0_6, %c0_7], %8 {strides = array<i32>} : memref<256x64xf32, #tpu.memory_space<vmem>>, vector<256x64xf32>,
    return
  }
  func.func @transform_0(%arg0: i32) -> (i32, i32) {
    %c0_i32 = arith.constant 0 : i32
    %c0_i32_0 = arith.constant 0 : i32
    return %arg0, %c0_i32 : i32, i32
  }
  func.func @transform_1(%arg0: i32) -> (i32, i32) {
    %c0_i32 = arith.constant 0 : i32
    %c0_i32_0 = arith.constant 0 : i32
    %c0_i32_1 = arith.constant 0 : i32
    return %c0_i32, %c0_i32_0 : i32, i32
  }
  func.func @transform_2(%arg0: i32) -> (i32, i32) {
    %c0_i32 = arith.constant 0 : i32
    %c0_i32_0 = arith.constant 0 : i32
    %c0_i32_1 = arith.constant 0 : i32
    return %c0_i32, %c0_i32_0 : i32, i32
  }
  func.func @transform_3(%arg0: i32) -> (i32, i32) {
    %c0_i32 = arith.constant 0 : i32
    %c0_i32_0 = arith.constant 0 : i32
    return %arg0, %c0_i32 : i32, i32
  }
}

</mosaic_0001>

<llo_original>
// kernel: tpu_custom_call.1
$region0: #{tpu_custom_call.1}
  #allocation0 [shape = 'u32[]', space=smem, size = 0x4, offset = 0x4, fixed_abs, tag = 'smem constant byte address 0x4 - core index']
  #allocation1 [shape = 'u32[72,128]{1,0:T(1,128)}', space=vmem, size = 0x9000, scoped, tag = 'internal scratch']
  %s0 = inlined_call_operand.vmem [shape: f32[256,32], index: 0, kind: input, shape index: {}]
  %s1 = inlined_call_operand.vmem [shape: f32[32,64], index: 1, kind: input, shape index: {}]
  %s2 = inlined_call_operand.vmem [shape: f32[1,64], index: 2, kind: input, shape index: {}]
  %s3 = inlined_call_operand.vmem [shape: f32[256,64], index: 3, kind: output, shape index: {}]
  %s4 = sld [smem:[#allocation0]]
  $region22: #{tpu_custom_call.1} parent=0
    _
  %s6 = ssub.s32 1, %s4
  %s7 = scalar_select 0, %s6, %s4
  // Predicated region
  $region2: #{tpu_custom_call.1} parent=0 // pred_check
    _
  $region3: #{tpu_custom_call.1} parent=0 // pred_check_branch
    %9 = sbr.rel (0) target = $region5
  $region4: #{tpu_custom_call.1} parent=0 // pred_region
    _
  $region5: #{tpu_custom_call.1} parent=0 // pred_fallthru
    _
  // Predicated region
  $region6: #{tpu_custom_call.1} parent=0 // pred_check
    _
  $region7: #{tpu_custom_call.1} parent=0 // pred_check_branch
    %11 = sbr.rel (0) target = $region9
  $region8: #{tpu_custom_call.1} parent=0 // pred_region
    _
  $region9: #{tpu_custom_call.1} parent=0 // pred_fallthru
    _
  // Predicated region
  $region10: #{tpu_custom_call.1} parent=0 // pred_check
    _
  $region11: #{tpu_custom_call.1} parent=0 // pred_check_branch
    %13 = sbr.rel (0) target = $region13
  $region12: #{tpu_custom_call.1} parent=0 // pred_region
    _
  $region13: #{tpu_custom_call.1} parent=0 // pred_fallthru
    _
  %v14 = vld [vmem:[%s0] sm:$0xff]
  %v15 = vld [vmem:[%s0 + $0x8] sm:$0xff]
  %v16 = vld [vmem:[%s0 + $0x10] sm:$0xff]
  %v17 = vld [vmem:[%s0 + $0x18] sm:$0xff]
  %v18 = vld [vmem:[%s0 + $0x20] sm:$0xff]
  %v19 = vld [vmem:[%s0 + $0x28] sm:$0xff]
  %v20 = vld [vmem:[%s0 + $0x30] sm:$0xff]
  %v21 = vld [vmem:[%s0 + $0x38] sm:$0xff]
  %v22 = vld [vmem:[%s0 + $0x40] sm:$0xff]
  %v23 = vld [vmem:[%s0 + $0x48] sm:$0xff]
  %v24 = vld [vmem:[%s0 + $0x50] sm:$0xff]
  %v25 = vld [vmem:[%s0 + $0x58] sm:$0xff]
  %v26 = vld [vmem:[%s0 + $0x60] sm:$0xff]
  %v27 = vld [vmem:[%s0 + $0x68] sm:$0xff]
  %v28 = vld [vmem:[%s0 + $0x70] sm:$0xff]
  %v29 = vld [vmem:[%s0 + $0x78] sm:$0xff]
  %v30 = vld [vmem:[%s0 + $0x80] sm:$0xff]
  %v31 = vld [vmem:[%s0 + $0x88] sm:$0xff]
  %v32 = vld [vmem:[%s0 + $0x90] sm:$0xff]
  %v33 = vld [vmem:[%s0 + $0x98] sm:$0xff]
  %v34 = vld [vmem:[%s0 + $0xa0] sm:$0xff]
  %v35 = vld [vmem:[%s0 + $0xa8] sm:$0xff]
  %v36 = vld [vmem:[%s0 + $0xb0] sm:$0xff]
  %v37 = vld [vmem:[%s0 + $0xb8] sm:$0xff]
  %v38 = vld [vmem:[%s0 + $0xc0] sm:$0xff]
  %v39 = vld [vmem:[%s0 + $0xc8] sm:$0xff]
  %v40 = vld [vmem:[%s0 + $0xd0] sm:$0xff]
  %v41 = vld [vmem:[%s0 + $0xd8] sm:$0xff]
  %v42 = vld [vmem:[%s0 + $0xe0] sm:$0xff]
  %v43 = vld [vmem:[%s0 + $0xe8] sm:$0xff]
  %v44 = vld [vmem:[%s0 + $0xf0] sm:$0xff]
  %v45 = vld [vmem:[%s0 + $0xf8] sm:$0xff]
  %v46 = vld [vmem:[%s1] sm:$0xff]
  %v47 = vld [vmem:[%s1 + $0x8] sm:$0xff]
  %v48 = vld [vmem:[%s1 + $0x10] sm:$0xff]
  %v49 = vld [vmem:[%s1 + $0x18] sm:$0xff]
  %v50 = vld [vmem:[%s2] sm:$0x1]
  %v52 = vperm.slane %v50, 0
  %vm54 = vcmask 261120
  %v56 = vsel %vm54, %v14, 0
  %v59 = vsel %vm54, %v15, 0
  %v62 = vsel %vm54, %v16, 0
  %v65 = vsel %vm54, %v17, 0
  %v68 = vsel %vm54, %v18, 0
  %v71 = vsel %vm54, %v19, 0
  %v74 = vsel %vm54, %v20, 0
  %v77 = vsel %vm54, %v21, 0
  %v80 = vsel %vm54, %v22, 0
  %v83 = vsel %vm54, %v23, 0
  %v86 = vsel %vm54, %v24, 0
  %v89 = vsel %vm54, %v25, 0
  %v92 = vsel %vm54, %v26, 0
  %v95 = vsel %vm54, %v27, 0
  %v98 = vsel %vm54, %v28, 0
  %v101 = vsel %vm54, %v29, 0
  %v104 = vsel %vm54, %v30, 0
  %v107 = vsel %vm54, %v31, 0
  %v110 = vsel %vm54, %v32, 0
  %v113 = vsel %vm54, %v33, 0
  %v116 = vsel %vm54, %v34, 0
  %v119 = vsel %vm54, %v35, 0
  %v122 = vsel %vm54, %v36, 0
  %v125 = vsel %vm54, %v37, 0
  %v128 = vsel %vm54, %v38, 0
  %v131 = vsel %vm54, %v39, 0
  %v134 = vsel %vm54, %v40, 0
  %v137 = vsel %vm54, %v41, 0
  %v140 = vsel %vm54, %v42, 0
  %v143 = vsel %vm54, %v43, 0
  %v146 = vsel %vm54, %v44, 0
  %v149 = vsel %vm54, %v45, 0
  %151 = vmatpush.msra.mxu0 0.0
  %152 = vmatpush.msra.mxu0 0.0
  %153 = vmatpush.msra.mxu0 0.0
  %154 = vmatpush.msra.mxu0 0.0
  %155 = vmatpush.msra.mxu0 0.0
  %156 = vmatpush.msra.mxu0 0.0
  %157 = vmatpush.msra.mxu0 0.0
  %158 = vmatpush.msra.mxu0 0.0
  %159 = vmatpush.msra.mxu0 0.0
  %160 = vmatpush.msra.mxu0 0.0
  %161 = vmatpush.msra.mxu0 0.0
  %162 = vmatpush.msra.mxu0 0.0
  %163 = vmatpush.msra.mxu0 %v49
  %164 = vmatpush.msra.mxu0 %v48
  %165 = vmatpush.msra.mxu0 %v47
  %166 = vmatpush.msra.mxu0 %v46
  %167 = vmatmul.f32.gmra.mxu0 %v56
  %v168 = vpop.f32.mrf.mxu0
  %v169 = vadd.f32 %v52, %v168
  %170 = vmatmul.f32.gmra.mxu0 %v59
  %v171 = vpop.f32.mrf.mxu0
  %v172 = vadd.f32 %v52, %v171
  %173 = vmatmul.f32.gmra.mxu0 %v62
  %v174 = vpop.f32.mrf.mxu0
  %v175 = vadd.f32 %v52, %v174
  %176 = vmatmul.f32.gmra.mxu0 %v65
  %v177 = vpop.f32.mrf.mxu0
  %v178 = vadd.f32 %v52, %v177
  %179 = vmatmul.f32.gmra.mxu0 %v68
  %v180 = vpop.f32.mrf.mxu0
  %v181 = vadd.f32 %v52, %v180
  %182 = vmatmul.f32.gmra.mxu0 %v71
  %v183 = vpop.f32.mrf.mxu0
  %v184 = vadd.f32 %v52, %v183
  %185 = vmatmul.f32.gmra.mxu0 %v74
  %v186 = vpop.f32.mrf.mxu0
  %v187 = vadd.f32 %v52, %v186
  %188 = vmatmul.f32.gmra.mxu0 %v77
  %v189 = vpop.f32.mrf.mxu0
  %v190 = vadd.f32 %v52, %v189
  %191 = vmatmul.f32.gmra.mxu0 %v80
  %v192 = vpop.f32.mrf.mxu0
  %v193 = vadd.f32 %v52, %v192
  %194 = vmatmul.f32.gmra.mxu0 %v83
  %v195 = vpop.f32.mrf.mxu0
  %v196 = vadd.f32 %v52, %v195
  %197 = vmatmul.f32.gmra.mxu0 %v86
  %v198 = vpop.f32.mrf.mxu0
  %v199 = vadd.f32 %v52, %v198
  %200 = vmatmul.f32.gmra.mxu0 %v89
  %v201 = vpop.f32.mrf.mxu0
  %v202 = vadd.f32 %v52, %v201
  %203 = vmatmul.f32.gmra.mxu0 %v92
  %v204 = vpop.f32.mrf.mxu0
  %v205 = vadd.f32 %v52, %v204
  %206 = vmatmul.f32.gmra.mxu0 %v95
  %v207 = vpop.f32.mrf.mxu0
  %v208 = vadd.f32 %v52, %v207
  %209 = vmatmul.f32.gmra.mxu0 %v98
  %v210 = vpop.f32.mrf.mxu0
  %v211 = vadd.f32 %v52, %v210
  %212 = vmatmul.f32.gmra.mxu0 %v101
  %v213 = vpop.f32.mrf.mxu0
  %v214 = vadd.f32 %v52, %v213
  %215 = vmatmul.f32.gmra.mxu0 %v104
  %v216 = vpop.f32.mrf.mxu0
  %v217 = vadd.f32 %v52, %v216
  %218 = vmatmul.f32.gmra.mxu0 %v107
  %v219 = vpop.f32.mrf.mxu0
  %v220 = vadd.f32 %v52, %v219
  %221 = vmatmul.f32.gmra.mxu0 %v110
  %v222 = vpop.f32.mrf.mxu0
  %v223 = vadd.f32 %v52, %v222
  %224 = vmatmul.f32.gmra.mxu0 %v113
  %v225 = vpop.f32.mrf.mxu0
  %v226 = vadd.f32 %v52, %v225
  %227 = vmatmul.f32.gmra.mxu0 %v116
  %v228 = vpop.f32.mrf.mxu0
  %v229 = vadd.f32 %v52, %v228
  %230 = vmatmul.f32.gmra.mxu0 %v119
  %v231 = vpop.f32.mrf.mxu0
  %v232 = vadd.f32 %v52, %v231
  %233 = vmatmul.f32.gmra.mxu0 %v122
  %v234 = vpop.f32.mrf.mxu0
  %v235 = vadd.f32 %v52, %v234
  %236 = vmatmul.f32.gmra.mxu0 %v125
  %v237 = vpop.f32.mrf.mxu0
  %v238 = vadd.f32 %v52, %v237
  %239 = vmatmul.f32.gmra.mxu0 %v128
  %v240 = vpop.f32.mrf.mxu0
  %v241 = vadd.f32 %v52, %v240
  %242 = vmatmul.f32.gmra.mxu0 %v131
  %v243 = vpop.f32.mrf.mxu0
  %v244 = vadd.f32 %v52, %v243
  %245 = vmatmul.f32.gmra.mxu0 %v134
  %v246 = vpop.f32.mrf.mxu0
  %v247 = vadd.f32 %v52, %v246
  %248 = vmatmul.f32.gmra.mxu0 %v137
  %v249 = vpop.f32.mrf.mxu0
  %v250 = vadd.f32 %v52, %v249
  %251 = vmatmul.f32.gmra.mxu0 %v140
  %v252 = vpop.f32.mrf.mxu0
  %v253 = vadd.f32 %v52, %v252
  %254 = vmatmul.f32.gmra.mxu0 %v143
  %v255 = vpop.f32.mrf.mxu0
  %v256 = vadd.f32 %v52, %v255
  %257 = vmatmul.f32.gmra.mxu0 %v146
  %v258 = vpop.f32.mrf.mxu0
  %v259 = vadd.f32 %v52, %v258
  %260 = vmatmul.f32.gmra.mxu0 %v149
  %v261 = vpop.f32.mrf.mxu0
  %v262 = vadd.f32 %v52, %v261
  %263 = vdwg.mxu0
  %v264 = vmul.f32 %v169, 30.0
  %v265 = vmul.f32 %v172, 30.0
  %v266 = vmul.f32 %v175, 30.0
  %v267 = vmul.f32 %v178, 30.0
  %v268 = vmul.f32 %v181, 30.0
  %v269 = vmul.f32 %v184, 30.0
  %v270 = vmul.f32 %v187, 30.0
  %v271 = vmul.f32 %v190, 30.0
  %v272 = vmul.f32 %v193, 30.0
  %v273 = vmul.f32 %v196, 30.0
  %v274 = vmul.f32 %v199, 30.0
  %v275 = vmul.f32 %v202, 30.0
  %v276 = vmul.f32 %v205, 30.0
  %v277 = vmul.f32 %v208, 30.0
  %v278 = vmul.f32 %v211, 30.0
  %v279 = vmul.f32 %v214, 30.0
  %v280 = vmul.f32 %v217, 30.0
  %v281 = vmul.f32 %v220, 30.0
  %v282 = vmul.f32 %v223, 30.0
  %v283 = vmul.f32 %v226, 30.0
  %v284 = vmul.f32 %v229, 30.0
  %v285 = vmul.f32 %v232, 30.0
  %v286 = vmul.f32 %v235, 30.0
  %v287 = vmul.f32 %v238, 30.0
  %v288 = vmul.f32 %v241, 30.0
  %v289 = vmul.f32 %v244, 30.0
  %v290 = vmul.f32 %v247, 30.0
  %v291 = vmul.f32 %v250, 30.0
  %v292 = vmul.f32 %v253, 30.0
  %v293 = vmul.f32 %v256, 30.0
  %v294 = vmul.f32 %v259, 30.0
  %v295 = vmul.f32 %v262, 30.0
  %v296 = vand.u32 2147483647, %v264
  %vm297 = vcmp.le.f32.partialorder %v296, 0.7853982
  %vm298 = vcmp.lt.s32.totalorder %v264, 0
  %v299 = vand.u32 %v264, 2139095040
  %v300 = vshrl.u32 %v299, 23
  %v301 = vsub.s32 %v300, 127
  %v302 = vand.u32 2147483647, %v264
  %v303 = vand.u32 %v302, 8388607
  %v304 = vor.u32 %v303, 8388608
  %v305 = vsub.s32 0, %v304
  %v306 = vadd.s32 %v301, 1
  %vm307 = vcmp.gt.s32.totalorder %v306, 0
  %v308 = vsel %vm307, %v306, 0
  %v309 = vshrl.u32 %v308, 5
  %v310 = vand.u32 %v308, 31
  %v311 = vsub.s32 32, %v310
  %v312 = vshrl.u32 683565275, %v311
  %v313 = vshll.u32 683565275, %v310
  %v314 = vshrl.u32 2475754826, %v311
  %v315 = vor.u32 %v313, %v314
  %v316 = vshll.u32 2475754826, %v310
  %v317 = vshrl.u32 2131351028, %v311
  %v318 = vor.u32 %v316, %v317
  %v319 = vshll.u32 2131351028, %v310
  %v320 = vshrl.u32 2102212464, %v311
  %v321 = vor.u32 %v319, %v320
  %v322 = vshll.u32 2102212464, %v310
  %v323 = vshrl.u32 920167782, %v311
  %v324 = vor.u32 %v322, %v323
  %v325 = vshll.u32 920167782, %v310
  %v326 = vshrl.u32 1326507024, %v311
  %v327 = vor.u32 %v325, %v326
  %vm328 = vcmp.lt.s32.totalorder %v309, 1
  %vm329 = vcmp.lt.s32.totalorder %v309, 2
  %vm330 = vcmp.lt.s32.totalorder %v309, 3
  %vm331 = vcmp.lt.s32.totalorder %v309, 4
  %v332 = vsel %vm328, %v312, %v315
  %v333 = vsel %vm331, %v321, 2102212464
  %v334 = vsel %vm330, %v318, %v333
  %v335 = vsel %vm329, %v332, %v334
  %v336 = vsel %vm328, %v315, %v318
  %v337 = vsel %vm331, %v324, 920167782
  %v338 = vsel %vm330, %v321, %v337
  %v339 = vsel %vm329, %v336, %v338
  %v340 = vsel %vm328, %v318, %v321
  %v341 = vsel %vm331, %v327, 1326507024
  %v342 = vsel %vm330, %v324, %v341
  %v343 = vsel %vm329, %v340, %v342
  %v344 = vshll.u32 %v304, 8
  %v345 = vand.u32 %v344, 65535
  %v346 = vshrl.u32 %v344, 16
  %v347 = vand.u32 %v343, 65535
  %v348 = vshrl.u32 %v343, 16
  %v349 = vmul.u32 %v345, %v347
  %v350 = vmul.u32 %v345, %v348
  %v351 = vmul.u32 %v346, %v347
  %v352 = vmul.u32 %v346, %v348
  %v353 = vshll.u32 %v350, 16
  %v354 = vshrl.u32 %v350, 16
  %v355 = vshll.u32 %v351, 16
  %v356 = vshrl.u32 %v351, 16
  %vm357 = vc.u32 %v349, %v353
  %v358 = vsel %vm357, 1, 0
  %v359 = vadd.s32 %v349, %v353
  %v360 = vadd.s32 %v352, %v358
  %vm361 = vc.u32 %v359, %v355
  %v362 = vsel %vm361, 1, 0
  %v363 = vadd.s32 %v359, %v355
  %v364 = vadd.s32 %v360, %v362
  %v365 = vadd.s32 %v364, %v354
  %v366 = vadd.s32 %v365, %v356
  %v367 = vand.u32 %v344, 65535
  %v368 = vshrl.u32 %v344, 16
  %v369 = vand.u32 %v339, 65535
  %v370 = vshrl.u32 %v339, 16
  %v371 = vmul.u32 %v367, %v369
  %v372 = vmul.u32 %v367, %v370
  %v373 = vmul.u32 %v368, %v369
  %v374 = vmul.u32 %v368, %v370
  %v375 = vshll.u32 %v372, 16
  %v376 = vshrl.u32 %v372, 16
  %v377 = vshll.u32 %v373, 16
  %v378 = vshrl.u32 %v373, 16
  %vm379 = vc.u32 %v371, %v375
  %v380 = vsel %vm379, 1, 0
  %v381 = vadd.s32 %v371, %v375
  %v382 = vadd.s32 %v374, %v380
  %vm383 = vc.u32 %v381, %v377
  %v384 = vsel %vm383, 1, 0
  %v385 = vadd.s32 %v381, %v377
  %v386 = vadd.s32 %v382, %v384
  %v387 = vadd.s32 %v386, %v376
  %v388 = vadd.s32 %v387, %v378
  %v389 = vmul.u32 %v344, %v335
  %v390 = vadd.s32 %v366, %v385
  %vm391 = vc.u32 %v366, %v385
  %v392 = vadd.s32 %v388, 1
  %v393 = vsel %vm391, %v392, %v388
  %v394 = vadd.s32 %v389, %v393
  %v395 = vadd.s32 %v394, 536870912
  %v396 = vshrl.u32 %v395, 30
  %v397 = vshll.u32 %v396, 30
  %v398 = vsub.s32 %v394, %v397
  %vm399 = vcmp.lt.s32.totalorder %v398, 0
  %v400 = vsub.s32 0, %v398
  %v401 = vsel %vm399, %v400, %v398
  %v402 = vclz %v401
  %v403 = vsub.s32 %v402, 2
  %vm404 = vcmp.gt.s32.totalorder 0, %v403
  %v405 = vsel %vm404, 0, %v403
  %v406 = vsub.s32 32, %v405
  %v407 = vshll.u32 %v398, %v405
  %v408 = vshrl.u32 %v390, %v406
  %v409 = vor.u32 %v407, %v408
  %v410 = vsub.s32 4294967266, %v405
  %v411 = vadd.s32 %v410, 127
  %v412 = vshll.u32 %v411, 23
  %v413 = vor.u32 4788187, %v412
  %v414 = vand.u32 2147483647, %v413
  %v416 = vcvt.s32.f32 %v409
  %v417 = vmul.f32 %v416, %v414
  %v418 = vxor.u32 %v417, 2147483648
  %v419 = vsel %vm298, %v418, %v417
  %v420 = vsub.s32 4, %v396
  %v421 = vsel %vm298, %v420, %v396
  %v422 = vsel %vm297, %v264, %v419
  %v423 = vsel %vm297, 0, %v421
  %v424 = vmul.f32 %v422, %v422
  %v425 = vmul.f32 %v424, -0.001358992
  %v426 = vadd.f32 %v425, 0.041655596
  %v427 = vmul.f32 %v424, %v426
  %v428 = vadd.f32 %v427, -0.4999988
  %v429 = vmul.f32 %v424, %v428
  %v430 = vadd.f32 1.0, %v429
  %v431 = vmul.f32 %v422, %v422
  %v432 = vmul.f32 %v431, -0.00019511016
  %v433 = vadd.f32 %v432, 0.008332121
  %v434 = vmul.f32 %v431, %v433
  %v435 = vadd.f32 %v434, -0.16666654
  %v436 = vmul.f32 %v431, %v435
  %v437 = vadd.f32 %v436, 1.0
  %v438 = vmul.f32 %v437, %v422
  %vm439 = vweird.f32 %v264
  %v440 = vadd.s32 %v423, 3
  %v441 = vand.u32 %v440, 3
  %vm442 = vcmp.lt.s32.totalorder %v441, 2
  %vm443 = vcmp.eq.s32.totalorder %v441, 0
  %v444 = vxor.u32 %v438, 2147483648
  %v445 = vsel %vm443, %v430, %v444
  %vm446 = vcmp.eq.s32.totalorder %v441, 2
  %v447 = vxor.u32 %v430, 2147483648
  %v448 = vsel %vm446, %v447, %v438
  %v449 = vsel %vm442, %v445, %v448
  %v450 = vsel %vm439, nan, %v449
  %v451 = vand.u32 2147483647, %v265
  %vm452 = vcmp.le.f32.partialorder %v451, 0.7853982
  %vm453 = vcmp.lt.s32.totalorder %v265, 0
  %v454 = vand.u32 %v265, 2139095040
  %v455 = vshrl.u32 %v454, 23
  %v456 = vsub.s32 %v455, 127
  %v457 = vand.u32 2147483647, %v265
  %v458 = vand.u32 %v457, 8388607
  %v459 = vor.u32 %v458, 8388608
  %v460 = vsub.s32 0, %v459
  %v461 = vadd.s32 %v456, 1
  %vm462 = vcmp.gt.s32.totalorder %v461, 0
  %v463 = vsel %vm462, %v461, 0
  %v464 = vshrl.u32 %v463, 5
  %v465 = vand.u32 %v463, 31
  %v466 = vsub.s32 32, %v465
  %v467 = vshrl.u32 683565275, %v466
  %v468 = vshll.u32 683565275, %v465
  %v469 = vshrl.u32 2475754826, %v466
  %v470 = vor.u32 %v468, %v469
  %v471 = vshll.u32 2475754826, %v465
  %v472 = vshrl.u32 2131351028, %v466
  %v473 = vor.u32 %v471, %v472
  %v474 = vshll.u32 2131351028, %v465
  %v475 = vshrl.u32 2102212464, %v466
  %v476 = vor.u32 %v474, %v475
  %v477 = vshll.u32 2102212464, %v465
  %v478 = vshrl.u32 920167782, %v466
  %v479 = vor.u32 %v477, %v478
  %v480 = vshll.u32 920167782, %v465
  %v481 = vshrl.u32 1326507024, %v466
  %v482 = vor.u32 %v480, %v481
  %vm483 = vcmp.lt.s32.totalorder %v464, 1
  %vm484 = vcmp.lt.s32.totalorder %v464, 2
  %vm485 = vcmp.lt.s32.totalorder %v464, 3
  %vm486 = vcmp.lt.s32.totalorder %v464, 4
  %v487 = vsel %vm483, %v467, %v470
  %v488 = vsel %vm486, %v476, 2102212464
  %v489 = vsel %vm485, %v473, %v488
  %v490 = vsel %vm484, %v487, %v489
  %v491 = vsel %vm483, %v470, %v473
  %v492 = vsel %vm486, %v479, 920167782
  %v493 = vsel %vm485, %v476, %v492
  %v494 = vsel %vm484, %v491, %v493
  %v495 = vsel %vm483, %v473, %v476
  %v496 = vsel %vm486, %v482, 1326507024
  %v497 = vsel %vm485, %v479, %v496
  %v498 = vsel %vm484, %v495, %v497
  %v499 = vshll.u32 %v459, 8
  %v500 = vand.u32 %v499, 65535
  %v501 = vshrl.u32 %v499, 16
  %v502 = vand.u32 %v498, 65535
  %v503 = vshrl.u32 %v498, 16
  %v504 = vmul.u32 %v500, %v502
  %v505 = vmul.u32 %v500, %v503
  %v506 = vmul.u32 %v501, %v502
  %v507 = vmul.u32 %v501, %v503
  %v508 = vshll.u32 %v505, 16
  %v509 = vshrl.u32 %v505, 16
  %v510 = vshll.u32 %v506, 16
  %v511 = vshrl.u32 %v506, 16
  %vm512 = vc.u32 %v504, %v508
  %v513 = vsel %vm512, 1, 0
  %v514 = vadd.s32 %v504, %v508
  %v515 = vadd.s32 %v507, %v513
  %vm516 = vc.u32 %v514, %v510
  %v517 = vsel %vm516, 1, 0
  %v518 = vadd.s32 %v514, %v510
  %v519 = vadd.s32 %v515, %v517
  %v520 = vadd.s32 %v519, %v509
  %v521 = vadd.s32 %v520, %v511
  %v522 = vand.u32 %v499, 65535
  %v523 = vshrl.u32 %v499, 16
  %v524 = vand.u32 %v494, 65535
  %v525 = vshrl.u32 %v494, 16
  %v526 = vmul.u32 %v522, %v524
  %v527 = vmul.u32 %v522, %v525
  %v528 = vmul.u32 %v523, %v524
  %v529 = vmul.u32 %v523, %v525
  %v530 = vshll.u32 %v527, 16
  %v531 = vshrl.u32 %v527, 16
  %v532 = vshll.u32 %v528, 16
  %v533 = vshrl.u32 %v528, 16
  %vm534 = vc.u32 %v526, %v530
  %v535 = vsel %vm534, 1, 0
  %v536 = vadd.s32 %v526, %v530
  %v537 = vadd.s32 %v529, %v535
  %vm538 = vc.u32 %v536, %v532
  %v539 = vsel %vm538, 1, 0
  %v540 = vadd.s32 %v536, %v532
  %v541 = vadd.s32 %v537, %v539
  %v542 = vadd.s32 %v541, %v531
  %v543 = vadd.s32 %v542, %v533
  %v544 = vmul.u32 %v499, %v490
  %v545 = vadd.s32 %v521, %v540
  %vm546 = vc.u32 %v521, %v540
  %v547 = vadd.s32 %v543, 1
  %v548 = vsel %vm546, %v547, %v543
  %v549 = vadd.s32 %v544, %v548
  %v550 = vadd.s32 %v549, 536870912
  %v551 = vshrl.u32 %v550, 30
  %v552 = vshll.u32 %v551, 30
  %v553 = vsub.s32 %v549, %v552
  %vm554 = vcmp.lt.s32.totalorder %v553, 0
  %v555 = vsub.s32 0, %v553
  %v556 = vsel %vm554, %v555, %v553
  %v557 = vclz %v556
  %v558 = vsub.s32 %v557, 2
  %vm559 = vcmp.gt.s32.totalorder 0, %v558
  %v560 = vsel %vm559, 0, %v558
  %v561 = vsub.s32 32, %v560
  %v562 = vshll.u32 %v553, %v560
  %v563 = vshrl.u32 %v545, %v561
  %v564 = vor.u32 %v562, %v563
  %v565 = vsub.s32 4294967266, %v560
  %v566 = vadd.s32 %v565, 127
  %v567 = vshll.u32 %v566, 23
  %v568 = vor.u32 4788187, %v567
  %v569 = vand.u32 2147483647, %v568
  %v571 = vcvt.s32.f32 %v564
  %v572 = vmul.f32 %v571, %v569
  %v573 = vxor.u32 %v572, 2147483648
  %v574 = vsel %vm453, %v573, %v572
  %v575 = vsub.s32 4, %v551
  %v576 = vsel %vm453, %v575, %v551
  %v577 = vsel %vm452, %v265, %v574
  %v578 = vsel %vm452, 0, %v576
  %v579 = vmul.f32 %v577, %v577
  %v580 = vmul.f32 %v579, -0.001358992
  %v581 = vadd.f32 %v580, 0.041655596
  %v582 = vmul.f32 %v579, %v581
  %v583 = vadd.f32 %v582, -0.4999988
  %v584 = vmul.f32 %v579, %v583
  %v585 = vadd.f32 1.0, %v584
  %v586 = vmul.f32 %v577, %v577
  %v587 = vmul.f32 %v586, -0.00019511016
  %v588 = vadd.f32 %v587, 0.008332121
  %v589 = vmul.f32 %v586, %v588
  %v590 = vadd.f32 %v589, -0.16666654
  %v591 = vmul.f32 %v586, %v590
  %v592 = vadd.f32 %v591, 1.0
  %v593 = vmul.f32 %v592, %v577
  %vm594 = vweird.f32 %v265
  %v595 = vadd.s32 %v578, 3
  %v596 = vand.u32 %v595, 3
  %vm597 = vcmp.lt.s32.totalorder %v596, 2
  %vm598 = vcmp.eq.s32.totalorder %v596, 0
  %v599 = vxor.u32 %v593, 2147483648
  %v600 = vsel %vm598, %v585, %v599
  %vm601 = vcmp.eq.s32.totalorder %v596, 2
  %v602 = vxor.u32 %v585, 2147483648
  %v603 = vsel %vm601, %v602, %v593
  %v604 = vsel %vm597, %v600, %v603
  %v605 = vsel %vm594, nan, %v604
  %v606 = vand.u32 2147483647, %v266
  %vm607 = vcmp.le.f32.partialorder %v606, 0.7853982
  %vm608 = vcmp.lt.s32.totalorder %v266, 0
  %v609 = vand.u32 %v266, 2139095040
  %v610 = vshrl.u32 %v609, 23
  %v611 = vsub.s32 %v610, 127
  %v612 = vand.u32 2147483647, %v266
  %v613 = vand.u32 %v612, 8388607
  %v614 = vor.u32 %v613, 8388608
  %v615 = vsub.s32 0, %v614
  %v616 = vadd.s32 %v611, 1
  %vm617 = vcmp.gt.s32.totalorder %v616, 0
  %v618 = vsel %vm617, %v616, 0
  %v619 = vshrl.u32 %v618, 5
  %v620 = vand.u32 %v618, 31
  %v621 = vsub.s32 32, %v620
  %v622 = vshrl.u32 683565275, %v621
  %v623 = vshll.u32 683565275, %v620
  %v624 = vshrl.u32 2475754826, %v621
  %v625 = vor.u32 %v623, %v624
  %v626 = vshll.u32 2475754826, %v620
  %v627 = vshrl.u32 2131351028, %v621
  %v628 = vor.u32 %v626, %v627
  %v629 = vshll.u32 2131351028, %v620
  %v630 = vshrl.u32 2102212464, %v621
  %v631 = vor.u32 %v629, %v630
  %v632 = vshll.u32 2102212464, %v620
  %v633 = vshrl.u32 920167782, %v621
  %v634 = vor.u32 %v632, %v633
  %v635 = vshll.u32 920167782, %v620
  %v636 = vshrl.u32 1326507024, %v621
  %v637 = vor.u32 %v635, %v636
  %vm638 = vcmp.lt.s32.totalorder %v619, 1
  %vm639 = vcmp.lt.s32.totalorder %v619, 2
  %vm640 = vcmp.lt.s32.totalorder %v619, 3
  %vm641 = vcmp.lt.s32.totalorder %v619, 4
  %v642 = vsel %vm638, %v622, %v625
  %v643 = vsel %vm641, %v631, 2102212464
  %v644 = vsel %vm640, %v628, %v643
  %v645 = vsel %vm639, %v642, %v644
  %v646 = vsel %vm638, %v625, %v628
  %v647 = vsel %vm641, %v634, 920167782
  %v648 = vsel %vm640, %v631, %v647
  %v649 = vsel %vm639, %v646, %v648
  %v650 = vsel %vm638, %v628, %v631
  %v651 = vsel %vm641, %v637, 1326507024
  %v652 = vsel %vm640, %v634, %v651
  %v653 = vsel %vm639, %v650, %v652
  %v654 = vshll.u32 %v614, 8
  %v655 = vand.u32 %v654, 65535
  %v656 = vshrl.u32 %v654, 16
  %v657 = vand.u32 %v653, 65535
  %v658 = vshrl.u32 %v653, 16
  %v659 = vmul.u32 %v655, %v657
  %v660 = vmul.u32 %v655, %v658
  %v661 = vmul.u32 %v656, %v657
  %v662 = vmul.u32 %v656, %v658
  %v663 = vshll.u32 %v660, 16
  %v664 = vshrl.u32 %v660, 16
  %v665 = vshll.u32 %v661, 16
  %v666 = vshrl.u32 %v661, 16
  %vm667 = vc.u32 %v659, %v663
  %v668 = vsel %vm667, 1, 0
  %v669 = vadd.s32 %v659, %v663
  %v670 = vadd.s32 %v662, %v668
  %vm671 = vc.u32 %v669, %v665
  %v672 = vsel %vm671, 1, 0
  %v673 = vadd.s32 %v669, %v665
  %v674 = vadd.s32 %v670, %v672
  %v675 = vadd.s32 %v674, %v664
  %v676 = vadd.s32 %v675, %v666
  %v677 = vand.u32 %v654, 65535
  %v678 = vshrl.u32 %v654, 16
  %v679 = vand.u32 %v649, 65535
  %v680 = vshrl.u32 %v649, 16
  %v681 = vmul.u32 %v677, %v679
  %v682 = vmul.u32 %v677, %v680
  %v683 = vmul.u32 %v678, %v679
  %v684 = vmul.u32 %v678, %v680
  %v685 = vshll.u32 %v682, 16
  %v686 = vshrl.u32 %v682, 16
  %v687 = vshll.u32 %v683, 16
  %v688 = vshrl.u32 %v683, 16
  %vm689 = vc.u32 %v681, %v685
  %v690 = vsel %vm689, 1, 0
  %v691 = vadd.s32 %v681, %v685
  %v692 = vadd.s32 %v684, %v690
  %vm693 = vc.u32 %v691, %v687
  %v694 = vsel %vm693, 1, 0
  %v695 = vadd.s32 %v691, %v687
  %v696 = vadd.s32 %v692, %v694
  %v697 = vadd.s32 %v696, %v686
  %v698 = vadd.s32 %v697, %v688
  %v699 = vmul.u32 %v654, %v645
  %v700 = vadd.s32 %v676, %v695
  %vm701 = vc.u32 %v676, %v695
  %v702 = vadd.s32 %v698, 1
  %v703 = vsel %vm701, %v702, %v698
  %v704 = vadd.s32 %v699, %v703
  %v705 = vadd.s32 %v704, 536870912
  %v706 = vshrl.u32 %v705, 30
  %v707 = vshll.u32 %v706, 30
  %v708 = vsub.s32 %v704, %v707
  %vm709 = vcmp.lt.s32.totalorder %v708, 0
  %v710 = vsub.s32 0, %v708
  %v711 = vsel %vm709, %v710, %v708
  %v712 = vclz %v711
  %v713 = vsub.s32 %v712, 2
  %vm714 = vcmp.gt.s32.totalorder 0, %v713
  %v715 = vsel %vm714, 0, %v713
  %v716 = vsub.s32 32, %v715
  %v717 = vshll.u32 %v708, %v715
  %v718 = vshrl.u32 %v700, %v716
  %v719 = vor.u32 %v717, %v718
  %v720 = vsub.s32 4294967266, %v715
  %v721 = vadd.s32 %v720, 127
  %v722 = vshll.u32 %v721, 23
  %v723 = vor.u32 4788187, %v722
  %v724 = vand.u32 2147483647, %v723
  %v726 = vcvt.s32.f32 %v719
  %v727 = vmul.f32 %v726, %v724
  %v728 = vxor.u32 %v727, 2147483648
  %v729 = vsel %vm608, %v728, %v727
  %v730 = vsub.s32 4, %v706
  %v731 = vsel %vm608, %v730, %v706
  %v732 = vsel %vm607, %v266, %v729
  %v733 = vsel %vm607, 0, %v731
  %v734 = vmul.f32 %v732, %v732
  %v735 = vmul.f32 %v734, -0.001358992
  %v736 = vadd.f32 %v735, 0.041655596
  %v737 = vmul.f32 %v734, %v736
  %v738 = vadd.f32 %v737, -0.4999988
  %v739 = vmul.f32 %v734, %v738
  %v740 = vadd.f32 1.0, %v739
  %v741 = vmul.f32 %v732, %v732
  %v742 = vmul.f32 %v741, -0.00019511016
  %v743 = vadd.f32 %v742, 0.008332121
  %v744 = vmul.f32 %v741, %v743
  %v745 = vadd.f32 %v744, -0.16666654
  %v746 = vmul.f32 %v741, %v745
  %v747 = vadd.f32 %v746, 1.0
  %v748 = vmul.f32 %v747, %v732
  %vm749 = vweird.f32 %v266
  %v750 = vadd.s32 %v733, 3
  %v751 = vand.u32 %v750, 3
  %vm752 = vcmp.lt.s32.totalorder %v751, 2
  %vm753 = vcmp.eq.s32.totalorder %v751, 0
  %v754 = vxor.u32 %v748, 2147483648
  %v755 = vsel %vm753, %v740, %v754
  %vm756 = vcmp.eq.s32.totalorder %v751, 2
  %v757 = vxor.u32 %v740, 2147483648
  %v758 = vsel %vm756, %v757, %v748
  %v759 = vsel %vm752, %v755, %v758
  %v760 = vsel %vm749, nan, %v759
  %v761 = vand.u32 2147483647, %v267
  %vm762 = vcmp.le.f32.partialorder %v761, 0.7853982
  %vm763 = vcmp.lt.s32.totalorder %v267, 0
  %v764 = vand.u32 %v267, 2139095040
  %v765 = vshrl.u32 %v764, 23
  %v766 = vsub.s32 %v765, 127
  %v767 = vand.u32 2147483647, %v267
  %v768 = vand.u32 %v767, 8388607
  %v769 = vor.u32 %v768, 8388608
  %v770 = vsub.s32 0, %v769
  %v771 = vadd.s32 %v766, 1
  %vm772 = vcmp.gt.s32.totalorder %v771, 0
  %v773 = vsel %vm772, %v771, 0
  %v774 = vshrl.u32 %v773, 5
  %v775 = vand.u32 %v773, 31
  %v776 = vsub.s32 32, %v775
  %v777 = vshrl.u32 683565275, %v776
  %v778 = vshll.u32 683565275, %v775
  %v779 = vshrl.u32 2475754826, %v776
  %v780 = vor.u32 %v778, %v779
  %v781 = vshll.u32 2475754826, %v775
  %v782 = vshrl.u32 2131351028, %v776
  %v783 = vor.u32 %v781, %v782
  %v784 = vshll.u32 2131351028, %v775
  %v785 = vshrl.u32 2102212464, %v776
  %v786 = vor.u32 %v784, %v785
  %v787 = vshll.u32 2102212464, %v775
  %v788 = vshrl.u32 920167782, %v776
  %v789 = vor.u32 %v787, %v788
  %v790 = vshll.u32 920167782, %v775
  %v791 = vshrl.u32 1326507024, %v776
  %v792 = vor.u32 %v790, %v791
  %vm793 = vcmp.lt.s32.totalorder %v774, 1
  %vm794 = vcmp.lt.s32.totalorder %v774, 2
  %vm795 = vcmp.lt.s32.totalorder %v774, 3
  %vm796 = vcmp.lt.s32.totalorder %v774, 4
  %v797 = vsel %vm793, %v777, %v780
  %v798 = vsel %vm796, %v786, 2102212464
  %v799 = vsel %vm795, %v783, %v798
  %v800 = vsel %vm794, %v797, %v799
  %v801 = vsel %vm793, %v780, %v783
  %v802 = vsel %vm796, %v789, 920167782
  %v803 = vsel %vm795, %v786, %v802
  %v804 = vsel %vm794, %v801, %v803
  %v805 = vsel %vm793, %v783, %v786
  %v806 = vsel %vm796, %v792, 1326507024
  %v807 = vsel %vm795, %v789, %v806
  %v808 = vsel %vm794, %v805, %v807
  %v809 = vshll.u32 %v769, 8
  %v810 = vand.u32 %v809, 65535
  %v811 = vshrl.u32 %v809, 16
  %v812 = vand.u32 %v808, 65535
  %v813 = vshrl.u32 %v808, 16
  %v814 = vmul.u32 %v810, %v812
  %v815 = vmul.u32 %v810, %v813
  %v816 = vmul.u32 %v811, %v812
  %v817 = vmul.u32 %v811, %v813
  %v818 = vshll.u32 %v815, 16
  %v819 = vshrl.u32 %v815, 16
  %v820 = vshll.u32 %v816, 16
  %v821 = vshrl.u32 %v816, 16
  %vm822 = vc.u32 %v814, %v818
  %v823 = vsel %vm822, 1, 0
  %v824 = vadd.s32 %v814, %v818
  %v825 = vadd.s32 %v817, %v823
  %vm826 = vc.u32 %v824, %v820
  %v827 = vsel %vm826, 1, 0
  %v828 = vadd.s32 %v824, %v820
  %v829 = vadd.s32 %v825, %v827
  %v830 = vadd.s32 %v829, %v819
  %v831 = vadd.s32 %v830, %v821
  %v832 = vand.u32 %v809, 65535
  %v833 = vshrl.u32 %v809, 16
  %v834 = vand.u32 %v804, 65535
  %v835 = vshrl.u32 %v804, 16
  %v836 = vmul.u32 %v832, %v834
  %v837 = vmul.u32 %v832, %v835
  %v838 = vmul.u32 %v833, %v834
  %v839 = vmul.u32 %v833, %v835
  %v840 = vshll.u32 %v837, 16
  %v841 = vshrl.u32 %v837, 16
  %v842 = vshll.u32 %v838, 16
  %v843 = vshrl.u32 %v838, 16
  %vm844 = vc.u32 %v836, %v840
  %v845 = vsel %vm844, 1, 0
  %v846 = vadd.s32 %v836, %v840
  %v847 = vadd.s32 %v839, %v845
  %vm848 = vc.u32 %v846, %v842
  %v849 = vsel %vm848, 1, 0
  %v850 = vadd.s32 %v846, %v842
  %v851 = vadd.s32 %v847, %v849
  %v852 = vadd.s32 %v851, %v841
  %v853 = vadd.s32 %v852, %v843
  %v854 = vmul.u32 %v809, %v800
  %v855 = vadd.s32 %v831, %v850
  %vm856 = vc.u32 %v831, %v850
  %v857 = vadd.s32 %v853, 1
  %v858 = vsel %vm856, %v857, %v853
  %v859 = vadd.s32 %v854, %v858
  %v860 = vadd.s32 %v859, 536870912
  %v861 = vshrl.u32 %v860, 30
  %v862 = vshll.u32 %v861, 30
  %v863 = vsub.s32 %v859, %v862
  %vm864 = vcmp.lt.s32.totalorder %v863, 0
  %v865 = vsub.s32 0, %v863
  %v866 = vsel %vm864, %v865, %v863
  %v867 = vclz %v866
  %v868 = vsub.s32 %v867, 2
  %vm869 = vcmp.gt.s32.totalorder 0, %v868
  %v870 = vsel %vm869, 0, %v868
  %v871 = vsub.s32 32, %v870
  %v872 = vshll.u32 %v863, %v870
  %v873 = vshrl.u32 %v855, %v871
  %v874 = vor.u32 %v872, %v873
  %v875 = vsub.s32 4294967266, %v870
  %v876 = vadd.s32 %v875, 127
  %v877 = vshll.u32 %v876, 23
  %v878 = vor.u32 4788187, %v877
  %v879 = vand.u32 2147483647, %v878
  %v881 = vcvt.s32.f32 %v874
  %v882 = vmul.f32 %v881, %v879
  %v883 = vxor.u32 %v882, 2147483648
  %v884 = vsel %vm763, %v883, %v882
  %v885 = vsub.s32 4, %v861
  %v886 = vsel %vm763, %v885, %v861
  %v887 = vsel %vm762, %v267, %v884
  %v888 = vsel %vm762, 0, %v886
  %v889 = vmul.f32 %v887, %v887
  %v890 = vmul.f32 %v889, -0.001358992
  %v891 = vadd.f32 %v890, 0.041655596
  %v892 = vmul.f32 %v889, %v891
  %v893 = vadd.f32 %v892, -0.4999988
  %v894 = vmul.f32 %v889, %v893
  %v895 = vadd.f32 1.0, %v894
  %v896 = vmul.f32 %v887, %v887
  %v897 = vmul.f32 %v896, -0.00019511016
  %v898 = vadd.f32 %v897, 0.008332121
  %v899 = vmul.f32 %v896, %v898
  %v900 = vadd.f32 %v899, -0.16666654
  %v901 = vmul.f32 %v896, %v900
  %v902 = vadd.f32 %v901, 1.0
  %v903 = vmul.f32 %v902, %v887
  %vm904 = vweird.f32 %v267
  %v905 = vadd.s32 %v888, 3
  %v906 = vand.u32 %v905, 3
  %vm907 = vcmp.lt.s32.totalorder %v906, 2
  %vm908 = vcmp.eq.s32.totalorder %v906, 0
  %v909 = vxor.u32 %v903, 2147483648
  %v910 = vsel %vm908, %v895, %v909
  %vm911 = vcmp.eq.s32.totalorder %v906, 2
  %v912 = vxor.u32 %v895, 2147483648
  %v913 = vsel %vm911, %v912, %v903
  %v914 = vsel %vm907, %v910, %v913
  %v915 = vsel %vm904, nan, %v914
  %v916 = vand.u32 2147483647, %v268
  %vm917 = vcmp.le.f32.partialorder %v916, 0.7853982
  %vm918 = vcmp.lt.s32.totalorder %v268, 0
  %v919 = vand.u32 %v268, 2139095040
  %v920 = vshrl.u32 %v919, 23
  %v921 = vsub.s32 %v920, 127
  %v922 = vand.u32 2147483647, %v268
  %v923 = vand.u32 %v922, 8388607
  %v924 = vor.u32 %v923, 8388608
  %v925 = vsub.s32 0, %v924
  %v926 = vadd.s32 %v921, 1
  %vm927 = vcmp.gt.s32.totalorder %v926, 0
  %v928 = vsel %vm927, %v926, 0
  %v929 = vshrl.u32 %v928, 5
  %v930 = vand.u32 %v928, 31
  %v931 = vsub.s32 32, %v930
  %v932 = vshrl.u32 683565275, %v931
  %v933 = vshll.u32 683565275, %v930
  %v934 = vshrl.u32 2475754826, %v931
  %v935 = vor.u32 %v933, %v934
  %v936 = vshll.u32 2475754826, %v930
  %v937 = vshrl.u32 2131351028, %v931
  %v938 = vor.u32 %v936, %v937
  %v939 = vshll.u32 2131351028, %v930
  %v940 = vshrl.u32 2102212464, %v931
  %v941 = vor.u32 %v939, %v940
  %v942 = vshll.u32 2102212464, %v930
  %v943 = vshrl.u32 920167782, %v931
  %v944 = vor.u32 %v942, %v943
  %v945 = vshll.u32 920167782, %v930
  %v946 = vshrl.u32 1326507024, %v931
  %v947 = vor.u32 %v945, %v946
  %vm948 = vcmp.lt.s32.totalorder %v929, 1
  %vm949 = vcmp.lt.s32.totalorder %v929, 2
  %vm950 = vcmp.lt.s32.totalorder %v929, 3
  %vm951 = vcmp.lt.s32.totalorder %v929, 4
  %v952 = vsel %vm948, %v932, %v935
  %v953 = vsel %vm951, %v941, 2102212464
  %v954 = vsel %vm950, %v938, %v953
  %v955 = vsel %vm949, %v952, %v954
  %v956 = vsel %vm948, %v935, %v938
  %v957 = vsel %vm951, %v944, 920167782
  %v958 = vsel %vm950, %v941, %v957
  %v959 = vsel %vm949, %v956, %v958
  %v960 = vsel %vm948, %v938, %v941
  %v961 = vsel %vm951, %v947, 1326507024
  %v962 = vsel %vm950, %v944, %v961
  %v963 = vsel %vm949, %v960, %v962
  %v964 = vshll.u32 %v924, 8
  %v965 = vand.u32 %v964, 65535
  %v966 = vshrl.u32 %v964, 16
  %v967 = vand.u32 %v963, 65535
  %v968 = vshrl.u32 %v963, 16
  %v969 = vmul.u32 %v965, %v967
  %v970 = vmul.u32 %v965, %v968
  %v971 = vmul.u32 %v966, %v967
  %v972 = vmul.u32 %v966, %v968
  %v973 = vshll.u32 %v970, 16
  %v974 = vshrl.u32 %v970, 16
  %v975 = vshll.u32 %v971, 16
  %v976 = vshrl.u32 %v971, 16
  %vm977 = vc.u32 %v969, %v973
  %v978 = vsel %vm977, 1, 0
  %v979 = vadd.s32 %v969, %v973
  %v980 = vadd.s32 %v972, %v978
  %vm981 = vc.u32 %v979, %v975
  %v982 = vsel %vm981, 1, 0
  %v983 = vadd.s32 %v979, %v975
  %v984 = vadd.s32 %v980, %v982
  %v985 = vadd.s32 %v984, %v974
  %v986 = vadd.s32 %v985, %v976
  %v987 = vand.u32 %v964, 65535
  %v988 = vshrl.u32 %v964, 16
  %v989 = vand.u32 %v959, 65535
  %v990 = vshrl.u32 %v959, 16
  %v991 = vmul.u32 %v987, %v989
  %v992 = vmul.u32 %v987, %v990
  %v993 = vmul.u32 %v988, %v989
  %v994 = vmul.u32 %v988, %v990
  %v995 = vshll.u32 %v992, 16
  %v996 = vshrl.u32 %v992, 16
  %v997 = vshll.u32 %v993, 16
  %v998 = vshrl.u32 %v993, 16
  %vm999 = vc.u32 %v991, %v995
  %v1000 = vsel %vm999, 1, 0
  %v1001 = vadd.s32 %v991, %v995
  %v1002 = vadd.s32 %v994, %v1000
  %vm1003 = vc.u32 %v1001, %v997
  %v1004 = vsel %vm1003, 1, 0
  %v1005 = vadd.s32 %v1001, %v997
  %v1006 = vadd.s32 %v1002, %v1004
  %v1007 = vadd.s32 %v1006, %v996
  %v1008 = vadd.s32 %v1007, %v998
  %v1009 = vmul.u32 %v964, %v955
  %v1010 = vadd.s32 %v986, %v1005
  %vm1011 = vc.u32 %v986, %v1005
  %v1012 = vadd.s32 %v1008, 1
  %v1013 = vsel %vm1011, %v1012, %v1008
  %v1014 = vadd.s32 %v1009, %v1013
  %v1015 = vadd.s32 %v1014, 536870912
  %v1016 = vshrl.u32 %v1015, 30
  %v1017 = vshll.u32 %v1016, 30
  %v1018 = vsub.s32 %v1014, %v1017
  %vm1019 = vcmp.lt.s32.totalorder %v1018, 0
  %v1020 = vsub.s32 0, %v1018
  %v1021 = vsel %vm1019, %v1020, %v1018
  %v1022 = vclz %v1021
  %v1023 = vsub.s32 %v1022, 2
  %vm1024 = vcmp.gt.s32.totalorder 0, %v1023
  %v1025 = vsel %vm1024, 0, %v1023
  %v1026 = vsub.s32 32, %v1025
  %v1027 = vshll.u32 %v1018, %v1025
  %v1028 = vshrl.u32 %v1010, %v1026
  %v1029 = vor.u32 %v1027, %v1028
  %v1030 = vsub.s32 4294967266, %v1025
  %v1031 = vadd.s32 %v1030, 127
  %v1032 = vshll.u32 %v1031, 23
  %v1033 = vor.u32 4788187, %v1032
  %v1034 = vand.u32 2147483647, %v1033
  %v1036 = vcvt.s32.f32 %v1029
  %v1037 = vmul.f32 %v1036, %v1034
  %v1038 = vxor.u32 %v1037, 2147483648
  %v1039 = vsel %vm918, %v1038, %v1037
  %v1040 = vsub.s32 4, %v1016
  %v1041 = vsel %vm918, %v1040, %v1016
  %v1042 = vsel %vm917, %v268, %v1039
  %v1043 = vsel %vm917, 0, %v1041
  %v1044 = vmul.f32 %v1042, %v1042
  %v1045 = vmul.f32 %v1044, -0.001358992
  %v1046 = vadd.f32 %v1045, 0.041655596
  %v1047 = vmul.f32 %v1044, %v1046
  %v1048 = vadd.f32 %v1047, -0.4999988
  %v1049 = vmul.f32 %v1044, %v1048
  %v1050 = vadd.f32 1.0, %v1049
  %v1051 = vmul.f32 %v1042, %v1042
  %v1052 = vmul.f32 %v1051, -0.00019511016
  %v1053 = vadd.f32 %v1052, 0.008332121
  %v1054 = vmul.f32 %v1051, %v1053
  %v1055 = vadd.f32 %v1054, -0.16666654
  %v1056 = vmul.f32 %v1051, %v1055
  %v1057 = vadd.f32 %v1056, 1.0
  %v1058 = vmul.f32 %v1057, %v1042
  %vm1059 = vweird.f32 %v268
  %v1060 = vadd.s32 %v1043, 3
  %v1061 = vand.u32 %v1060, 3
  %vm1062 = vcmp.lt.s32.totalorder %v1061, 2
  %vm1063 = vcmp.eq.s32.totalorder %v1061, 0
  %v1064 = vxor.u32 %v1058, 2147483648
  %v1065 = vsel %vm1063, %v1050, %v1064
  %vm1066 = vcmp.eq.s32.totalorder %v1061, 2
  %v1067 = vxor.u32 %v1050, 2147483648
  %v1068 = vsel %vm1066, %v1067, %v1058
  %v1069 = vsel %vm1062, %v1065, %v1068
  %v1070 = vsel %vm1059, nan, %v1069
  %v1071 = vand.u32 2147483647, %v269
  %vm1072 = vcmp.le.f32.partialorder %v1071, 0.7853982
  %vm1073 = vcmp.lt.s32.totalorder %v269, 0
  %v1074 = vand.u32 %v269, 2139095040
  %v1075 = vshrl.u32 %v1074, 23
  %v1076 = vsub.s32 %v1075, 127
  %v1077 = vand.u32 2147483647, %v269
  %v1078 = vand.u32 %v1077, 8388607
  %v1079 = vor.u32 %v1078, 8388608
  %v1080 = vsub.s32 0, %v1079
  %v1081 = vadd.s32 %v1076, 1
  %vm1082 = vcmp.gt.s32.totalorder %v1081, 0
  %v1083 = vsel %vm1082, %v1081, 0
  %v1084 = vshrl.u32 %v1083, 5
  %v1085 = vand.u32 %v1083, 31
  %v1086 = vsub.s32 32, %v1085
  %v1087 = vshrl.u32 683565275, %v1086
  %v1088 = vshll.u32 683565275, %v1085
  %v1089 = vshrl.u32 2475754826, %v1086
  %v1090 = vor.u32 %v1088, %v1089
  %v1091 = vshll.u32 2475754826, %v1085
  %v1092 = vshrl.u32 2131351028, %v1086
  %v1093 = vor.u32 %v1091, %v1092
  %v1094 = vshll.u32 2131351028, %v1085
  %v1095 = vshrl.u32 2102212464, %v1086
  %v1096 = vor.u32 %v1094, %v1095
  %v1097 = vshll.u32 2102212464, %v1085
  %v1098 = vshrl.u32 920167782, %v1086
  %v1099 = vor.u32 %v1097, %v1098
  %v1100 = vshll.u32 920167782, %v1085
  %v1101 = vshrl.u32 1326507024, %v1086
  %v1102 = vor.u32 %v1100, %v1101
  %vm1103 = vcmp.lt.s32.totalorder %v1084, 1
  %vm1104 = vcmp.lt.s32.totalorder %v1084, 2
  %vm1105 = vcmp.lt.s32.totalorder %v1084, 3
  %vm1106 = vcmp.lt.s32.totalorder %v1084, 4
  %v1107 = vsel %vm1103, %v1087, %v1090
  %v1108 = vsel %vm1106, %v1096, 2102212464
  %v1109 = vsel %vm1105, %v1093, %v1108
  %v1110 = vsel %vm1104, %v1107, %v1109
  %v1111 = vsel %vm1103, %v1090, %v1093
  %v1112 = vsel %vm1106, %v1099, 920167782
  %v1113 = vsel %vm1105, %v1096, %v1112
  %v1114 = vsel %vm1104, %v1111, %v1113
  %v1115 = vsel %vm1103, %v1093, %v1096
  %v1116 = vsel %vm1106, %v1102, 1326507024
  %v1117 = vsel %vm1105, %v1099, %v1116
  %v1118 = vsel %vm1104, %v1115, %v1117
  %v1119 = vshll.u32 %v1079, 8
  %v1120 = vand.u32 %v1119, 65535
  %v1121 = vshrl.u32 %v1119, 16
  %v1122 = vand.u32 %v1118, 65535
  %v1123 = vshrl.u32 %v1118, 16
  %v1124 = vmul.u32 %v1120, %v1122
  %v1125 = vmul.u32 %v1120, %v1123
  %v1126 = vmul.u32 %v1121, %v1122
  %v1127 = vmul.u32 %v1121, %v1123
  %v1128 = vshll.u32 %v1125, 16
  %v1129 = vshrl.u32 %v1125, 16
  %v1130 = vshll.u32 %v1126, 16
  %v1131 = vshrl.u32 %v1126, 16
  %vm1132 = vc.u32 %v1124, %v1128
  %v1133 = vsel %vm1132, 1, 0
  %v1134 = vadd.s32 %v1124, %v1128
  %v1135 = vadd.s32 %v1127, %v1133
  %vm1136 = vc.u32 %v1134, %v1130
  %v1137 = vsel %vm1136, 1, 0
  %v1138 = vadd.s32 %v1134, %v1130
  %v1139 = vadd.s32 %v1135, %v1137
  %v1140 = vadd.s32 %v1139, %v1129
  %v1141 = vadd.s32 %v1140, %v1131
  %v1142 = vand.u32 %v1119, 65535
  %v1143 = vshrl.u32 %v1119, 16
  %v1144 = vand.u32 %v1114, 65535
  %v1145 = vshrl.u32 %v1114, 16
  %v1146 = vmul.u32 %v1142, %v1144
  %v1147 = vmul.u32 %v1142, %v1145
  %v1148 = vmul.u32 %v1143, %v1144
  %v1149 = vmul.u32 %v1143, %v1145
  %v1150 = vshll.u32 %v1147, 16
  %v1151 = vshrl.u32 %v1147, 16
  %v1152 = vshll.u32 %v1148, 16
  %v1153 = vshrl.u32 %v1148, 16
  %vm1154 = vc.u32 %v1146, %v1150
  %v1155 = vsel %vm1154, 1, 0
  %v1156 = vadd.s32 %v1146, %v1150
  %v1157 = vadd.s32 %v1149, %v1155
  %vm1158 = vc.u32 %v1156, %v1152
  %v1159 = vsel %vm1158, 1, 0
  %v1160 = vadd.s32 %v1156, %v1152
  %v1161 = vadd.s32 %v1157, %v1159
  %v1162 = vadd.s32 %v1161, %v1151
  %v1163 = vadd.s32 %v1162, %v1153
  %v1164 = vmul.u32 %v1119, %v1110
  %v1165 = vadd.s32 %v1141, %v1160
  %vm1166 = vc.u32 %v1141, %v1160
  %v1167 = vadd.s32 %v1163, 1
  %v1168 = vsel %vm1166, %v1167, %v1163
  %v1169 = vadd.s32 %v1164, %v1168
  %v1170 = vadd.s32 %v1169, 536870912
  %v1171 = vshrl.u32 %v1170, 30
  %v1172 = vshll.u32 %v1171, 30
  %v1173 = vsub.s32 %v1169, %v1172
  %vm1174 = vcmp.lt.s32.totalorder %v1173, 0
  %v1175 = vsub.s32 0, %v1173
  %v1176 = vsel %vm1174, %v1175, %v1173
  %v1177 = vclz %v1176
  %v1178 = vsub.s32 %v1177, 2
  %vm1179 = vcmp.gt.s32.totalorder 0, %v1178
  %v1180 = vsel %vm1179, 0, %v1178
  %v1181 = vsub.s32 32, %v1180
  %v1182 = vshll.u32 %v1173, %v1180
  %v1183 = vshrl.u32 %v1165, %v1181
  %v1184 = vor.u32 %v1182, %v1183
  %v1185 = vsub.s32 4294967266, %v1180
  %v1186 = vadd.s32 %v1185, 127
  %v1187 = vshll.u32 %v1186, 23
  %v1188 = vor.u32 4788187, %v1187
  %v1189 = vand.u32 2147483647, %v1188
  %v1191 = vcvt.s32.f32 %v1184
  %v1192 = vmul.f32 %v1191, %v1189
  %v1193 = vxor.u32 %v1192, 2147483648
  %v1194 = vsel %vm1073, %v1193, %v1192
  %v1195 = vsub.s32 4, %v1171
  %v1196 = vsel %vm1073, %v1195, %v1171
  %v1197 = vsel %vm1072, %v269, %v1194
  %v1198 = vsel %vm1072, 0, %v1196
  %v1199 = vmul.f32 %v1197, %v1197
  %v1200 = vmul.f32 %v1199, -0.001358992
  %v1201 = vadd.f32 %v1200, 0.041655596
  %v1202 = vmul.f32 %v1199, %v1201
  %v1203 = vadd.f32 %v1202, -0.4999988
  %v1204 = vmul.f32 %v1199, %v1203
  %v1205 = vadd.f32 1.0, %v1204
  %v1206 = vmul.f32 %v1197, %v1197
  %v1207 = vmul.f32 %v1206, -0.00019511016
  %v1208 = vadd.f32 %v1207, 0.008332121
  %v1209 = vmul.f32 %v1206, %v1208
  %v1210 = vadd.f32 %v1209, -0.16666654
  %v1211 = vmul.f32 %v1206, %v1210
  %v1212 = vadd.f32 %v1211, 1.0
  %v1213 = vmul.f32 %v1212, %v1197
  %vm1214 = vweird.f32 %v269
  %v1215 = vadd.s32 %v1198, 3
  %v1216 = vand.u32 %v1215, 3
  %vm1217 = vcmp.lt.s32.totalorder %v1216, 2
  %vm1218 = vcmp.eq.s32.totalorder %v1216, 0
  %v1219 = vxor.u32 %v1213, 2147483648
  %v1220 = vsel %vm1218, %v1205, %v1219
  %vm1221 = vcmp.eq.s32.totalorder %v1216, 2
  %v1222 = vxor.u32 %v1205, 2147483648
  %v1223 = vsel %vm1221, %v1222, %v1213
  %v1224 = vsel %vm1217, %v1220, %v1223
  %v1225 = vsel %vm1214, nan, %v1224
  %v1226 = vand.u32 2147483647, %v270
  %vm1227 = vcmp.le.f32.partialorder %v1226, 0.7853982
  %vm1228 = vcmp.lt.s32.totalorder %v270, 0
  %v1229 = vand.u32 %v270, 2139095040
  %v1230 = vshrl.u32 %v1229, 23
  %v1231 = vsub.s32 %v1230, 127
  %v1232 = vand.u32 2147483647, %v270
  %v1233 = vand.u32 %v1232, 8388607
  %v1234 = vor.u32 %v1233, 8388608
  %v1235 = vsub.s32 0, %v1234
  %v1236 = vadd.s32 %v1231, 1
  %vm1237 = vcmp.gt.s32.totalorder %v1236, 0
  %v1238 = vsel %vm1237, %v1236, 0
  %v1239 = vshrl.u32 %v1238, 5
  %v1240 = vand.u32 %v1238, 31
  %v1241 = vsub.s32 32, %v1240
  %v1242 = vshrl.u32 683565275, %v1241
  %v1243 = vshll.u32 683565275, %v1240
  %v1244 = vshrl.u32 2475754826, %v1241
  %v1245 = vor.u32 %v1243, %v1244
  %v1246 = vshll.u32 2475754826, %v1240
  %v1247 = vshrl.u32 2131351028, %v1241
  %v1248 = vor.u32 %v1246, %v1247
  %v1249 = vshll.u32 2131351028, %v1240
  %v1250 = vshrl.u32 2102212464, %v1241
  %v1251 = vor.u32 %v1249, %v1250
  %v1252 = vshll.u32 2102212464, %v1240
  %v1253 = vshrl.u32 920167782, %v1241
  %v1254 = vor.u32 %v1252, %v1253
  %v1255 = vshll.u32 920167782, %v1240
  %v1256 = vshrl.u32 1326507024, %v1241
  %v1257 = vor.u32 %v1255, %v1256
  %vm1258 = vcmp.lt.s32.totalorder %v1239, 1
  %vm1259 = vcmp.lt.s32.totalorder %v1239, 2
  %vm1260 = vcmp.lt.s32.totalorder %v1239, 3
  %vm1261 = vcmp.lt.s32.totalorder %v1239, 4
  %v1262 = vsel %vm1258, %v1242, %v1245
  %v1263 = vsel %vm1261, %v1251, 2102212464
  %v1264 = vsel %vm1260, %v1248, %v1263
  %v1265 = vsel %vm1259, %v1262, %v1264
  %v1266 = vsel %vm1258, %v1245, %v1248
  %v1267 = vsel %vm1261, %v1254, 920167782
  %v1268 = vsel %vm1260, %v1251, %v1267
  %v1269 = vsel %vm1259, %v1266, %v1268
  %v1270 = vsel %vm1258, %v1248, %v1251
  %v1271 = vsel %vm1261, %v1257, 1326507024
  %v1272 = vsel %vm1260, %v1254, %v1271
  %v1273 = vsel %vm1259, %v1270, %v1272
  %v1274 = vshll.u32 %v1234, 8
  %v1275 = vand.u32 %v1274, 65535
  %v1276 = vshrl.u32 %v1274, 16
  %v1277 = vand.u32 %v1273, 65535
  %v1278 = vshrl.u32 %v1273, 16
  %v1279 = vmul.u32 %v1275, %v1277
  %v1280 = vmul.u32 %v1275, %v1278
  %v1281 = vmul.u32 %v1276, %v1277
  %v1282 = vmul.u32 %v1276, %v1278
  %v1283 = vshll.u32 %v1280, 16
  %v1284 = vshrl.u32 %v1280, 16
  %v1285 = vshll.u32 %v1281, 16
  %v1286 = vshrl.u32 %v1281, 16
  %vm1287 = vc.u32 %v1279, %v1283
  %v1288 = vsel %vm1287, 1, 0
  %v1289 = vadd.s32 %v1279, %v1283
  %v1290 = vadd.s32 %v1282, %v1288
  %vm1291 = vc.u32 %v1289, %v1285
  %v1292 = vsel %vm1291, 1, 0
  %v1293 = vadd.s32 %v1289, %v1285
  %v1294 = vadd.s32 %v1290, %v1292
  %v1295 = vadd.s32 %v1294, %v1284
  %v1296 = vadd.s32 %v1295, %v1286
  %v1297 = vand.u32 %v1274, 65535
  %v1298 = vshrl.u32 %v1274, 16
  %v1299 = vand.u32 %v1269, 65535
  %v1300 = vshrl.u32 %v1269, 16
  %v1301 = vmul.u32 %v1297, %v1299
  %v1302 = vmul.u32 %v1297, %v1300
  %v1303 = vmul.u32 %v1298, %v1299
  %v1304 = vmul.u32 %v1298, %v1300
  %v1305 = vshll.u32 %v1302, 16
  %v1306 = vshrl.u32 %v1302, 16
  %v1307 = vshll.u32 %v1303, 16
  %v1308 = vshrl.u32 %v1303, 16
  %vm1309 = vc.u32 %v1301, %v1305
  %v1310 = vsel %vm1309, 1, 0
  %v1311 = vadd.s32 %v1301, %v1305
  %v1312 = vadd.s32 %v1304, %v1310
  %vm1313 = vc.u32 %v1311, %v1307
  %v1314 = vsel %vm1313, 1, 0
  %v1315 = vadd.s32 %v1311, %v1307
  %v1316 = vadd.s32 %v1312, %v1314
  %v1317 = vadd.s32 %v1316, %v1306
  %v1318 = vadd.s32 %v1317, %v1308
  %v1319 = vmul.u32 %v1274, %v1265
  %v1320 = vadd.s32 %v1296, %v1315
  %vm1321 = vc.u32 %v1296, %v1315
  %v1322 = vadd.s32 %v1318, 1
  %v1323 = vsel %vm1321, %v1322, %v1318
  %v1324 = vadd.s32 %v1319, %v1323
  %v1325 = vadd.s32 %v1324, 536870912
  %v1326 = vshrl.u32 %v1325, 30
  %v1327 = vshll.u32 %v1326, 30
  %v1328 = vsub.s32 %v1324, %v1327
  %vm1329 = vcmp.lt.s32.totalorder %v1328, 0
  %v1330 = vsub.s32 0, %v1328
  %v1331 = vsel %vm1329, %v1330, %v1328
  %v1332 = vclz %v1331
  %v1333 = vsub.s32 %v1332, 2
  %vm1334 = vcmp.gt.s32.totalorder 0, %v1333
  %v1335 = vsel %vm1334, 0, %v1333
  %v1336 = vsub.s32 32, %v1335
  %v1337 = vshll.u32 %v1328, %v1335
  %v1338 = vshrl.u32 %v1320, %v1336
  %v1339 = vor.u32 %v1337, %v1338
  %v1340 = vsub.s32 4294967266, %v1335
  %v1341 = vadd.s32 %v1340, 127
  %v1342 = vshll.u32 %v1341, 23
  %v1343 = vor.u32 4788187, %v1342
  %v1344 = vand.u32 2147483647, %v1343
  %v1346 = vcvt.s32.f32 %v1339
  %v1347 = vmul.f32 %v1346, %v1344
  %v1348 = vxor.u32 %v1347, 2147483648
  %v1349 = vsel %vm1228, %v1348, %v1347
  %v1350 = vsub.s32 4, %v1326
  %v1351 = vsel %vm1228, %v1350, %v1326
  %v1352 = vsel %vm1227, %v270, %v1349
  %v1353 = vsel %vm1227, 0, %v1351
  %v1354 = vmul.f32 %v1352, %v1352
  %v1355 = vmul.f32 %v1354, -0.001358992
  %v1356 = vadd.f32 %v1355, 0.041655596
  %v1357 = vmul.f32 %v1354, %v1356
  %v1358 = vadd.f32 %v1357, -0.4999988
  %v1359 = vmul.f32 %v1354, %v1358
  %v1360 = vadd.f32 1.0, %v1359
  %v1361 = vmul.f32 %v1352, %v1352
  %v1362 = vmul.f32 %v1361, -0.00019511016
  %v1363 = vadd.f32 %v1362, 0.008332121
  %v1364 = vmul.f32 %v1361, %v1363
  %v1365 = vadd.f32 %v1364, -0.16666654
  %v1366 = vmul.f32 %v1361, %v1365
  %v1367 = vadd.f32 %v1366, 1.0
  %v1368 = vmul.f32 %v1367, %v1352
  %vm1369 = vweird.f32 %v270
  %v1370 = vadd.s32 %v1353, 3
  %v1371 = vand.u32 %v1370, 3
  %vm1372 = vcmp.lt.s32.totalorder %v1371, 2
  %vm1373 = vcmp.eq.s32.totalorder %v1371, 0
  %v1374 = vxor.u32 %v1368, 2147483648
  %v1375 = vsel %vm1373, %v1360, %v1374
  %vm1376 = vcmp.eq.s32.totalorder %v1371, 2
  %v1377 = vxor.u32 %v1360, 2147483648
  %v1378 = vsel %vm1376, %v1377, %v1368
  %v1379 = vsel %vm1372, %v1375, %v1378
  %v1380 = vsel %vm1369, nan, %v1379
  %v1381 = vand.u32 2147483647, %v271
  %vm1382 = vcmp.le.f32.partialorder %v1381, 0.7853982
  %vm1383 = vcmp.lt.s32.totalorder %v271, 0
  %v1384 = vand.u32 %v271, 2139095040
  %v1385 = vshrl.u32 %v1384, 23
  %v1386 = vsub.s32 %v1385, 127
  %v1387 = vand.u32 2147483647, %v271
  %v1388 = vand.u32 %v1387, 8388607
  %v1389 = vor.u32 %v1388, 8388608
  %v1390 = vsub.s32 0, %v1389
  %v1391 = vadd.s32 %v1386, 1
  %vm1392 = vcmp.gt.s32.totalorder %v1391, 0
  %v1393 = vsel %vm1392, %v1391, 0
  %v1394 = vshrl.u32 %v1393, 5
  %v1395 = vand.u32 %v1393, 31
  %v1396 = vsub.s32 32, %v1395
  %v1397 = vshrl.u32 683565275, %v1396
  %v1398 = vshll.u32 683565275, %v1395
  %v1399 = vshrl.u32 2475754826, %v1396
  %v1400 = vor.u32 %v1398, %v1399
  %v1401 = vshll.u32 2475754826, %v1395
  %v1402 = vshrl.u32 2131351028, %v1396
  %v1403 = vor.u32 %v1401, %v1402
  %v1404 = vshll.u32 2131351028, %v1395
  %v1405 = vshrl.u32 2102212464, %v1396
  %v1406 = vor.u32 %v1404, %v1405
  %v1407 = vshll.u32 2102212464, %v1395
  %v1408 = vshrl.u32 920167782, %v1396
  %v1409 = vor.u32 %v1407, %v1408
  %v1410 = vshll.u32 920167782, %v1395
  %v1411 = vshrl.u32 1326507024, %v1396
  %v1412 = vor.u32 %v1410, %v1411
  %vm1413 = vcmp.lt.s32.totalorder %v1394, 1
  %vm1414 = vcmp.lt.s32.totalorder %v1394, 2
  %vm1415 = vcmp.lt.s32.totalorder %v1394, 3
  %vm1416 = vcmp.lt.s32.totalorder %v1394, 4
  %v1417 = vsel %vm1413, %v1397, %v1400
  %v1418 = vsel %vm1416, %v1406, 2102212464
  %v1419 = vsel %vm1415, %v1403, %v1418
  %v1420 = vsel %vm1414, %v1417, %v1419
  %v1421 = vsel %vm1413, %v1400, %v1403
  %v1422 = vsel %vm1416, %v1409, 920167782
  %v1423 = vsel %vm1415, %v1406, %v1422
  %v1424 = vsel %vm1414, %v1421, %v1423
  %v1425 = vsel %vm1413, %v1403, %v1406
  %v1426 = vsel %vm1416, %v1412, 1326507024
  %v1427 = vsel %vm1415, %v1409, %v1426
  %v1428 = vsel %vm1414, %v1425, %v1427
  %v1429 = vshll.u32 %v1389, 8
  %v1430 = vand.u32 %v1429, 65535
  %v1431 = vshrl.u32 %v1429, 16
  %v1432 = vand.u32 %v1428, 65535
  %v1433 = vshrl.u32 %v1428, 16
  %v1434 = vmul.u32 %v1430, %v1432
  %v1435 = vmul.u32 %v1430, %v1433
  %v1436 = vmul.u32 %v1431, %v1432
  %v1437 = vmul.u32 %v1431, %v1433
  %v1438 = vshll.u32 %v1435, 16
  %v1439 = vshrl.u32 %v1435, 16
  %v1440 = vshll.u32 %v1436, 16
  %v1441 = vshrl.u32 %v1436, 16
  %vm1442 = vc.u32 %v1434, %v1438
  %v1443 = vsel %vm1442, 1, 0
  %v1444 = vadd.s32 %v1434, %v1438
  %v1445 = vadd.s32 %v1437, %v1443
  %vm1446 = vc.u32 %v1444, %v1440
  %v1447 = vsel %vm1446, 1, 0
  %v1448 = vadd.s32 %v1444, %v1440
  %v1449 = vadd.s32 %v1445, %v1447
  %v1450 = vadd.s32 %v1449, %v1439
  %v1451 = vadd.s32 %v1450, %v1441
  %v1452 = vand.u32 %v1429, 65535
  %v1453 = vshrl.u32 %v1429, 16
  %v1454 = vand.u32 %v1424, 65535
  %v1455 = vshrl.u32 %v1424, 16
  %v1456 = vmul.u32 %v1452, %v1454
  %v1457 = vmul.u32 %v1452, %v1455
  %v1458 = vmul.u32 %v1453, %v1454
  %v1459 = vmul.u32 %v1453, %v1455
  %v1460 = vshll.u32 %v1457, 16
  %v1461 = vshrl.u32 %v1457, 16
  %v1462 = vshll.u32 %v1458, 16
  %v1463 = vshrl.u32 %v1458, 16
  %vm1464 = vc.u32 %v1456, %v1460
  %v1465 = vsel %vm1464, 1, 0
  %v1466 = vadd.s32 %v1456, %v1460
  %v1467 = vadd.s32 %v1459, %v1465
  %vm1468 = vc.u32 %v1466, %v1462
  %v1469 = vsel %vm1468, 1, 0
  %v1470 = vadd.s32 %v1466, %v1462
  %v1471 = vadd.s32 %v1467, %v1469
  %v1472 = vadd.s32 %v1471, %v1461
  %v1473 = vadd.s32 %v1472, %v1463
  %v1474 = vmul.u32 %v1429, %v1420
  %v1475 = vadd.s32 %v1451, %v1470
  %vm1476 = vc.u32 %v1451, %v1470
  %v1477 = vadd.s32 %v1473, 1
  %v1478 = vsel %vm1476, %v1477, %v1473
  %v1479 = vadd.s32 %v1474, %v1478
  %v1480 = vadd.s32 %v1479, 536870912
  %v1481 = vshrl.u32 %v1480, 30
  %v1482 = vshll.u32 %v1481, 30
  %v1483 = vsub.s32 %v1479, %v1482
  %vm1484 = vcmp.lt.s32.totalorder %v1483, 0
  %v1485 = vsub.s32 0, %v1483
  %v1486 = vsel %vm1484, %v1485, %v1483
  %v1487 = vclz %v1486
  %v1488 = vsub.s32 %v1487, 2
  %vm1489 = vcmp.gt.s32.totalorder 0, %v1488
  %v1490 = vsel %vm1489, 0, %v1488
  %v1491 = vsub.s32 32, %v1490
  %v1492 = vshll.u32 %v1483, %v1490
  %v1493 = vshrl.u32 %v1475, %v1491
  %v1494 = vor.u32 %v1492, %v1493
  %v1495 = vsub.s32 4294967266, %v1490
  %v1496 = vadd.s32 %v1495, 127
  %v1497 = vshll.u32 %v1496, 23
  %v1498 = vor.u32 4788187, %v1497
  %v1499 = vand.u32 2147483647, %v1498
  %v1501 = vcvt.s32.f32 %v1494
  %v1502 = vmul.f32 %v1501, %v1499
  %v1503 = vxor.u32 %v1502, 2147483648
  %v1504 = vsel %vm1383, %v1503, %v1502
  %v1505 = vsub.s32 4, %v1481
  %v1506 = vsel %vm1383, %v1505, %v1481
  %v1507 = vsel %vm1382, %v271, %v1504
  %v1508 = vsel %vm1382, 0, %v1506
  %v1509 = vmul.f32 %v1507, %v1507
  %v1510 = vmul.f32 %v1509, -0.001358992
  %v1511 = vadd.f32 %v1510, 0.041655596
  %v1512 = vmul.f32 %v1509, %v1511
  %v1513 = vadd.f32 %v1512, -0.4999988
  %v1514 = vmul.f32 %v1509, %v1513
  %v1515 = vadd.f32 1.0, %v1514
  %v1516 = vmul.f32 %v1507, %v1507
  %v1517 = vmul.f32 %v1516, -0.00019511016
  %v1518 = vadd.f32 %v1517, 0.008332121
  %v1519 = vmul.f32 %v1516, %v1518
  %v1520 = vadd.f32 %v1519, -0.16666654
  %v1521 = vmul.f32 %v1516, %v1520
  %v1522 = vadd.f32 %v1521, 1.0
  %v1523 = vmul.f32 %v1522, %v1507
  %vm1524 = vweird.f32 %v271
  %v1525 = vadd.s32 %v1508, 3
  %v1526 = vand.u32 %v1525, 3
  %vm1527 = vcmp.lt.s32.totalorder %v1526, 2
  %vm1528 = vcmp.eq.s32.totalorder %v1526, 0
  %v1529 = vxor.u32 %v1523, 2147483648
  %v1530 = vsel %vm1528, %v1515, %v1529
  %vm1531 = vcmp.eq.s32.totalorder %v1526, 2
  %v1532 = vxor.u32 %v1515, 2147483648
  %v1533 = vsel %vm1531, %v1532, %v1523
  %v1534 = vsel %vm1527, %v1530, %v1533
  %v1535 = vsel %vm1524, nan, %v1534
  %v1536 = vand.u32 2147483647, %v272
  %vm1537 = vcmp.le.f32.partialorder %v1536, 0.7853982
  %vm1538 = vcmp.lt.s32.totalorder %v272, 0
  %v1539 = vand.u32 %v272, 2139095040
  %v1540 = vshrl.u32 %v1539, 23
  %v1541 = vsub.s32 %v1540, 127
  %v1542 = vand.u32 2147483647, %v272
  %v1543 = vand.u32 %v1542, 8388607
  %v1544 = vor.u32 %v1543, 8388608
  %v1545 = vsub.s32 0, %v1544
  %v1546 = vadd.s32 %v1541, 1
  %vm1547 = vcmp.gt.s32.totalorder %v1546, 0
  %v1548 = vsel %vm1547, %v1546, 0
  %v1549 = vshrl.u32 %v1548, 5
  %v1550 = vand.u32 %v1548, 31
  %v1551 = vsub.s32 32, %v1550
  %v1552 = vshrl.u32 683565275, %v1551
  %v1553 = vshll.u32 683565275, %v1550
  %v1554 = vshrl.u32 2475754826, %v1551
  %v1555 = vor.u32 %v1553, %v1554
  %v1556 = vshll.u32 2475754826, %v1550
  %v1557 = vshrl.u32 2131351028, %v1551
  %v1558 = vor.u32 %v1556, %v1557
  %v1559 = vshll.u32 2131351028, %v1550
  %v1560 = vshrl.u32 2102212464, %v1551
  %v1561 = vor.u32 %v1559, %v1560
  %v1562 = vshll.u32 2102212464, %v1550
  %v1563 = vshrl.u32 920167782, %v1551
  %v1564 = vor.u32 %v1562, %v1563
  %v1565 = vshll.u32 920167782, %v1550
  %v1566 = vshrl.u32 1326507024, %v1551
  %v1567 = vor.u32 %v1565, %v1566
  %vm1568 = vcmp.lt.s32.totalorder %v1549, 1
  %vm1569 = vcmp.lt.s32.totalorder %v1549, 2
  %vm1570 = vcmp.lt.s32.totalorder %v1549, 3
  %vm1571 = vcmp.lt.s32.totalorder %v1549, 4
  %v1572 = vsel %vm1568, %v1552, %v1555
  %v1573 = vsel %vm1571, %v1561, 2102212464
  %v1574 = vsel %vm1570, %v1558, %v1573
  %v1575 = vsel %vm1569, %v1572, %v1574
  %v1576 = vsel %vm1568, %v1555, %v1558
  %v1577 = vsel %vm1571, %v1564, 920167782
  %v1578 = vsel %vm1570, %v1561, %v1577
  %v1579 = vsel %vm1569, %v1576, %v1578
  %v1580 = vsel %vm1568, %v1558, %v1561
  %v1581 = vsel %vm1571, %v1567, 1326507024
  %v1582 = vsel %vm1570, %v1564, %v1581
  %v1583 = vsel %vm1569, %v1580, %v1582
  %v1584 = vshll.u32 %v1544, 8
  %v1585 = vand.u32 %v1584, 65535
  %v1586 = vshrl.u32 %v1584, 16
  %v1587 = vand.u32 %v1583, 65535
  %v1588 = vshrl.u32 %v1583, 16
  %v1589 = vmul.u32 %v1585, %v1587
  %v1590 = vmul.u32 %v1585, %v1588
  %v1591 = vmul.u32 %v1586, %v1587
  %v1592 = vmul.u32 %v1586, %v1588
  %v1593 = vshll.u32 %v1590, 16
  %v1594 = vshrl.u32 %v1590, 16
  %v1595 = vshll.u32 %v1591, 16
  %v1596 = vshrl.u32 %v1591, 16
  %vm1597 = vc.u32 %v1589, %v1593
  %v1598 = vsel %vm1597, 1, 0
  %v1599 = vadd.s32 %v1589, %v1593
  %v1600 = vadd.s32 %v1592, %v1598
  %vm1601 = vc.u32 %v1599, %v1595
  %v1602 = vsel %vm1601, 1, 0
  %v1603 = vadd.s32 %v1599, %v1595
  %v1604 = vadd.s32 %v1600, %v1602
  %v1605 = vadd.s32 %v1604, %v1594
  %v1606 = vadd.s32 %v1605, %v1596
  %v1607 = vand.u32 %v1584, 65535
  %v1608 = vshrl.u32 %v1584, 16
  %v1609 = vand.u32 %v1579, 65535
  %v1610 = vshrl.u32 %v1579, 16
  %v1611 = vmul.u32 %v1607, %v1609
  %v1612 = vmul.u32 %v1607, %v1610
  %v1613 = vmul.u32 %v1608, %v1609
  %v1614 = vmul.u32 %v1608, %v1610
  %v1615 = vshll.u32 %v1612, 16
  %v1616 = vshrl.u32 %v1612, 16
  %v1617 = vshll.u32 %v1613, 16
  %v1618 = vshrl.u32 %v1613, 16
  %vm1619 = vc.u32 %v1611, %v1615
  %v1620 = vsel %vm1619, 1, 0
  %v1621 = vadd.s32 %v1611, %v1615
  %v1622 = vadd.s32 %v1614, %v1620
  %vm1623 = vc.u32 %v1621, %v1617
  %v1624 = vsel %vm1623, 1, 0
  %v1625 = vadd.s32 %v1621, %v1617
  %v1626 = vadd.s32 %v1622, %v1624
  %v1627 = vadd.s32 %v1626, %v1616
  %v1628 = vadd.s32 %v1627, %v1618
  %v1629 = vmul.u32 %v1584, %v1575
  %v1630 = vadd.s32 %v1606, %v1625
  %vm1631 = vc.u32 %v1606, %v1625
  %v1632 = vadd.s32 %v1628, 1
  %v1633 = vsel %vm1631, %v1632, %v1628
  %v1634 = vadd.s32 %v1629, %v1633
  %v1635 = vadd.s32 %v1634, 536870912
  %v1636 = vshrl.u32 %v1635, 30
  %v1637 = vshll.u32 %v1636, 30
  %v1638 = vsub.s32 %v1634, %v1637
  %vm1639 = vcmp.lt.s32.totalorder %v1638, 0
  %v1640 = vsub.s32 0, %v1638
  %v1641 = vsel %vm1639, %v1640, %v1638
  %v1642 = vclz %v1641
  %v1643 = vsub.s32 %v1642, 2
  %vm1644 = vcmp.gt.s32.totalorder 0, %v1643
  %v1645 = vsel %vm1644, 0, %v1643
  %v1646 = vsub.s32 32, %v1645
  %v1647 = vshll.u32 %v1638, %v1645
  %v1648 = vshrl.u32 %v1630, %v1646
  %v1649 = vor.u32 %v1647, %v1648
  %v1650 = vsub.s32 4294967266, %v1645
  %v1651 = vadd.s32 %v1650, 127
  %v1652 = vshll.u32 %v1651, 23
  %v1653 = vor.u32 4788187, %v1652
  %v1654 = vand.u32 2147483647, %v1653
  %v1656 = vcvt.s32.f32 %v1649
  %v1657 = vmul.f32 %v1656, %v1654
  %v1658 = vxor.u32 %v1657, 2147483648
  %v1659 = vsel %vm1538, %v1658, %v1657
  %v1660 = vsub.s32 4, %v1636
  %v1661 = vsel %vm1538, %v1660, %v1636
  %v1662 = vsel %vm1537, %v272, %v1659
  %v1663 = vsel %vm1537, 0, %v1661
  %v1664 = vmul.f32 %v1662, %v1662
  %v1665 = vmul.f32 %v1664, -0.001358992
  %v1666 = vadd.f32 %v1665, 0.041655596
  %v1667 = vmul.f32 %v1664, %v1666
  %v1668 = vadd.f32 %v1667, -0.4999988
  %v1669 = vmul.f32 %v1664, %v1668
  %v1670 = vadd.f32 1.0, %v1669
  %v1671 = vmul.f32 %v1662, %v1662
  %v1672 = vmul.f32 %v1671, -0.00019511016
  %v1673 = vadd.f32 %v1672, 0.008332121
  %v1674 = vmul.f32 %v1671, %v1673
  %v1675 = vadd.f32 %v1674, -0.16666654
  %v1676 = vmul.f32 %v1671, %v1675
  %v1677 = vadd.f32 %v1676, 1.0
  %v1678 = vmul.f32 %v1677, %v1662
  %vm1679 = vweird.f32 %v272
  %v1680 = vadd.s32 %v1663, 3
  %v1681 = vand.u32 %v1680, 3
  %vm1682 = vcmp.lt.s32.totalorder %v1681, 2
  %vm1683 = vcmp.eq.s32.totalorder %v1681, 0
  %v1684 = vxor.u32 %v1678, 2147483648
  %v1685 = vsel %vm1683, %v1670, %v1684
  %vm1686 = vcmp.eq.s32.totalorder %v1681, 2
  %v1687 = vxor.u32 %v1670, 2147483648
  %v1688 = vsel %vm1686, %v1687, %v1678
  %v1689 = vsel %vm1682, %v1685, %v1688
  %v1690 = vsel %vm1679, nan, %v1689
  %v1691 = vand.u32 2147483647, %v273
  %vm1692 = vcmp.le.f32.partialorder %v1691, 0.7853982
  %vm1693 = vcmp.lt.s32.totalorder %v273, 0
  %v1694 = vand.u32 %v273, 2139095040
  %v1695 = vshrl.u32 %v1694, 23
  %v1696 = vsub.s32 %v1695, 127
  %v1697 = vand.u32 2147483647, %v273
  %v1698 = vand.u32 %v1697, 8388607
  %v1699 = vor.u32 %v1698, 8388608
  %v1700 = vsub.s32 0, %v1699
  %v1701 = vadd.s32 %v1696, 1
  %vm1702 = vcmp.gt.s32.totalorder %v1701, 0
  %v1703 = vsel %vm1702, %v1701, 0
  %v1704 = vshrl.u32 %v1703, 5
  %v1705 = vand.u32 %v1703, 31
  %v1706 = vsub.s32 32, %v1705
  %v1707 = vshrl.u32 683565275, %v1706
  %v1708 = vshll.u32 683565275, %v1705
  %v1709 = vshrl.u32 2475754826, %v1706
  %v1710 = vor.u32 %v1708, %v1709
  %v1711 = vshll.u32 2475754826, %v1705
  %v1712 = vshrl.u32 2131351028, %v1706
  %v1713 = vor.u32 %v1711, %v1712
  %v1714 = vshll.u32 2131351028, %v1705
  %v1715 = vshrl.u32 2102212464, %v1706
  %v1716 = vor.u32 %v1714, %v1715
  %v1717 = vshll.u32 2102212464, %v1705
  %v1718 = vshrl.u32 920167782, %v1706
  %v1719 = vor.u32 %v1717, %v1718
  %v1720 = vshll.u32 920167782, %v1705
  %v1721 = vshrl.u32 1326507024, %v1706
  %v1722 = vor.u32 %v1720, %v1721
  %vm1723 = vcmp.lt.s32.totalorder %v1704, 1
  %vm1724 = vcmp.lt.s32.totalorder %v1704, 2
  %vm1725 = vcmp.lt.s32.totalorder %v1704, 3
  %vm1726 = vcmp.lt.s32.totalorder %v1704, 4
  %v1727 = vsel %vm1723, %v1707, %v1710
  %v1728 = vsel %vm1726, %v1716, 2102212464
  %v1729 = vsel %vm1725, %v1713, %v1728
  %v1730 = vsel %vm1724, %v1727, %v1729
  %v1731 = vsel %vm1723, %v1710, %v1713
  %v1732 = vsel %vm1726, %v1719, 920167782
  %v1733 = vsel %vm1725, %v1716, %v1732
  %v1734 = vsel %vm1724, %v1731, %v1733
  %v1735 = vsel %vm1723, %v1713, %v1716
  %v1736 = vsel %vm1726, %v1722, 1326507024
  %v1737 = vsel %vm1725, %v1719, %v1736
  %v1738 = vsel %vm1724, %v1735, %v1737
  %v1739 = vshll.u32 %v1699, 8
  %v1740 = vand.u32 %v1739, 65535
  %v1741 = vshrl.u32 %v1739, 16
  %v1742 = vand.u32 %v1738, 65535
  %v1743 = vshrl.u32 %v1738, 16
  %v1744 = vmul.u32 %v1740, %v1742
  %v1745 = vmul.u32 %v1740, %v1743
  %v1746 = vmul.u32 %v1741, %v1742
  %v1747 = vmul.u32 %v1741, %v1743
  %v1748 = vshll.u32 %v1745, 16
  %v1749 = vshrl.u32 %v1745, 16
  %v1750 = vshll.u32 %v1746, 16
  %v1751 = vshrl.u32 %v1746, 16
  %vm1752 = vc.u32 %v1744, %v1748
  %v1753 = vsel %vm1752, 1, 0
  %v1754 = vadd.s32 %v1744, %v1748
  %v1755 = vadd.s32 %v1747, %v1753
  %vm1756 = vc.u32 %v1754, %v1750
  %v1757 = vsel %vm1756, 1, 0
  %v1758 = vadd.s32 %v1754, %v1750
  %v1759 = vadd.s32 %v1755, %v1757
  %v1760 = vadd.s32 %v1759, %v1749
  %v1761 = vadd.s32 %v1760, %v1751
  %v1762 = vand.u32 %v1739, 65535
  %v1763 = vshrl.u32 %v1739, 16
  %v1764 = vand.u32 %v1734, 65535
  %v1765 = vshrl.u32 %v1734, 16
  %v1766 = vmul.u32 %v1762, %v1764
  %v1767 = vmul.u32 %v1762, %v1765
  %v1768 = vmul.u32 %v1763, %v1764
  %v1769 = vmul.u32 %v1763, %v1765
  %v1770 = vshll.u32 %v1767, 16
  %v1771 = vshrl.u32 %v1767, 16
  %v1772 = vshll.u32 %v1768, 16
  %v1773 = vshrl.u32 %v1768, 16
  %vm1774 = vc.u32 %v1766, %v1770
  %v1775 = vsel %vm1774, 1, 0
  %v1776 = vadd.s32 %v1766, %v1770
  %v1777 = vadd.s32 %v1769, %v1775
  %vm1778 = vc.u32 %v1776, %v1772
  %v1779 = vsel %vm1778, 1, 0
  %v1780 = vadd.s32 %v1776, %v1772
  %v1781 = vadd.s32 %v1777, %v1779
  %v1782 = vadd.s32 %v1781, %v1771
  %v1783 = vadd.s32 %v1782, %v1773
  %v1784 = vmul.u32 %v1739, %v1730
  %v1785 = vadd.s32 %v1761, %v1780
  %vm1786 = vc.u32 %v1761, %v1780
  %v1787 = vadd.s32 %v1783, 1
  %v1788 = vsel %vm1786, %v1787, %v1783
  %v1789 = vadd.s32 %v1784, %v1788
  %v1790 = vadd.s32 %v1789, 536870912
  %v1791 = vshrl.u32 %v1790, 30
  %v1792 = vshll.u32 %v1791, 30
  %v1793 = vsub.s32 %v1789, %v1792
  %vm1794 = vcmp.lt.s32.totalorder %v1793, 0
  %v1795 = vsub.s32 0, %v1793
  %v1796 = vsel %vm1794, %v1795, %v1793
  %v1797 = vclz %v1796
  %v1798 = vsub.s32 %v1797, 2
  %vm1799 = vcmp.gt.s32.totalorder 0, %v1798
  %v1800 = vsel %vm1799, 0, %v1798
  %v1801 = vsub.s32 32, %v1800
  %v1802 = vshll.u32 %v1793, %v1800
  %v1803 = vshrl.u32 %v1785, %v1801
  %v1804 = vor.u32 %v1802, %v1803
  %v1805 = vsub.s32 4294967266, %v1800
  %v1806 = vadd.s32 %v1805, 127
  %v1807 = vshll.u32 %v1806, 23
  %v1808 = vor.u32 4788187, %v1807
  %v1809 = vand.u32 2147483647, %v1808
  %v1811 = vcvt.s32.f32 %v1804
  %v1812 = vmul.f32 %v1811, %v1809
  %v1813 = vxor.u32 %v1812, 2147483648
  %v1814 = vsel %vm1693, %v1813, %v1812
  %v1815 = vsub.s32 4, %v1791
  %v1816 = vsel %vm1693, %v1815, %v1791
  %v1817 = vsel %vm1692, %v273, %v1814
  %v1818 = vsel %vm1692, 0, %v1816
  %v1819 = vmul.f32 %v1817, %v1817
  %v1820 = vmul.f32 %v1819, -0.001358992
  %v1821 = vadd.f32 %v1820, 0.041655596
  %v1822 = vmul.f32 %v1819, %v1821
  %v1823 = vadd.f32 %v1822, -0.4999988
  %v1824 = vmul.f32 %v1819, %v1823
  %v1825 = vadd.f32 1.0, %v1824
  %v1826 = vmul.f32 %v1817, %v1817
  %v1827 = vmul.f32 %v1826, -0.00019511016
  %v1828 = vadd.f32 %v1827, 0.008332121
  %v1829 = vmul.f32 %v1826, %v1828
  %v1830 = vadd.f32 %v1829, -0.16666654
  %v1831 = vmul.f32 %v1826, %v1830
  %v1832 = vadd.f32 %v1831, 1.0
  %v1833 = vmul.f32 %v1832, %v1817
  %vm1834 = vweird.f32 %v273
  %v1835 = vadd.s32 %v1818, 3
  %v1836 = vand.u32 %v1835, 3
  %vm1837 = vcmp.lt.s32.totalorder %v1836, 2
  %vm1838 = vcmp.eq.s32.totalorder %v1836, 0
  %v1839 = vxor.u32 %v1833, 2147483648
  %v1840 = vsel %vm1838, %v1825, %v1839
  %vm1841 = vcmp.eq.s32.totalorder %v1836, 2
  %v1842 = vxor.u32 %v1825, 2147483648
  %v1843 = vsel %vm1841, %v1842, %v1833
  %v1844 = vsel %vm1837, %v1840, %v1843
  %v1845 = vsel %vm1834, nan, %v1844
  %v1846 = vand.u32 2147483647, %v274
  %vm1847 = vcmp.le.f32.partialorder %v1846, 0.7853982
  %vm1848 = vcmp.lt.s32.totalorder %v274, 0
  %v1849 = vand.u32 %v274, 2139095040
  %v1850 = vshrl.u32 %v1849, 23
  %v1851 = vsub.s32 %v1850, 127
  %v1852 = vand.u32 2147483647, %v274
  %v1853 = vand.u32 %v1852, 8388607
  %v1854 = vor.u32 %v1853, 8388608
  %v1855 = vsub.s32 0, %v1854
  %v1856 = vadd.s32 %v1851, 1
  %vm1857 = vcmp.gt.s32.totalorder %v1856, 0
  %v1858 = vsel %vm1857, %v1856, 0
  %v1859 = vshrl.u32 %v1858, 5
  %v1860 = vand.u32 %v1858, 31
  %v1861 = vsub.s32 32, %v1860
  %v1862 = vshrl.u32 683565275, %v1861
  %v1863 = vshll.u32 683565275, %v1860
  %v1864 = vshrl.u32 2475754826, %v1861
  %v1865 = vor.u32 %v1863, %v1864
  %v1866 = vshll.u32 2475754826, %v1860
  %v1867 = vshrl.u32 2131351028, %v1861
  %v1868 = vor.u32 %v1866, %v1867
  %v1869 = vshll.u32 2131351028, %v1860
  %v1870 = vshrl.u32 2102212464, %v1861
  %v1871 = vor.u32 %v1869, %v1870
  %v1872 = vshll.u32 2102212464, %v1860
  %v1873 = vshrl.u32 920167782, %v1861
  %v1874 = vor.u32 %v1872, %v1873
  %v1875 = vshll.u32 920167782, %v1860
  %v1876 = vshrl.u32 1326507024, %v1861
  %v1877 = vor.u32 %v1875, %v1876
  %vm1878 = vcmp.lt.s32.totalorder %v1859, 1
  %vm1879 = vcmp.lt.s32.totalorder %v1859, 2
  %vm1880 = vcmp.lt.s32.totalorder %v1859, 3
  %vm1881 = vcmp.lt.s32.totalorder %v1859, 4
  %v1882 = vsel %vm1878, %v1862, %v1865
  %v1883 = vsel %vm1881, %v1871, 2102212464
  %v1884 = vsel %vm1880, %v1868, %v1883
  %v1885 = vsel %vm1879, %v1882, %v1884
  %v1886 = vsel %vm1878, %v1865, %v1868
  %v1887 = vsel %vm1881, %v1874, 920167782
  %v1888 = vsel %vm1880, %v1871, %v1887
  %v1889 = vsel %vm1879, %v1886, %v1888
  %v1890 = vsel %vm1878, %v1868, %v1871
  %v1891 = vsel %vm1881, %v1877, 1326507024
  %v1892 = vsel %vm1880, %v1874, %v1891
  %v1893 = vsel %vm1879, %v1890, %v1892
  %v1894 = vshll.u32 %v1854, 8
  %v1895 = vand.u32 %v1894, 65535
  %v1896 = vshrl.u32 %v1894, 16
  %v1897 = vand.u32 %v1893, 65535
  %v1898 = vshrl.u32 %v1893, 16
  %v1899 = vmul.u32 %v1895, %v1897
  %v1900 = vmul.u32 %v1895, %v1898
  %v1901 = vmul.u32 %v1896, %v1897
  %v1902 = vmul.u32 %v1896, %v1898
  %v1903 = vshll.u32 %v1900, 16
  %v1904 = vshrl.u32 %v1900, 16
  %v1905 = vshll.u32 %v1901, 16
  %v1906 = vshrl.u32 %v1901, 16
  %vm1907 = vc.u32 %v1899, %v1903
  %v1908 = vsel %vm1907, 1, 0
  %v1909 = vadd.s32 %v1899, %v1903
  %v1910 = vadd.s32 %v1902, %v1908
  %vm1911 = vc.u32 %v1909, %v1905
  %v1912 = vsel %vm1911, 1, 0
  %v1913 = vadd.s32 %v1909, %v1905
  %v1914 = vadd.s32 %v1910, %v1912
  %v1915 = vadd.s32 %v1914, %v1904
  %v1916 = vadd.s32 %v1915, %v1906
  %v1917 = vand.u32 %v1894, 65535
  %v1918 = vshrl.u32 %v1894, 16
  %v1919 = vand.u32 %v1889, 65535
  %v1920 = vshrl.u32 %v1889, 16
  %v1921 = vmul.u32 %v1917, %v1919
  %v1922 = vmul.u32 %v1917, %v1920
  %v1923 = vmul.u32 %v1918, %v1919
  %v1924 = vmul.u32 %v1918, %v1920
  %v1925 = vshll.u32 %v1922, 16
  %v1926 = vshrl.u32 %v1922, 16
  %v1927 = vshll.u32 %v1923, 16
  %v1928 = vshrl.u32 %v1923, 16
  %vm1929 = vc.u32 %v1921, %v1925
  %v1930 = vsel %vm1929, 1, 0
  %v1931 = vadd.s32 %v1921, %v1925
  %v1932 = vadd.s32 %v1924, %v1930
  %vm1933 = vc.u32 %v1931, %v1927
  %v1934 = vsel %vm1933, 1, 0
  %v1935 = vadd.s32 %v1931, %v1927
  %v1936 = vadd.s32 %v1932, %v1934
  %v1937 = vadd.s32 %v1936, %v1926
  %v1938 = vadd.s32 %v1937, %v1928
  %v1939 = vmul.u32 %v1894, %v1885
  %v1940 = vadd.s32 %v1916, %v1935
  %vm1941 = vc.u32 %v1916, %v1935
  %v1942 = vadd.s32 %v1938, 1
  %v1943 = vsel %vm1941, %v1942, %v1938
  %v1944 = vadd.s32 %v1939, %v1943
  %v1945 = vadd.s32 %v1944, 536870912
  %v1946 = vshrl.u32 %v1945, 30
  %v1947 = vshll.u32 %v1946, 30
  %v1948 = vsub.s32 %v1944, %v1947
  %vm1949 = vcmp.lt.s32.totalorder %v1948, 0
  %v1950 = vsub.s32 0, %v1948
  %v1951 = vsel %vm1949, %v1950, %v1948
  %v1952 = vclz %v1951
  %v1953 = vsub.s32 %v1952, 2
  %vm1954 = vcmp.gt.s32.totalorder 0, %v1953
  %v1955 = vsel %vm1954, 0, %v1953
  %v1956 = vsub.s32 32, %v1955
  %v1957 = vshll.u32 %v1948, %v1955
  %v1958 = vshrl.u32 %v1940, %v1956
  %v1959 = vor.u32 %v1957, %v1958
  %v1960 = vsub.s32 4294967266, %v1955
  %v1961 = vadd.s32 %v1960, 127
  %v1962 = vshll.u32 %v1961, 23
  %v1963 = vor.u32 4788187, %v1962
  %v1964 = vand.u32 2147483647, %v1963
  %v1966 = vcvt.s32.f32 %v1959
  %v1967 = vmul.f32 %v1966, %v1964
  %v1968 = vxor.u32 %v1967, 2147483648
  %v1969 = vsel %vm1848, %v1968, %v1967
  %v1970 = vsub.s32 4, %v1946
  %v1971 = vsel %vm1848, %v1970, %v1946
  %v1972 = vsel %vm1847, %v274, %v1969
  %v1973 = vsel %vm1847, 0, %v1971
  %v1974 = vmul.f32 %v1972, %v1972
  %v1975 = vmul.f32 %v1974, -0.001358992
  %v1976 = vadd.f32 %v1975, 0.041655596
  %v1977 = vmul.f32 %v1974, %v1976
  %v1978 = vadd.f32 %v1977, -0.4999988
  %v1979 = vmul.f32 %v1974, %v1978
  %v1980 = vadd.f32 1.0, %v1979
  %v1981 = vmul.f32 %v1972, %v1972
  %v1982 = vmul.f32 %v1981, -0.00019511016
  %v1983 = vadd.f32 %v1982, 0.008332121
  %v1984 = vmul.f32 %v1981, %v1983
  %v1985 = vadd.f32 %v1984, -0.16666654
  %v1986 = vmul.f32 %v1981, %v1985
  %v1987 = vadd.f32 %v1986, 1.0
  %v1988 = vmul.f32 %v1987, %v1972
  %vm1989 = vweird.f32 %v274
  %v1990 = vadd.s32 %v1973, 3
  %v1991 = vand.u32 %v1990, 3
  %vm1992 = vcmp.lt.s32.totalorder %v1991, 2
  %vm1993 = vcmp.eq.s32.totalorder %v1991, 0
  %v1994 = vxor.u32 %v1988, 2147483648
  %v1995 = vsel %vm1993, %v1980, %v1994
  %vm1996 = vcmp.eq.s32.totalorder %v1991, 2
  %v1997 = vxor.u32 %v1980, 2147483648
  %v1998 = vsel %vm1996, %v1997, %v1988
  %v1999 = vsel %vm1992, %v1995, %v1998
  %v2000 = vsel %vm1989, nan, %v1999
  %v2001 = vand.u32 2147483647, %v275
  %vm2002 = vcmp.le.f32.partialorder %v2001, 0.7853982
  %vm2003 = vcmp.lt.s32.totalorder %v275, 0
  %v2004 = vand.u32 %v275, 2139095040
  %v2005 = vshrl.u32 %v2004, 23
  %v2006 = vsub.s32 %v2005, 127
  %v2007 = vand.u32 2147483647, %v275
  %v2008 = vand.u32 %v2007, 8388607
  %v2009 = vor.u32 %v2008, 8388608
  %v2010 = vsub.s32 0, %v2009
  %v2011 = vadd.s32 %v2006, 1
  %vm2012 = vcmp.gt.s32.totalorder %v2011, 0
  %v2013 = vsel %vm2012, %v2011, 0
  %v2014 = vshrl.u32 %v2013, 5
  %v2015 = vand.u32 %v2013, 31
  %v2016 = vsub.s32 32, %v2015
  %v2017 = vshrl.u32 683565275, %v2016
  %v2018 = vshll.u32 683565275, %v2015
  %v2019 = vshrl.u32 2475754826, %v2016
  %v2020 = vor.u32 %v2018, %v2019
  %v2021 = vshll.u32 2475754826, %v2015
  %v2022 = vshrl.u32 2131351028, %v2016
  %v2023 = vor.u32 %v2021, %v2022
  %v2024 = vshll.u32 2131351028, %v2015
  %v2025 = vshrl.u32 2102212464, %v2016
  %v2026 = vor.u32 %v2024, %v2025
  %v2027 = vshll.u32 2102212464, %v2015
  %v2028 = vshrl.u32 920167782, %v2016
  %v2029 = vor.u32 %v2027, %v2028
  %v2030 = vshll.u32 920167782, %v2015
  %v2031 = vshrl.u32 1326507024, %v2016
  %v2032 = vor.u32 %v2030, %v2031
  %vm2033 = vcmp.lt.s32.totalorder %v2014, 1
  %vm2034 = vcmp.lt.s32.totalorder %v2014, 2
  %vm2035 = vcmp.lt.s32.totalorder %v2014, 3
  %vm2036 = vcmp.lt.s32.totalorder %v2014, 4
  %v2037 = vsel %vm2033, %v2017, %v2020
  %v2038 = vsel %vm2036, %v2026, 2102212464
  %v2039 = vsel %vm2035, %v2023, %v2038
  %v2040 = vsel %vm2034, %v2037, %v2039
  %v2041 = vsel %vm2033, %v2020, %v2023
  %v2042 = vsel %vm2036, %v2029, 920167782
  %v2043 = vsel %vm2035, %v2026, %v2042
  %v2044 = vsel %vm2034, %v2041, %v2043
  %v2045 = vsel %vm2033, %v2023, %v2026
  %v2046 = vsel %vm2036, %v2032, 1326507024
  %v2047 = vsel %vm2035, %v2029, %v2046
  %v2048 = vsel %vm2034, %v2045, %v2047
  %v2049 = vshll.u32 %v2009, 8
  %v2050 = vand.u32 %v2049, 65535
  %v2051 = vshrl.u32 %v2049, 16
  %v2052 = vand.u32 %v2048, 65535
  %v2053 = vshrl.u32 %v2048, 16
  %v2054 = vmul.u32 %v2050, %v2052
  %v2055 = vmul.u32 %v2050, %v2053
  %v2056 = vmul.u32 %v2051, %v2052
  %v2057 = vmul.u32 %v2051, %v2053
  %v2058 = vshll.u32 %v2055, 16
  %v2059 = vshrl.u32 %v2055, 16
  %v2060 = vshll.u32 %v2056, 16
  %v2061 = vshrl.u32 %v2056, 16
  %vm2062 = vc.u32 %v2054, %v2058
  %v2063 = vsel %vm2062, 1, 0
  %v2064 = vadd.s32 %v2054, %v2058
  %v2065 = vadd.s32 %v2057, %v2063
  %vm2066 = vc.u32 %v2064, %v2060
  %v2067 = vsel %vm2066, 1, 0
  %v2068 = vadd.s32 %v2064, %v2060
  %v2069 = vadd.s32 %v2065, %v2067
  %v2070 = vadd.s32 %v2069, %v2059
  %v2071 = vadd.s32 %v2070, %v2061
  %v2072 = vand.u32 %v2049, 65535
  %v2073 = vshrl.u32 %v2049, 16
  %v2074 = vand.u32 %v2044, 65535
  %v2075 = vshrl.u32 %v2044, 16
  %v2076 = vmul.u32 %v2072, %v2074
  %v2077 = vmul.u32 %v2072, %v2075
  %v2078 = vmul.u32 %v2073, %v2074
  %v2079 = vmul.u32 %v2073, %v2075
  %v2080 = vshll.u32 %v2077, 16
  %v2081 = vshrl.u32 %v2077, 16
  %v2082 = vshll.u32 %v2078, 16
  %v2083 = vshrl.u32 %v2078, 16
  %vm2084 = vc.u32 %v2076, %v2080
  %v2085 = vsel %vm2084, 1, 0
  %v2086 = vadd.s32 %v2076, %v2080
  %v2087 = vadd.s32 %v2079, %v2085
  %vm2088 = vc.u32 %v2086, %v2082
  %v2089 = vsel %vm2088, 1, 0
  %v2090 = vadd.s32 %v2086, %v2082
  %v2091 = vadd.s32 %v2087, %v2089
  %v2092 = vadd.s32 %v2091, %v2081
  %v2093 = vadd.s32 %v2092, %v2083
  %v2094 = vmul.u32 %v2049, %v2040
  %v2095 = vadd.s32 %v2071, %v2090
  %vm2096 = vc.u32 %v2071, %v2090
  %v2097 = vadd.s32 %v2093, 1
  %v2098 = vsel %vm2096, %v2097, %v2093
  %v2099 = vadd.s32 %v2094, %v2098
  %v2100 = vadd.s32 %v2099, 536870912
  %v2101 = vshrl.u32 %v2100, 30
  %v2102 = vshll.u32 %v2101, 30
  %v2103 = vsub.s32 %v2099, %v2102
  %vm2104 = vcmp.lt.s32.totalorder %v2103, 0
  %v2105 = vsub.s32 0, %v2103
  %v2106 = vsel %vm2104, %v2105, %v2103
  %v2107 = vclz %v2106
  %v2108 = vsub.s32 %v2107, 2
  %vm2109 = vcmp.gt.s32.totalorder 0, %v2108
  %v2110 = vsel %vm2109, 0, %v2108
  %v2111 = vsub.s32 32, %v2110
  %v2112 = vshll.u32 %v2103, %v2110
  %v2113 = vshrl.u32 %v2095, %v2111
  %v2114 = vor.u32 %v2112, %v2113
  %v2115 = vsub.s32 4294967266, %v2110
  %v2116 = vadd.s32 %v2115, 127
  %v2117 = vshll.u32 %v2116, 23
  %v2118 = vor.u32 4788187, %v2117
  %v2119 = vand.u32 2147483647, %v2118
  %v2121 = vcvt.s32.f32 %v2114
  %v2122 = vmul.f32 %v2121, %v2119
  %v2123 = vxor.u32 %v2122, 2147483648
  %v2124 = vsel %vm2003, %v2123, %v2122
  %v2125 = vsub.s32 4, %v2101
  %v2126 = vsel %vm2003, %v2125, %v2101
  %v2127 = vsel %vm2002, %v275, %v2124
  %v2128 = vsel %vm2002, 0, %v2126
  %v2129 = vmul.f32 %v2127, %v2127
  %v2130 = vmul.f32 %v2129, -0.001358992
  %v2131 = vadd.f32 %v2130, 0.041655596
  %v2132 = vmul.f32 %v2129, %v2131
  %v2133 = vadd.f32 %v2132, -0.4999988
  %v2134 = vmul.f32 %v2129, %v2133
  %v2135 = vadd.f32 1.0, %v2134
  %v2136 = vmul.f32 %v2127, %v2127
  %v2137 = vmul.f32 %v2136, -0.00019511016
  %v2138 = vadd.f32 %v2137, 0.008332121
  %v2139 = vmul.f32 %v2136, %v2138
  %v2140 = vadd.f32 %v2139, -0.16666654
  %v2141 = vmul.f32 %v2136, %v2140
  %v2142 = vadd.f32 %v2141, 1.0
  %v2143 = vmul.f32 %v2142, %v2127
  %vm2144 = vweird.f32 %v275
  %v2145 = vadd.s32 %v2128, 3
  %v2146 = vand.u32 %v2145, 3
  %vm2147 = vcmp.lt.s32.totalorder %v2146, 2
  %vm2148 = vcmp.eq.s32.totalorder %v2146, 0
  %v2149 = vxor.u32 %v2143, 2147483648
  %v2150 = vsel %vm2148, %v2135, %v2149
  %vm2151 = vcmp.eq.s32.totalorder %v2146, 2
  %v2152 = vxor.u32 %v2135, 2147483648
  %v2153 = vsel %vm2151, %v2152, %v2143
  %v2154 = vsel %vm2147, %v2150, %v2153
  %v2155 = vsel %vm2144, nan, %v2154
  %v2156 = vand.u32 2147483647, %v276
  %vm2157 = vcmp.le.f32.partialorder %v2156, 0.7853982
  %vm2158 = vcmp.lt.s32.totalorder %v276, 0
  %v2159 = vand.u32 %v276, 2139095040
  %v2160 = vshrl.u32 %v2159, 23
  %v2161 = vsub.s32 %v2160, 127
  %v2162 = vand.u32 2147483647, %v276
  %v2163 = vand.u32 %v2162, 8388607
  %v2164 = vor.u32 %v2163, 8388608
  %v2165 = vsub.s32 0, %v2164
  %v2166 = vadd.s32 %v2161, 1
  %vm2167 = vcmp.gt.s32.totalorder %v2166, 0
  %v2168 = vsel %vm2167, %v2166, 0
  %v2169 = vshrl.u32 %v2168, 5
  %v2170 = vand.u32 %v2168, 31
  %v2171 = vsub.s32 32, %v2170
  %v2172 = vshrl.u32 683565275, %v2171
  %v2173 = vshll.u32 683565275, %v2170
  %v2174 = vshrl.u32 2475754826, %v2171
  %v2175 = vor.u32 %v2173, %v2174
  %v2176 = vshll.u32 2475754826, %v2170
  %v2177 = vshrl.u32 2131351028, %v2171
  %v2178 = vor.u32 %v2176, %v2177
  %v2179 = vshll.u32 2131351028, %v2170
  %v2180 = vshrl.u32 2102212464, %v2171
  %v2181 = vor.u32 %v2179, %v2180
  %v2182 = vshll.u32 2102212464, %v2170
  %v2183 = vshrl.u32 920167782, %v2171
  %v2184 = vor.u32 %v2182, %v2183
  %v2185 = vshll.u32 920167782, %v2170
  %v2186 = vshrl.u32 1326507024, %v2171
  %v2187 = vor.u32 %v2185, %v2186
  %vm2188 = vcmp.lt.s32.totalorder %v2169, 1
  %vm2189 = vcmp.lt.s32.totalorder %v2169, 2
  %vm2190 = vcmp.lt.s32.totalorder %v2169, 3
  %vm2191 = vcmp.lt.s32.totalorder %v2169, 4
  %v2192 = vsel %vm2188, %v2172, %v2175
  %v2193 = vsel %vm2191, %v2181, 2102212464
  %v2194 = vsel %vm2190, %v2178, %v2193
  %v2195 = vsel %vm2189, %v2192, %v2194
  %v2196 = vsel %vm2188, %v2175, %v2178
  %v2197 = vsel %vm2191, %v2184, 920167782
  %v2198 = vsel %vm2190, %v2181, %v2197
  %v2199 = vsel %vm2189, %v2196, %v2198
  %v2200 = vsel %vm2188, %v2178, %v2181
  %v2201 = vsel %vm2191, %v2187, 1326507024
  %v2202 = vsel %vm2190, %v2184, %v2201
  %v2203 = vsel %vm2189, %v2200, %v2202
  %v2204 = vshll.u32 %v2164, 8
  %v2205 = vand.u32 %v2204, 65535
  %v2206 = vshrl.u32 %v2204, 16
  %v2207 = vand.u32 %v2203, 65535
  %v2208 = vshrl.u32 %v2203, 16
  %v2209 = vmul.u32 %v2205, %v2207
  %v2210 = vmul.u32 %v2205, %v2208
  %v2211 = vmul.u32 %v2206, %v2207
  %v2212 = vmul.u32 %v2206, %v2208
  %v2213 = vshll.u32 %v2210, 16
  %v2214 = vshrl.u32 %v2210, 16
  %v2215 = vshll.u32 %v2211, 16
  %v2216 = vshrl.u32 %v2211, 16
  %vm2217 = vc.u32 %v2209, %v2213
  %v2218 = vsel %vm2217, 1, 0
  %v2219 = vadd.s32 %v2209, %v2213
  %v2220 = vadd.s32 %v2212, %v2218
  %vm2221 = vc.u32 %v2219, %v2215
  %v2222 = vsel %vm2221, 1, 0
  %v2223 = vadd.s32 %v2219, %v2215
  %v2224 = vadd.s32 %v2220, %v2222
  %v2225 = vadd.s32 %v2224, %v2214
  %v2226 = vadd.s32 %v2225, %v2216
  %v2227 = vand.u32 %v2204, 65535
  %v2228 = vshrl.u32 %v2204, 16
  %v2229 = vand.u32 %v2199, 65535
  %v2230 = vshrl.u32 %v2199, 16
  %v2231 = vmul.u32 %v2227, %v2229
  %v2232 = vmul.u32 %v2227, %v2230
  %v2233 = vmul.u32 %v2228, %v2229
  %v2234 = vmul.u32 %v2228, %v2230
  %v2235 = vshll.u32 %v2232, 16
  %v2236 = vshrl.u32 %v2232, 16
  %v2237 = vshll.u32 %v2233, 16
  %v2238 = vshrl.u32 %v2233, 16
  %vm2239 = vc.u32 %v2231, %v2235
  %v2240 = vsel %vm2239, 1, 0
  %v2241 = vadd.s32 %v2231, %v2235
  %v2242 = vadd.s32 %v2234, %v2240
  %vm2243 = vc.u32 %v2241, %v2237
  %v2244 = vsel %vm2243, 1, 0
  %v2245 = vadd.s32 %v2241, %v2237
  %v2246 = vadd.s32 %v2242, %v2244
  %v2247 = vadd.s32 %v2246, %v2236
  %v2248 = vadd.s32 %v2247, %v2238
  %v2249 = vmul.u32 %v2204, %v2195
  %v2250 = vadd.s32 %v2226, %v2245
  %vm2251 = vc.u32 %v2226, %v2245
  %v2252 = vadd.s32 %v2248, 1
  %v2253 = vsel %vm2251, %v2252, %v2248
  %v2254 = vadd.s32 %v2249, %v2253
  %v2255 = vadd.s32 %v2254, 536870912
  %v2256 = vshrl.u32 %v2255, 30
  %v2257 = vshll.u32 %v2256, 30
  %v2258 = vsub.s32 %v2254, %v2257
  %vm2259 = vcmp.lt.s32.totalorder %v2258, 0
  %v2260 = vsub.s32 0, %v2258
  %v2261 = vsel %vm2259, %v2260, %v2258
  %v2262 = vclz %v2261
  %v2263 = vsub.s32 %v2262, 2
  %vm2264 = vcmp.gt.s32.totalorder 0, %v2263
  %v2265 = vsel %vm2264, 0, %v2263
  %v2266 = vsub.s32 32, %v2265
  %v2267 = vshll.u32 %v2258, %v2265
  %v2268 = vshrl.u32 %v2250, %v2266
  %v2269 = vor.u32 %v2267, %v2268
  %v2270 = vsub.s32 4294967266, %v2265
  %v2271 = vadd.s32 %v2270, 127
  %v2272 = vshll.u32 %v2271, 23
  %v2273 = vor.u32 4788187, %v2272
  %v2274 = vand.u32 2147483647, %v2273
  %v2276 = vcvt.s32.f32 %v2269
  %v2277 = vmul.f32 %v2276, %v2274
  %v2278 = vxor.u32 %v2277, 2147483648
  %v2279 = vsel %vm2158, %v2278, %v2277
  %v2280 = vsub.s32 4, %v2256
  %v2281 = vsel %vm2158, %v2280, %v2256
  %v2282 = vsel %vm2157, %v276, %v2279
  %v2283 = vsel %vm2157, 0, %v2281
  %v2284 = vmul.f32 %v2282, %v2282
  %v2285 = vmul.f32 %v2284, -0.001358992
  %v2286 = vadd.f32 %v2285, 0.041655596
  %v2287 = vmul.f32 %v2284, %v2286
  %v2288 = vadd.f32 %v2287, -0.4999988
  %v2289 = vmul.f32 %v2284, %v2288
  %v2290 = vadd.f32 1.0, %v2289
  %v2291 = vmul.f32 %v2282, %v2282
  %v2292 = vmul.f32 %v2291, -0.00019511016
  %v2293 = vadd.f32 %v2292, 0.008332121
  %v2294 = vmul.f32 %v2291, %v2293
  %v2295 = vadd.f32 %v2294, -0.16666654
  %v2296 = vmul.f32 %v2291, %v2295
  %v2297 = vadd.f32 %v2296, 1.0
  %v2298 = vmul.f32 %v2297, %v2282
  %vm2299 = vweird.f32 %v276
  %v2300 = vadd.s32 %v2283, 3
  %v2301 = vand.u32 %v2300, 3
  %vm2302 = vcmp.lt.s32.totalorder %v2301, 2
  %vm2303 = vcmp.eq.s32.totalorder %v2301, 0
  %v2304 = vxor.u32 %v2298, 2147483648
  %v2305 = vsel %vm2303, %v2290, %v2304
  %vm2306 = vcmp.eq.s32.totalorder %v2301, 2
  %v2307 = vxor.u32 %v2290, 2147483648
  %v2308 = vsel %vm2306, %v2307, %v2298
  %v2309 = vsel %vm2302, %v2305, %v2308
  %v2310 = vsel %vm2299, nan, %v2309
  %v2311 = vand.u32 2147483647, %v277
  %vm2312 = vcmp.le.f32.partialorder %v2311, 0.7853982
  %vm2313 = vcmp.lt.s32.totalorder %v277, 0
  %v2314 = vand.u32 %v277, 2139095040
  %v2315 = vshrl.u32 %v2314, 23
  %v2316 = vsub.s32 %v2315, 127
  %v2317 = vand.u32 2147483647, %v277
  %v2318 = vand.u32 %v2317, 8388607
  %v2319 = vor.u32 %v2318, 8388608
  %v2320 = vsub.s32 0, %v2319
  %v2321 = vadd.s32 %v2316, 1
  %vm2322 = vcmp.gt.s32.totalorder %v2321, 0
  %v2323 = vsel %vm2322, %v2321, 0
  %v2324 = vshrl.u32 %v2323, 5
  %v2325 = vand.u32 %v2323, 31
  %v2326 = vsub.s32 32, %v2325
  %v2327 = vshrl.u32 683565275, %v2326
  %v2328 = vshll.u32 683565275, %v2325
  %v2329 = vshrl.u32 2475754826, %v2326
  %v2330 = vor.u32 %v2328, %v2329
  %v2331 = vshll.u32 2475754826, %v2325
  %v2332 = vshrl.u32 2131351028, %v2326
  %v2333 = vor.u32 %v2331, %v2332
  %v2334 = vshll.u32 2131351028, %v2325
  %v2335 = vshrl.u32 2102212464, %v2326
  %v2336 = vor.u32 %v2334, %v2335
  %v2337 = vshll.u32 2102212464, %v2325
  %v2338 = vshrl.u32 920167782, %v2326
  %v2339 = vor.u32 %v2337, %v2338
  %v2340 = vshll.u32 920167782, %v2325
  %v2341 = vshrl.u32 1326507024, %v2326
  %v2342 = vor.u32 %v2340, %v2341
  %vm2343 = vcmp.lt.s32.totalorder %v2324, 1
  %vm2344 = vcmp.lt.s32.totalorder %v2324, 2
  %vm2345 = vcmp.lt.s32.totalorder %v2324, 3
  %vm2346 = vcmp.lt.s32.totalorder %v2324, 4
  %v2347 = vsel %vm2343, %v2327, %v2330
  %v2348 = vsel %vm2346, %v2336, 2102212464
  %v2349 = vsel %vm2345, %v2333, %v2348
  %v2350 = vsel %vm2344, %v2347, %v2349
  %v2351 = vsel %vm2343, %v2330, %v2333
  %v2352 = vsel %vm2346, %v2339, 920167782
  %v2353 = vsel %vm2345, %v2336, %v2352
  %v2354 = vsel %vm2344, %v2351, %v2353
  %v2355 = vsel %vm2343, %v2333, %v2336
  %v2356 = vsel %vm2346, %v2342, 1326507024
  %v2357 = vsel %vm2345, %v2339, %v2356
  %v2358 = vsel %vm2344, %v2355, %v2357
  %v2359 = vshll.u32 %v2319, 8
  %v2360 = vand.u32 %v2359, 65535
  %v2361 = vshrl.u32 %v2359, 16
  %v2362 = vand.u32 %v2358, 65535
  %v2363 = vshrl.u32 %v2358, 16
  %v2364 = vmul.u32 %v2360, %v2362
  %v2365 = vmul.u32 %v2360, %v2363
  %v2366 = vmul.u32 %v2361, %v2362
  %v2367 = vmul.u32 %v2361, %v2363
  %v2368 = vshll.u32 %v2365, 16
  %v2369 = vshrl.u32 %v2365, 16
  %v2370 = vshll.u32 %v2366, 16
  %v2371 = vshrl.u32 %v2366, 16
  %vm2372 = vc.u32 %v2364, %v2368
  %v2373 = vsel %vm2372, 1, 0
  %v2374 = vadd.s32 %v2364, %v2368
  %v2375 = vadd.s32 %v2367, %v2373
  %vm2376 = vc.u32 %v2374, %v2370
  %v2377 = vsel %vm2376, 1, 0
  %v2378 = vadd.s32 %v2374, %v2370
  %v2379 = vadd.s32 %v2375, %v2377
  %v2380 = vadd.s32 %v2379, %v2369
  %v2381 = vadd.s32 %v2380, %v2371
  %v2382 = vand.u32 %v2359, 65535
  %v2383 = vshrl.u32 %v2359, 16
  %v2384 = vand.u32 %v2354, 65535
  %v2385 = vshrl.u32 %v2354, 16
  %v2386 = vmul.u32 %v2382, %v2384
  %v2387 = vmul.u32 %v2382, %v2385
  %v2388 = vmul.u32 %v2383, %v2384
  %v2389 = vmul.u32 %v2383, %v2385
  %v2390 = vshll.u32 %v2387, 16
  %v2391 = vshrl.u32 %v2387, 16
  %v2392 = vshll.u32 %v2388, 16
  %v2393 = vshrl.u32 %v2388, 16
  %vm2394 = vc.u32 %v2386, %v2390
  %v2395 = vsel %vm2394, 1, 0
  %v2396 = vadd.s32 %v2386, %v2390
  %v2397 = vadd.s32 %v2389, %v2395
  %vm2398 = vc.u32 %v2396, %v2392
  %v2399 = vsel %vm2398, 1, 0
  %v2400 = vadd.s32 %v2396, %v2392
  %v2401 = vadd.s32 %v2397, %v2399
  %v2402 = vadd.s32 %v2401, %v2391
  %v2403 = vadd.s32 %v2402, %v2393
  %v2404 = vmul.u32 %v2359, %v2350
  %v2405 = vadd.s32 %v2381, %v2400
  %vm2406 = vc.u32 %v2381, %v2400
  %v2407 = vadd.s32 %v2403, 1
  %v2408 = vsel %vm2406, %v2407, %v2403
  %v2409 = vadd.s32 %v2404, %v2408
  %v2410 = vadd.s32 %v2409, 536870912
  %v2411 = vshrl.u32 %v2410, 30
  %v2412 = vshll.u32 %v2411, 30
  %v2413 = vsub.s32 %v2409, %v2412
  %vm2414 = vcmp.lt.s32.totalorder %v2413, 0
  %v2415 = vsub.s32 0, %v2413
  %v2416 = vsel %vm2414, %v2415, %v2413
  %v2417 = vclz %v2416
  %v2418 = vsub.s32 %v2417, 2
  %vm2419 = vcmp.gt.s32.totalorder 0, %v2418
  %v2420 = vsel %vm2419, 0, %v2418
  %v2421 = vsub.s32 32, %v2420
  %v2422 = vshll.u32 %v2413, %v2420
  %v2423 = vshrl.u32 %v2405, %v2421
  %v2424 = vor.u32 %v2422, %v2423
  %v2425 = vsub.s32 4294967266, %v2420
  %v2426 = vadd.s32 %v2425, 127
  %v2427 = vshll.u32 %v2426, 23
  %v2428 = vor.u32 4788187, %v2427
  %v2429 = vand.u32 2147483647, %v2428
  %v2431 = vcvt.s32.f32 %v2424
  %v2432 = vmul.f32 %v2431, %v2429
  %v2433 = vxor.u32 %v2432, 2147483648
  %v2434 = vsel %vm2313, %v2433, %v2432
  %v2435 = vsub.s32 4, %v2411
  %v2436 = vsel %vm2313, %v2435, %v2411
  %v2437 = vsel %vm2312, %v277, %v2434
  %v2438 = vsel %vm2312, 0, %v2436
  %v2439 = vmul.f32 %v2437, %v2437
  %v2440 = vmul.f32 %v2439, -0.001358992
  %v2441 = vadd.f32 %v2440, 0.041655596
  %v2442 = vmul.f32 %v2439, %v2441
  %v2443 = vadd.f32 %v2442, -0.4999988
  %v2444 = vmul.f32 %v2439, %v2443
  %v2445 = vadd.f32 1.0, %v2444
  %v2446 = vmul.f32 %v2437, %v2437
  %v2447 = vmul.f32 %v2446, -0.00019511016
  %v2448 = vadd.f32 %v2447, 0.008332121
  %v2449 = vmul.f32 %v2446, %v2448
  %v2450 = vadd.f32 %v2449, -0.16666654
  %v2451 = vmul.f32 %v2446, %v2450
  %v2452 = vadd.f32 %v2451, 1.0
  %v2453 = vmul.f32 %v2452, %v2437
  %vm2454 = vweird.f32 %v277
  %v2455 = vadd.s32 %v2438, 3
  %v2456 = vand.u32 %v2455, 3
  %vm2457 = vcmp.lt.s32.totalorder %v2456, 2
  %vm2458 = vcmp.eq.s32.totalorder %v2456, 0
  %v2459 = vxor.u32 %v2453, 2147483648
  %v2460 = vsel %vm2458, %v2445, %v2459
  %vm2461 = vcmp.eq.s32.totalorder %v2456, 2
  %v2462 = vxor.u32 %v2445, 2147483648
  %v2463 = vsel %vm2461, %v2462, %v2453
  %v2464 = vsel %vm2457, %v2460, %v2463
  %v2465 = vsel %vm2454, nan, %v2464
  %v2466 = vand.u32 2147483647, %v278
  %vm2467 = vcmp.le.f32.partialorder %v2466, 0.7853982
  %vm2468 = vcmp.lt.s32.totalorder %v278, 0
  %v2469 = vand.u32 %v278, 2139095040
  %v2470 = vshrl.u32 %v2469, 23
  %v2471 = vsub.s32 %v2470, 127
  %v2472 = vand.u32 2147483647, %v278
  %v2473 = vand.u32 %v2472, 8388607
  %v2474 = vor.u32 %v2473, 8388608
  %v2475 = vsub.s32 0, %v2474
  %v2476 = vadd.s32 %v2471, 1
  %vm2477 = vcmp.gt.s32.totalorder %v2476, 0
  %v2478 = vsel %vm2477, %v2476, 0
  %v2479 = vshrl.u32 %v2478, 5
  %v2480 = vand.u32 %v2478, 31
  %v2481 = vsub.s32 32, %v2480
  %v2482 = vshrl.u32 683565275, %v2481
  %v2483 = vshll.u32 683565275, %v2480
  %v2484 = vshrl.u32 2475754826, %v2481
  %v2485 = vor.u32 %v2483, %v2484
  %v2486 = vshll.u32 2475754826, %v2480
  %v2487 = vshrl.u32 2131351028, %v2481
  %v2488 = vor.u32 %v2486, %v2487
  %v2489 = vshll.u32 2131351028, %v2480
  %v2490 = vshrl.u32 2102212464, %v2481
  %v2491 = vor.u32 %v2489, %v2490
  %v2492 = vshll.u32 2102212464, %v2480
  %v2493 = vshrl.u32 920167782, %v2481
  %v2494 = vor.u32 %v2492, %v2493
  %v2495 = vshll.u32 920167782, %v2480
  %v2496 = vshrl.u32 1326507024, %v2481
  %v2497 = vor.u32 %v2495, %v2496
  %vm2498 = vcmp.lt.s32.totalorder %v2479, 1
  %vm2499 = vcmp.lt.s32.totalorder %v2479, 2
  %vm2500 = vcmp.lt.s32.totalorder %v2479, 3
  %vm2501 = vcmp.lt.s32.totalorder %v2479, 4
  %v2502 = vsel %vm2498, %v2482, %v2485
  %v2503 = vsel %vm2501, %v2491, 2102212464
  %v2504 = vsel %vm2500, %v2488, %v2503
  %v2505 = vsel %vm2499, %v2502, %v2504
  %v2506 = vsel %vm2498, %v2485, %v2488
  %v2507 = vsel %vm2501, %v2494, 920167782
  %v2508 = vsel %vm2500, %v2491, %v2507
  %v2509 = vsel %vm2499, %v2506, %v2508
  %v2510 = vsel %vm2498, %v2488, %v2491
  %v2511 = vsel %vm2501, %v2497, 1326507024
  %v2512 = vsel %vm2500, %v2494, %v2511
  %v2513 = vsel %vm2499, %v2510, %v2512
  %v2514 = vshll.u32 %v2474, 8
  %v2515 = vand.u32 %v2514, 65535
  %v2516 = vshrl.u32 %v2514, 16
  %v2517 = vand.u32 %v2513, 65535
  %v2518 = vshrl.u32 %v2513, 16
  %v2519 = vmul.u32 %v2515, %v2517
  %v2520 = vmul.u32 %v2515, %v2518
  %v2521 = vmul.u32 %v2516, %v2517
  %v2522 = vmul.u32 %v2516, %v2518
  %v2523 = vshll.u32 %v2520, 16
  %v2524 = vshrl.u32 %v2520, 16
  %v2525 = vshll.u32 %v2521, 16
  %v2526 = vshrl.u32 %v2521, 16
  %vm2527 = vc.u32 %v2519, %v2523
  %v2528 = vsel %vm2527, 1, 0
  %v2529 = vadd.s32 %v2519, %v2523
  %v2530 = vadd.s32 %v2522, %v2528
  %vm2531 = vc.u32 %v2529, %v2525
  %v2532 = vsel %vm2531, 1, 0
  %v2533 = vadd.s32 %v2529, %v2525
  %v2534 = vadd.s32 %v2530, %v2532
  %v2535 = vadd.s32 %v2534, %v2524
  %v2536 = vadd.s32 %v2535, %v2526
  %v2537 = vand.u32 %v2514, 65535
  %v2538 = vshrl.u32 %v2514, 16
  %v2539 = vand.u32 %v2509, 65535
  %v2540 = vshrl.u32 %v2509, 16
  %v2541 = vmul.u32 %v2537, %v2539
  %v2542 = vmul.u32 %v2537, %v2540
  %v2543 = vmul.u32 %v2538, %v2539
  %v2544 = vmul.u32 %v2538, %v2540
  %v2545 = vshll.u32 %v2542, 16
  %v2546 = vshrl.u32 %v2542, 16
  %v2547 = vshll.u32 %v2543, 16
  %v2548 = vshrl.u32 %v2543, 16
  %vm2549 = vc.u32 %v2541, %v2545
  %v2550 = vsel %vm2549, 1, 0
  %v2551 = vadd.s32 %v2541, %v2545
  %v2552 = vadd.s32 %v2544, %v2550
  %vm2553 = vc.u32 %v2551, %v2547
  %v2554 = vsel %vm2553, 1, 0
  %v2555 = vadd.s32 %v2551, %v2547
  %v2556 = vadd.s32 %v2552, %v2554
  %v2557 = vadd.s32 %v2556, %v2546
  %v2558 = vadd.s32 %v2557, %v2548
  %v2559 = vmul.u32 %v2514, %v2505
  %v2560 = vadd.s32 %v2536, %v2555
  %vm2561 = vc.u32 %v2536, %v2555
  %v2562 = vadd.s32 %v2558, 1
  %v2563 = vsel %vm2561, %v2562, %v2558
  %v2564 = vadd.s32 %v2559, %v2563
  %v2565 = vadd.s32 %v2564, 536870912
  %v2566 = vshrl.u32 %v2565, 30
  %v2567 = vshll.u32 %v2566, 30
  %v2568 = vsub.s32 %v2564, %v2567
  %vm2569 = vcmp.lt.s32.totalorder %v2568, 0
  %v2570 = vsub.s32 0, %v2568
  %v2571 = vsel %vm2569, %v2570, %v2568
  %v2572 = vclz %v2571
  %v2573 = vsub.s32 %v2572, 2
  %vm2574 = vcmp.gt.s32.totalorder 0, %v2573
  %v2575 = vsel %vm2574, 0, %v2573
  %v2576 = vsub.s32 32, %v2575
  %v2577 = vshll.u32 %v2568, %v2575
  %v2578 = vshrl.u32 %v2560, %v2576
  %v2579 = vor.u32 %v2577, %v2578
  %v2580 = vsub.s32 4294967266, %v2575
  %v2581 = vadd.s32 %v2580, 127
  %v2582 = vshll.u32 %v2581, 23
  %v2583 = vor.u32 4788187, %v2582
  %v2584 = vand.u32 2147483647, %v2583
  %v2586 = vcvt.s32.f32 %v2579
  %v2587 = vmul.f32 %v2586, %v2584
  %v2588 = vxor.u32 %v2587, 2147483648
  %v2589 = vsel %vm2468, %v2588, %v2587
  %v2590 = vsub.s32 4, %v2566
  %v2591 = vsel %vm2468, %v2590, %v2566
  %v2592 = vsel %vm2467, %v278, %v2589
  %v2593 = vsel %vm2467, 0, %v2591
  %v2594 = vmul.f32 %v2592, %v2592
  %v2595 = vmul.f32 %v2594, -0.001358992
  %v2596 = vadd.f32 %v2595, 0.041655596
  %v2597 = vmul.f32 %v2594, %v2596
  %v2598 = vadd.f32 %v2597, -0.4999988
  %v2599 = vmul.f32 %v2594, %v2598
  %v2600 = vadd.f32 1.0, %v2599
  %v2601 = vmul.f32 %v2592, %v2592
  %v2602 = vmul.f32 %v2601, -0.00019511016
  %v2603 = vadd.f32 %v2602, 0.008332121
  %v2604 = vmul.f32 %v2601, %v2603
  %v2605 = vadd.f32 %v2604, -0.16666654
  %v2606 = vmul.f32 %v2601, %v2605
  %v2607 = vadd.f32 %v2606, 1.0
  %v2608 = vmul.f32 %v2607, %v2592
  %vm2609 = vweird.f32 %v278
  %v2610 = vadd.s32 %v2593, 3
  %v2611 = vand.u32 %v2610, 3
  %vm2612 = vcmp.lt.s32.totalorder %v2611, 2
  %vm2613 = vcmp.eq.s32.totalorder %v2611, 0
  %v2614 = vxor.u32 %v2608, 2147483648
  %v2615 = vsel %vm2613, %v2600, %v2614
  %vm2616 = vcmp.eq.s32.totalorder %v2611, 2
  %v2617 = vxor.u32 %v2600, 2147483648
  %v2618 = vsel %vm2616, %v2617, %v2608
  %v2619 = vsel %vm2612, %v2615, %v2618
  %v2620 = vsel %vm2609, nan, %v2619
  %v2621 = vand.u32 2147483647, %v279
  %vm2622 = vcmp.le.f32.partialorder %v2621, 0.7853982
  %vm2623 = vcmp.lt.s32.totalorder %v279, 0
  %v2624 = vand.u32 %v279, 2139095040
  %v2625 = vshrl.u32 %v2624, 23
  %v2626 = vsub.s32 %v2625, 127
  %v2627 = vand.u32 2147483647, %v279
  %v2628 = vand.u32 %v2627, 8388607
  %v2629 = vor.u32 %v2628, 8388608
  %v2630 = vsub.s32 0, %v2629
  %v2631 = vadd.s32 %v2626, 1
  %vm2632 = vcmp.gt.s32.totalorder %v2631, 0
  %v2633 = vsel %vm2632, %v2631, 0
  %v2634 = vshrl.u32 %v2633, 5
  %v2635 = vand.u32 %v2633, 31
  %v2636 = vsub.s32 32, %v2635
  %v2637 = vshrl.u32 683565275, %v2636
  %v2638 = vshll.u32 683565275, %v2635
  %v2639 = vshrl.u32 2475754826, %v2636
  %v2640 = vor.u32 %v2638, %v2639
  %v2641 = vshll.u32 2475754826, %v2635
  %v2642 = vshrl.u32 2131351028, %v2636
  %v2643 = vor.u32 %v2641, %v2642
  %v2644 = vshll.u32 2131351028, %v2635
  %v2645 = vshrl.u32 2102212464, %v2636
  %v2646 = vor.u32 %v2644, %v2645
  %v2647 = vshll.u32 2102212464, %v2635
  %v2648 = vshrl.u32 920167782, %v2636
  %v2649 = vor.u32 %v2647, %v2648
  %v2650 = vshll.u32 920167782, %v2635
  %v2651 = vshrl.u32 1326507024, %v2636
  %v2652 = vor.u32 %v2650, %v2651
  %vm2653 = vcmp.lt.s32.totalorder %v2634, 1
  %vm2654 = vcmp.lt.s32.totalorder %v2634, 2
  %vm2655 = vcmp.lt.s32.totalorder %v2634, 3
  %vm2656 = vcmp.lt.s32.totalorder %v2634, 4
  %v2657 = vsel %vm2653, %v2637, %v2640
  %v2658 = vsel %vm2656, %v2646, 2102212464
  %v2659 = vsel %vm2655, %v2643, %v2658
  %v2660 = vsel %vm2654, %v2657, %v2659
  %v2661 = vsel %vm2653, %v2640, %v2643
  %v2662 = vsel %vm2656, %v2649, 920167782
  %v2663 = vsel %vm2655, %v2646, %v2662
  %v2664 = vsel %vm2654, %v2661, %v2663
  %v2665 = vsel %vm2653, %v2643, %v2646
  %v2666 = vsel %vm2656, %v2652, 1326507024
  %v2667 = vsel %vm2655, %v2649, %v2666
  %v2668 = vsel %vm2654, %v2665, %v2667
  %v2669 = vshll.u32 %v2629, 8
  %v2670 = vand.u32 %v2669, 65535
  %v2671 = vshrl.u32 %v2669, 16
  %v2672 = vand.u32 %v2668, 65535
  %v2673 = vshrl.u32 %v2668, 16
  %v2674 = vmul.u32 %v2670, %v2672
  %v2675 = vmul.u32 %v2670, %v2673
  %v2676 = vmul.u32 %v2671, %v2672
  %v2677 = vmul.u32 %v2671, %v2673
  %v2678 = vshll.u32 %v2675, 16
  %v2679 = vshrl.u32 %v2675, 16
  %v2680 = vshll.u32 %v2676, 16
  %v2681 = vshrl.u32 %v2676, 16
  %vm2682 = vc.u32 %v2674, %v2678
  %v2683 = vsel %vm2682, 1, 0
  %v2684 = vadd.s32 %v2674, %v2678
  %v2685 = vadd.s32 %v2677, %v2683
  %vm2686 = vc.u32 %v2684, %v2680
  %v2687 = vsel %vm2686, 1, 0
  %v2688 = vadd.s32 %v2684, %v2680
  %v2689 = vadd.s32 %v2685, %v2687
  %v2690 = vadd.s32 %v2689, %v2679
  %v2691 = vadd.s32 %v2690, %v2681
  %v2692 = vand.u32 %v2669, 65535
  %v2693 = vshrl.u32 %v2669, 16
  %v2694 = vand.u32 %v2664, 65535
  %v2695 = vshrl.u32 %v2664, 16
  %v2696 = vmul.u32 %v2692, %v2694
  %v2697 = vmul.u32 %v2692, %v2695
  %v2698 = vmul.u32 %v2693, %v2694
  %v2699 = vmul.u32 %v2693, %v2695
  %v2700 = vshll.u32 %v2697, 16
  %v2701 = vshrl.u32 %v2697, 16
  %v2702 = vshll.u32 %v2698, 16
  %v2703 = vshrl.u32 %v2698, 16
  %vm2704 = vc.u32 %v2696, %v2700
  %v2705 = vsel %vm2704, 1, 0
  %v2706 = vadd.s32 %v2696, %v2700
  %v2707 = vadd.s32 %v2699, %v2705
  %vm2708 = vc.u32 %v2706, %v2702
  %v2709 = vsel %vm2708, 1, 0
  %v2710 = vadd.s32 %v2706, %v2702
  %v2711 = vadd.s32 %v2707, %v2709
  %v2712 = vadd.s32 %v2711, %v2701
  %v2713 = vadd.s32 %v2712, %v2703
  %v2714 = vmul.u32 %v2669, %v2660
  %v2715 = vadd.s32 %v2691, %v2710
  %vm2716 = vc.u32 %v2691, %v2710
  %v2717 = vadd.s32 %v2713, 1
  %v2718 = vsel %vm2716, %v2717, %v2713
  %v2719 = vadd.s32 %v2714, %v2718
  %v2720 = vadd.s32 %v2719, 536870912
  %v2721 = vshrl.u32 %v2720, 30
  %v2722 = vshll.u32 %v2721, 30
  %v2723 = vsub.s32 %v2719, %v2722
  %vm2724 = vcmp.lt.s32.totalorder %v2723, 0
  %v2725 = vsub.s32 0, %v2723
  %v2726 = vsel %vm2724, %v2725, %v2723
  %v2727 = vclz %v2726
  %v2728 = vsub.s32 %v2727, 2
  %vm2729 = vcmp.gt.s32.totalorder 0, %v2728
  %v2730 = vsel %vm2729, 0, %v2728
  %v2731 = vsub.s32 32, %v2730
  %v2732 = vshll.u32 %v2723, %v2730
  %v2733 = vshrl.u32 %v2715, %v2731
  %v2734 = vor.u32 %v2732, %v2733
  %v2735 = vsub.s32 4294967266, %v2730
  %v2736 = vadd.s32 %v2735, 127
  %v2737 = vshll.u32 %v2736, 23
  %v2738 = vor.u32 4788187, %v2737
  %v2739 = vand.u32 2147483647, %v2738
  %v2741 = vcvt.s32.f32 %v2734
  %v2742 = vmul.f32 %v2741, %v2739
  %v2743 = vxor.u32 %v2742, 2147483648
  %v2744 = vsel %vm2623, %v2743, %v2742
  %v2745 = vsub.s32 4, %v2721
  %v2746 = vsel %vm2623, %v2745, %v2721
  %v2747 = vsel %vm2622, %v279, %v2744
  %v2748 = vsel %vm2622, 0, %v2746
  %v2749 = vmul.f32 %v2747, %v2747
  %v2750 = vmul.f32 %v2749, -0.001358992
  %v2751 = vadd.f32 %v2750, 0.041655596
  %v2752 = vmul.f32 %v2749, %v2751
  %v2753 = vadd.f32 %v2752, -0.4999988
  %v2754 = vmul.f32 %v2749, %v2753
  %v2755 = vadd.f32 1.0, %v2754
  %v2756 = vmul.f32 %v2747, %v2747
  %v2757 = vmul.f32 %v2756, -0.00019511016
  %v2758 = vadd.f32 %v2757, 0.008332121
  %v2759 = vmul.f32 %v2756, %v2758
  %v2760 = vadd.f32 %v2759, -0.16666654
  %v2761 = vmul.f32 %v2756, %v2760
  %v2762 = vadd.f32 %v2761, 1.0
  %v2763 = vmul.f32 %v2762, %v2747
  %vm2764 = vweird.f32 %v279
  %v2765 = vadd.s32 %v2748, 3
  %v2766 = vand.u32 %v2765, 3
  %vm2767 = vcmp.lt.s32.totalorder %v2766, 2
  %vm2768 = vcmp.eq.s32.totalorder %v2766, 0
  %v2769 = vxor.u32 %v2763, 2147483648
  %v2770 = vsel %vm2768, %v2755, %v2769
  %vm2771 = vcmp.eq.s32.totalorder %v2766, 2
  %v2772 = vxor.u32 %v2755, 2147483648
  %v2773 = vsel %vm2771, %v2772, %v2763
  %v2774 = vsel %vm2767, %v2770, %v2773
  %v2775 = vsel %vm2764, nan, %v2774
  %v2776 = vand.u32 2147483647, %v280
  %vm2777 = vcmp.le.f32.partialorder %v2776, 0.7853982
  %vm2778 = vcmp.lt.s32.totalorder %v280, 0
  %v2779 = vand.u32 %v280, 2139095040
  %v2780 = vshrl.u32 %v2779, 23
  %v2781 = vsub.s32 %v2780, 127
  %v2782 = vand.u32 2147483647, %v280
  %v2783 = vand.u32 %v2782, 8388607
  %v2784 = vor.u32 %v2783, 8388608
  %v2785 = vsub.s32 0, %v2784
  %v2786 = vadd.s32 %v2781, 1
  %vm2787 = vcmp.gt.s32.totalorder %v2786, 0
  %v2788 = vsel %vm2787, %v2786, 0
  %v2789 = vshrl.u32 %v2788, 5
  %v2790 = vand.u32 %v2788, 31
  %v2791 = vsub.s32 32, %v2790
  %v2792 = vshrl.u32 683565275, %v2791
  %v2793 = vshll.u32 683565275, %v2790
  %v2794 = vshrl.u32 2475754826, %v2791
  %v2795 = vor.u32 %v2793, %v2794
  %v2796 = vshll.u32 2475754826, %v2790
  %v2797 = vshrl.u32 2131351028, %v2791
  %v2798 = vor.u32 %v2796, %v2797
  %v2799 = vshll.u32 2131351028, %v2790
  %v2800 = vshrl.u32 2102212464, %v2791
  %v2801 = vor.u32 %v2799, %v2800
  %v2802 = vshll.u32 2102212464, %v2790
  %v2803 = vshrl.u32 920167782, %v2791
  %v2804 = vor.u32 %v2802, %v2803
  %v2805 = vshll.u32 920167782, %v2790
  %v2806 = vshrl.u32 1326507024, %v2791
  %v2807 = vor.u32 %v2805, %v2806
  %vm2808 = vcmp.lt.s32.totalorder %v2789, 1
  %vm2809 = vcmp.lt.s32.totalorder %v2789, 2
  %vm2810 = vcmp.lt.s32.totalorder %v2789, 3
  %vm2811 = vcmp.lt.s32.totalorder %v2789, 4
  %v2812 = vsel %vm2808, %v2792, %v2795
  %v2813 = vsel %vm2811, %v2801, 2102212464
  %v2814 = vsel %vm2810, %v2798, %v2813
  %v2815 = vsel %vm2809, %v2812, %v2814
  %v2816 = vsel %vm2808, %v2795, %v2798
  %v2817 = vsel %vm2811, %v2804, 920167782
  %v2818 = vsel %vm2810, %v2801, %v2817
  %v2819 = vsel %vm2809, %v2816, %v2818
  %v2820 = vsel %vm2808, %v2798, %v2801
  %v2821 = vsel %vm2811, %v2807, 1326507024
  %v2822 = vsel %vm2810, %v2804, %v2821
  %v2823 = vsel %vm2809, %v2820, %v2822
  %v2824 = vshll.u32 %v2784, 8
  %v2825 = vand.u32 %v2824, 65535
  %v2826 = vshrl.u32 %v2824, 16
  %v2827 = vand.u32 %v2823, 65535
  %v2828 = vshrl.u32 %v2823, 16
  %v2829 = vmul.u32 %v2825, %v2827
  %v2830 = vmul.u32 %v2825, %v2828
  %v2831 = vmul.u32 %v2826, %v2827
  %v2832 = vmul.u32 %v2826, %v2828
  %v2833 = vshll.u32 %v2830, 16
  %v2834 = vshrl.u32 %v2830, 16
  %v2835 = vshll.u32 %v2831, 16
  %v2836 = vshrl.u32 %v2831, 16
  %vm2837 = vc.u32 %v2829, %v2833
  %v2838 = vsel %vm2837, 1, 0
  %v2839 = vadd.s32 %v2829, %v2833
  %v2840 = vadd.s32 %v2832, %v2838
  %vm2841 = vc.u32 %v2839, %v2835
  %v2842 = vsel %vm2841, 1, 0
  %v2843 = vadd.s32 %v2839, %v2835
  %v2844 = vadd.s32 %v2840, %v2842
  %v2845 = vadd.s32 %v2844, %v2834
  %v2846 = vadd.s32 %v2845, %v2836
  %v2847 = vand.u32 %v2824, 65535
  %v2848 = vshrl.u32 %v2824, 16
  %v2849 = vand.u32 %v2819, 65535
  %v2850 = vshrl.u32 %v2819, 16
  %v2851 = vmul.u32 %v2847, %v2849
  %v2852 = vmul.u32 %v2847, %v2850
  %v2853 = vmul.u32 %v2848, %v2849
  %v2854 = vmul.u32 %v2848, %v2850
  %v2855 = vshll.u32 %v2852, 16
  %v2856 = vshrl.u32 %v2852, 16
  %v2857 = vshll.u32 %v2853, 16
  %v2858 = vshrl.u32 %v2853, 16
  %vm2859 = vc.u32 %v2851, %v2855
  %v2860 = vsel %vm2859, 1, 0
  %v2861 = vadd.s32 %v2851, %v2855
  %v2862 = vadd.s32 %v2854, %v2860
  %vm2863 = vc.u32 %v2861, %v2857
  %v2864 = vsel %vm2863, 1, 0
  %v2865 = vadd.s32 %v2861, %v2857
  %v2866 = vadd.s32 %v2862, %v2864
  %v2867 = vadd.s32 %v2866, %v2856
  %v2868 = vadd.s32 %v2867, %v2858
  %v2869 = vmul.u32 %v2824, %v2815
  %v2870 = vadd.s32 %v2846, %v2865
  %vm2871 = vc.u32 %v2846, %v2865
  %v2872 = vadd.s32 %v2868, 1
  %v2873 = vsel %vm2871, %v2872, %v2868
  %v2874 = vadd.s32 %v2869, %v2873
  %v2875 = vadd.s32 %v2874, 536870912
  %v2876 = vshrl.u32 %v2875, 30
  %v2877 = vshll.u32 %v2876, 30
  %v2878 = vsub.s32 %v2874, %v2877
  %vm2879 = vcmp.lt.s32.totalorder %v2878, 0
  %v2880 = vsub.s32 0, %v2878
  %v2881 = vsel %vm2879, %v2880, %v2878
  %v2882 = vclz %v2881
  %v2883 = vsub.s32 %v2882, 2
  %vm2884 = vcmp.gt.s32.totalorder 0, %v2883
  %v2885 = vsel %vm2884, 0, %v2883
  %v2886 = vsub.s32 32, %v2885
  %v2887 = vshll.u32 %v2878, %v2885
  %v2888 = vshrl.u32 %v2870, %v2886
  %v2889 = vor.u32 %v2887, %v2888
  %v2890 = vsub.s32 4294967266, %v2885
  %v2891 = vadd.s32 %v2890, 127
  %v2892 = vshll.u32 %v2891, 23
  %v2893 = vor.u32 4788187, %v2892
  %v2894 = vand.u32 2147483647, %v2893
  %v2896 = vcvt.s32.f32 %v2889
  %v2897 = vmul.f32 %v2896, %v2894
  %v2898 = vxor.u32 %v2897, 2147483648
  %v2899 = vsel %vm2778, %v2898, %v2897
  %v2900 = vsub.s32 4, %v2876
  %v2901 = vsel %vm2778, %v2900, %v2876
  %v2902 = vsel %vm2777, %v280, %v2899
  %v2903 = vsel %vm2777, 0, %v2901
  %v2904 = vmul.f32 %v2902, %v2902
  %v2905 = vmul.f32 %v2904, -0.001358992
  %v2906 = vadd.f32 %v2905, 0.041655596
  %v2907 = vmul.f32 %v2904, %v2906
  %v2908 = vadd.f32 %v2907, -0.4999988
  %v2909 = vmul.f32 %v2904, %v2908
  %v2910 = vadd.f32 1.0, %v2909
  %v2911 = vmul.f32 %v2902, %v2902
  %v2912 = vmul.f32 %v2911, -0.00019511016
  %v2913 = vadd.f32 %v2912, 0.008332121
  %v2914 = vmul.f32 %v2911, %v2913
  %v2915 = vadd.f32 %v2914, -0.16666654
  %v2916 = vmul.f32 %v2911, %v2915
  %v2917 = vadd.f32 %v2916, 1.0
  %v2918 = vmul.f32 %v2917, %v2902
  %vm2919 = vweird.f32 %v280
  %v2920 = vadd.s32 %v2903, 3
  %v2921 = vand.u32 %v2920, 3
  %vm2922 = vcmp.lt.s32.totalorder %v2921, 2
  %vm2923 = vcmp.eq.s32.totalorder %v2921, 0
  %v2924 = vxor.u32 %v2918, 2147483648
  %v2925 = vsel %vm2923, %v2910, %v2924
  %vm2926 = vcmp.eq.s32.totalorder %v2921, 2
  %v2927 = vxor.u32 %v2910, 2147483648
  %v2928 = vsel %vm2926, %v2927, %v2918
  %v2929 = vsel %vm2922, %v2925, %v2928
  %v2930 = vsel %vm2919, nan, %v2929
  %v2931 = vand.u32 2147483647, %v281
  %vm2932 = vcmp.le.f32.partialorder %v2931, 0.7853982
  %vm2933 = vcmp.lt.s32.totalorder %v281, 0
  %v2934 = vand.u32 %v281, 2139095040
  %v2935 = vshrl.u32 %v2934, 23
  %v2936 = vsub.s32 %v2935, 127
  %v2937 = vand.u32 2147483647, %v281
  %v2938 = vand.u32 %v2937, 8388607
  %v2939 = vor.u32 %v2938, 8388608
  %v2940 = vsub.s32 0, %v2939
  %v2941 = vadd.s32 %v2936, 1
  %vm2942 = vcmp.gt.s32.totalorder %v2941, 0
  %v2943 = vsel %vm2942, %v2941, 0
  %v2944 = vshrl.u32 %v2943, 5
  %v2945 = vand.u32 %v2943, 31
  %v2946 = vsub.s32 32, %v2945
  %v2947 = vshrl.u32 683565275, %v2946
  %v2948 = vshll.u32 683565275, %v2945
  %v2949 = vshrl.u32 2475754826, %v2946
  %v2950 = vor.u32 %v2948, %v2949
  %v2951 = vshll.u32 2475754826, %v2945
  %v2952 = vshrl.u32 2131351028, %v2946
  %v2953 = vor.u32 %v2951, %v2952
  %v2954 = vshll.u32 2131351028, %v2945
  %v2955 = vshrl.u32 2102212464, %v2946
  %v2956 = vor.u32 %v2954, %v2955
  %v2957 = vshll.u32 2102212464, %v2945
  %v2958 = vshrl.u32 920167782, %v2946
  %v2959 = vor.u32 %v2957, %v2958
  %v2960 = vshll.u32 920167782, %v2945
  %v2961 = vshrl.u32 1326507024, %v2946
  %v2962 = vor.u32 %v2960, %v2961
  %vm2963 = vcmp.lt.s32.totalorder %v2944, 1
  %vm2964 = vcmp.lt.s32.totalorder %v2944, 2
  %vm2965 = vcmp.lt.s32.totalorder %v2944, 3
  %vm2966 = vcmp.lt.s32.totalorder %v2944, 4
  %v2967 = vsel %vm2963, %v2947, %v2950
  %v2968 = vsel %vm2966, %v2956, 2102212464
  %v2969 = vsel %vm2965, %v2953, %v2968
  %v2970 = vsel %vm2964, %v2967, %v2969
  %v2971 = vsel %vm2963, %v2950, %v2953
  %v2972 = vsel %vm2966, %v2959, 920167782
  %v2973 = vsel %vm2965, %v2956, %v2972
  %v2974 = vsel %vm2964, %v2971, %v2973
  %v2975 = vsel %vm2963, %v2953, %v2956
  %v2976 = vsel %vm2966, %v2962, 1326507024
  %v2977 = vsel %vm2965, %v2959, %v2976
  %v2978 = vsel %vm2964, %v2975, %v2977
  %v2979 = vshll.u32 %v2939, 8
  %v2980 = vand.u32 %v2979, 65535
  %v2981 = vshrl.u32 %v2979, 16
  %v2982 = vand.u32 %v2978, 65535
  %v2983 = vshrl.u32 %v2978, 16
  %v2984 = vmul.u32 %v2980, %v2982
  %v2985 = vmul.u32 %v2980, %v2983
  %v2986 = vmul.u32 %v2981, %v2982
  %v2987 = vmul.u32 %v2981, %v2983
  %v2988 = vshll.u32 %v2985, 16
  %v2989 = vshrl.u32 %v2985, 16
  %v2990 = vshll.u32 %v2986, 16
  %v2991 = vshrl.u32 %v2986, 16
  %vm2992 = vc.u32 %v2984, %v2988
  %v2993 = vsel %vm2992, 1, 0
  %v2994 = vadd.s32 %v2984, %v2988
  %v2995 = vadd.s32 %v2987, %v2993
  %vm2996 = vc.u32 %v2994, %v2990
  %v2997 = vsel %vm2996, 1, 0
  %v2998 = vadd.s32 %v2994, %v2990
  %v2999 = vadd.s32 %v2995, %v2997
  %v3000 = vadd.s32 %v2999, %v2989
  %v3001 = vadd.s32 %v3000, %v2991
  %v3002 = vand.u32 %v2979, 65535
  %v3003 = vshrl.u32 %v2979, 16
  %v3004 = vand.u32 %v2974, 65535
  %v3005 = vshrl.u32 %v2974, 16
  %v3006 = vmul.u32 %v3002, %v3004
  %v3007 = vmul.u32 %v3002, %v3005
  %v3008 = vmul.u32 %v3003, %v3004
  %v3009 = vmul.u32 %v3003, %v3005
  %v3010 = vshll.u32 %v3007, 16
  %v3011 = vshrl.u32 %v3007, 16
  %v3012 = vshll.u32 %v3008, 16
  %v3013 = vshrl.u32 %v3008, 16
  %vm3014 = vc.u32 %v3006, %v3010
  %v3015 = vsel %vm3014, 1, 0
  %v3016 = vadd.s32 %v3006, %v3010
  %v3017 = vadd.s32 %v3009, %v3015
  %vm3018 = vc.u32 %v3016, %v3012
  %v3019 = vsel %vm3018, 1, 0
  %v3020 = vadd.s32 %v3016, %v3012
  %v3021 = vadd.s32 %v3017, %v3019
  %v3022 = vadd.s32 %v3021, %v3011
  %v3023 = vadd.s32 %v3022, %v3013
  %v3024 = vmul.u32 %v2979, %v2970
  %v3025 = vadd.s32 %v3001, %v3020
  %vm3026 = vc.u32 %v3001, %v3020
  %v3027 = vadd.s32 %v3023, 1
  %v3028 = vsel %vm3026, %v3027, %v3023
  %v3029 = vadd.s32 %v3024, %v3028
  %v3030 = vadd.s32 %v3029, 536870912
  %v3031 = vshrl.u32 %v3030, 30
  %v3032 = vshll.u32 %v3031, 30
  %v3033 = vsub.s32 %v3029, %v3032
  %vm3034 = vcmp.lt.s32.totalorder %v3033, 0
  %v3035 = vsub.s32 0, %v3033
  %v3036 = vsel %vm3034, %v3035, %v3033
  %v3037 = vclz %v3036
  %v3038 = vsub.s32 %v3037, 2
  %vm3039 = vcmp.gt.s32.totalorder 0, %v3038
  %v3040 = vsel %vm3039, 0, %v3038
  %v3041 = vsub.s32 32, %v3040
  %v3042 = vshll.u32 %v3033, %v3040
  %v3043 = vshrl.u32 %v3025, %v3041
  %v3044 = vor.u32 %v3042, %v3043
  %v3045 = vsub.s32 4294967266, %v3040
  %v3046 = vadd.s32 %v3045, 127
  %v3047 = vshll.u32 %v3046, 23
  %v3048 = vor.u32 4788187, %v3047
  %v3049 = vand.u32 2147483647, %v3048
  %v3051 = vcvt.s32.f32 %v3044
  %v3052 = vmul.f32 %v3051, %v3049
  %v3053 = vxor.u32 %v3052, 2147483648
  %v3054 = vsel %vm2933, %v3053, %v3052
  %v3055 = vsub.s32 4, %v3031
  %v3056 = vsel %vm2933, %v3055, %v3031
  %v3057 = vsel %vm2932, %v281, %v3054
  %v3058 = vsel %vm2932, 0, %v3056
  %v3059 = vmul.f32 %v3057, %v3057
  %v3060 = vmul.f32 %v3059, -0.001358992
  %v3061 = vadd.f32 %v3060, 0.041655596
  %v3062 = vmul.f32 %v3059, %v3061
  %v3063 = vadd.f32 %v3062, -0.4999988
  %v3064 = vmul.f32 %v3059, %v3063
  %v3065 = vadd.f32 1.0, %v3064
  %v3066 = vmul.f32 %v3057, %v3057
  %v3067 = vmul.f32 %v3066, -0.00019511016
  %v3068 = vadd.f32 %v3067, 0.008332121
  %v3069 = vmul.f32 %v3066, %v3068
  %v3070 = vadd.f32 %v3069, -0.16666654
  %v3071 = vmul.f32 %v3066, %v3070
  %v3072 = vadd.f32 %v3071, 1.0
  %v3073 = vmul.f32 %v3072, %v3057
  %vm3074 = vweird.f32 %v281
  %v3075 = vadd.s32 %v3058, 3
  %v3076 = vand.u32 %v3075, 3
  %vm3077 = vcmp.lt.s32.totalorder %v3076, 2
  %vm3078 = vcmp.eq.s32.totalorder %v3076, 0
  %v3079 = vxor.u32 %v3073, 2147483648
  %v3080 = vsel %vm3078, %v3065, %v3079
  %vm3081 = vcmp.eq.s32.totalorder %v3076, 2
  %v3082 = vxor.u32 %v3065, 2147483648
  %v3083 = vsel %vm3081, %v3082, %v3073
  %v3084 = vsel %vm3077, %v3080, %v3083
  %v3085 = vsel %vm3074, nan, %v3084
  %v3086 = vand.u32 2147483647, %v282
  %vm3087 = vcmp.le.f32.partialorder %v3086, 0.7853982
  %vm3088 = vcmp.lt.s32.totalorder %v282, 0
  %v3089 = vand.u32 %v282, 2139095040
  %v3090 = vshrl.u32 %v3089, 23
  %v3091 = vsub.s32 %v3090, 127
  %v3092 = vand.u32 2147483647, %v282
  %v3093 = vand.u32 %v3092, 8388607
  %v3094 = vor.u32 %v3093, 8388608
  %v3095 = vsub.s32 0, %v3094
  %v3096 = vadd.s32 %v3091, 1
  %vm3097 = vcmp.gt.s32.totalorder %v3096, 0
  %v3098 = vsel %vm3097, %v3096, 0
  %v3099 = vshrl.u32 %v3098, 5
  %v3100 = vand.u32 %v3098, 31
  %v3101 = vsub.s32 32, %v3100
  %v3102 = vshrl.u32 683565275, %v3101
  %v3103 = vshll.u32 683565275, %v3100
  %v3104 = vshrl.u32 2475754826, %v3101
  %v3105 = vor.u32 %v3103, %v3104
  %v3106 = vshll.u32 2475754826, %v3100
  %v3107 = vshrl.u32 2131351028, %v3101
  %v3108 = vor.u32 %v3106, %v3107
  %v3109 = vshll.u32 2131351028, %v3100
  %v3110 = vshrl.u32 2102212464, %v3101
  %v3111 = vor.u32 %v3109, %v3110
  %v3112 = vshll.u32 2102212464, %v3100
  %v3113 = vshrl.u32 920167782, %v3101
  %v3114 = vor.u32 %v3112, %v3113
  %v3115 = vshll.u32 920167782, %v3100
  %v3116 = vshrl.u32 1326507024, %v3101
  %v3117 = vor.u32 %v3115, %v3116
  %vm3118 = vcmp.lt.s32.totalorder %v3099, 1
  %vm3119 = vcmp.lt.s32.totalorder %v3099, 2
  %vm3120 = vcmp.lt.s32.totalorder %v3099, 3
  %vm3121 = vcmp.lt.s32.totalorder %v3099, 4
  %v3122 = vsel %vm3118, %v3102, %v3105
  %v3123 = vsel %vm3121, %v3111, 2102212464
  %v3124 = vsel %vm3120, %v3108, %v3123
  %v3125 = vsel %vm3119, %v3122, %v3124
  %v3126 = vsel %vm3118, %v3105, %v3108
  %v3127 = vsel %vm3121, %v3114, 920167782
  %v3128 = vsel %vm3120, %v3111, %v3127
  %v3129 = vsel %vm3119, %v3126, %v3128
  %v3130 = vsel %vm3118, %v3108, %v3111
  %v3131 = vsel %vm3121, %v3117, 1326507024
  %v3132 = vsel %vm3120, %v3114, %v3131
  %v3133 = vsel %vm3119, %v3130, %v3132
  %v3134 = vshll.u32 %v3094, 8
  %v3135 = vand.u32 %v3134, 65535
  %v3136 = vshrl.u32 %v3134, 16
  %v3137 = vand.u32 %v3133, 65535
  %v3138 = vshrl.u32 %v3133, 16
  %v3139 = vmul.u32 %v3135, %v3137
  %v3140 = vmul.u32 %v3135, %v3138
  %v3141 = vmul.u32 %v3136, %v3137
  %v3142 = vmul.u32 %v3136, %v3138
  %v3143 = vshll.u32 %v3140, 16
  %v3144 = vshrl.u32 %v3140, 16
  %v3145 = vshll.u32 %v3141, 16
  %v3146 = vshrl.u32 %v3141, 16
  %vm3147 = vc.u32 %v3139, %v3143
  %v3148 = vsel %vm3147, 1, 0
  %v3149 = vadd.s32 %v3139, %v3143
  %v3150 = vadd.s32 %v3142, %v3148
  %vm3151 = vc.u32 %v3149, %v3145
  %v3152 = vsel %vm3151, 1, 0
  %v3153 = vadd.s32 %v3149, %v3145
  %v3154 = vadd.s32 %v3150, %v3152
  %v3155 = vadd.s32 %v3154, %v3144
  %v3156 = vadd.s32 %v3155, %v3146
  %v3157 = vand.u32 %v3134, 65535
  %v3158 = vshrl.u32 %v3134, 16
  %v3159 = vand.u32 %v3129, 65535
  %v3160 = vshrl.u32 %v3129, 16
  %v3161 = vmul.u32 %v3157, %v3159
  %v3162 = vmul.u32 %v3157, %v3160
  %v3163 = vmul.u32 %v3158, %v3159
  %v3164 = vmul.u32 %v3158, %v3160
  %v3165 = vshll.u32 %v3162, 16
  %v3166 = vshrl.u32 %v3162, 16
  %v3167 = vshll.u32 %v3163, 16
  %v3168 = vshrl.u32 %v3163, 16
  %vm3169 = vc.u32 %v3161, %v3165
  %v3170 = vsel %vm3169, 1, 0
  %v3171 = vadd.s32 %v3161, %v3165
  %v3172 = vadd.s32 %v3164, %v3170
  %vm3173 = vc.u32 %v3171, %v3167
  %v3174 = vsel %vm3173, 1, 0
  %v3175 = vadd.s32 %v3171, %v3167
  %v3176 = vadd.s32 %v3172, %v3174
  %v3177 = vadd.s32 %v3176, %v3166
  %v3178 = vadd.s32 %v3177, %v3168
  %v3179 = vmul.u32 %v3134, %v3125
  %v3180 = vadd.s32 %v3156, %v3175
  %vm3181 = vc.u32 %v3156, %v3175
  %v3182 = vadd.s32 %v3178, 1
  %v3183 = vsel %vm3181, %v3182, %v3178
  %v3184 = vadd.s32 %v3179, %v3183
  %v3185 = vadd.s32 %v3184, 536870912
  %v3186 = vshrl.u32 %v3185, 30
  %v3187 = vshll.u32 %v3186, 30
  %v3188 = vsub.s32 %v3184, %v3187
  %vm3189 = vcmp.lt.s32.totalorder %v3188, 0
  %v3190 = vsub.s32 0, %v3188
  %v3191 = vsel %vm3189, %v3190, %v3188
  %v3192 = vclz %v3191
  %v3193 = vsub.s32 %v3192, 2
  %vm3194 = vcmp.gt.s32.totalorder 0, %v3193
  %v3195 = vsel %vm3194, 0, %v3193
  %v3196 = vsub.s32 32, %v3195
  %v3197 = vshll.u32 %v3188, %v3195
  %v3198 = vshrl.u32 %v3180, %v3196
  %v3199 = vor.u32 %v3197, %v3198
  %v3200 = vsub.s32 4294967266, %v3195
  %v3201 = vadd.s32 %v3200, 127
  %v3202 = vshll.u32 %v3201, 23
  %v3203 = vor.u32 4788187, %v3202
  %v3204 = vand.u32 2147483647, %v3203
  %v3206 = vcvt.s32.f32 %v3199
  %v3207 = vmul.f32 %v3206, %v3204
  %v3208 = vxor.u32 %v3207, 2147483648
  %v3209 = vsel %vm3088, %v3208, %v3207
  %v3210 = vsub.s32 4, %v3186
  %v3211 = vsel %vm3088, %v3210, %v3186
  %v3212 = vsel %vm3087, %v282, %v3209
  %v3213 = vsel %vm3087, 0, %v3211
  %v3214 = vmul.f32 %v3212, %v3212
  %v3215 = vmul.f32 %v3214, -0.001358992
  %v3216 = vadd.f32 %v3215, 0.041655596
  %v3217 = vmul.f32 %v3214, %v3216
  %v3218 = vadd.f32 %v3217, -0.4999988
  %v3219 = vmul.f32 %v3214, %v3218
  %v3220 = vadd.f32 1.0, %v3219
  %v3221 = vmul.f32 %v3212, %v3212
  %v3222 = vmul.f32 %v3221, -0.00019511016
  %v3223 = vadd.f32 %v3222, 0.008332121
  %v3224 = vmul.f32 %v3221, %v3223
  %v3225 = vadd.f32 %v3224, -0.16666654
  %v3226 = vmul.f32 %v3221, %v3225
  %v3227 = vadd.f32 %v3226, 1.0
  %v3228 = vmul.f32 %v3227, %v3212
  %vm3229 = vweird.f32 %v282
  %v3230 = vadd.s32 %v3213, 3
  %v3231 = vand.u32 %v3230, 3
  %vm3232 = vcmp.lt.s32.totalorder %v3231, 2
  %vm3233 = vcmp.eq.s32.totalorder %v3231, 0
  %v3234 = vxor.u32 %v3228, 2147483648
  %v3235 = vsel %vm3233, %v3220, %v3234
  %vm3236 = vcmp.eq.s32.totalorder %v3231, 2
  %v3237 = vxor.u32 %v3220, 2147483648
  %v3238 = vsel %vm3236, %v3237, %v3228
  %v3239 = vsel %vm3232, %v3235, %v3238
  %v3240 = vsel %vm3229, nan, %v3239
  %v3241 = vand.u32 2147483647, %v283
  %vm3242 = vcmp.le.f32.partialorder %v3241, 0.7853982
  %vm3243 = vcmp.lt.s32.totalorder %v283, 0
  %v3244 = vand.u32 %v283, 2139095040
  %v3245 = vshrl.u32 %v3244, 23
  %v3246 = vsub.s32 %v3245, 127
  %v3247 = vand.u32 2147483647, %v283
  %v3248 = vand.u32 %v3247, 8388607
  %v3249 = vor.u32 %v3248, 8388608
  %v3250 = vsub.s32 0, %v3249
  %v3251 = vadd.s32 %v3246, 1
  %vm3252 = vcmp.gt.s32.totalorder %v3251, 0
  %v3253 = vsel %vm3252, %v3251, 0
  %v3254 = vshrl.u32 %v3253, 5
  %v3255 = vand.u32 %v3253, 31
  %v3256 = vsub.s32 32, %v3255
  %v3257 = vshrl.u32 683565275, %v3256
  %v3258 = vshll.u32 683565275, %v3255
  %v3259 = vshrl.u32 2475754826, %v3256
  %v3260 = vor.u32 %v3258, %v3259
  %v3261 = vshll.u32 2475754826, %v3255
  %v3262 = vshrl.u32 2131351028, %v3256
  %v3263 = vor.u32 %v3261, %v3262
  %v3264 = vshll.u32 2131351028, %v3255
  %v3265 = vshrl.u32 2102212464, %v3256
  %v3266 = vor.u32 %v3264, %v3265
  %v3267 = vshll.u32 2102212464, %v3255
  %v3268 = vshrl.u32 920167782, %v3256
  %v3269 = vor.u32 %v3267, %v3268
  %v3270 = vshll.u32 920167782, %v3255
  %v3271 = vshrl.u32 1326507024, %v3256
  %v3272 = vor.u32 %v3270, %v3271
  %vm3273 = vcmp.lt.s32.totalorder %v3254, 1
  %vm3274 = vcmp.lt.s32.totalorder %v3254, 2
  %vm3275 = vcmp.lt.s32.totalorder %v3254, 3
  %vm3276 = vcmp.lt.s32.totalorder %v3254, 4
  %v3277 = vsel %vm3273, %v3257, %v3260
  %v3278 = vsel %vm3276, %v3266, 2102212464
  %v3279 = vsel %vm3275, %v3263, %v3278
  %v3280 = vsel %vm3274, %v3277, %v3279
  %v3281 = vsel %vm3273, %v3260, %v3263
  %v3282 = vsel %vm3276, %v3269, 920167782
  %v3283 = vsel %vm3275, %v3266, %v3282
  %v3284 = vsel %vm3274, %v3281, %v3283
  %v3285 = vsel %vm3273, %v3263, %v3266
  %v3286 = vsel %vm3276, %v3272, 1326507024
  %v3287 = vsel %vm3275, %v3269, %v3286
  %v3288 = vsel %vm3274, %v3285, %v3287
  %v3289 = vshll.u32 %v3249, 8
  %v3290 = vand.u32 %v3289, 65535
  %v3291 = vshrl.u32 %v3289, 16
  %v3292 = vand.u32 %v3288, 65535
  %v3293 = vshrl.u32 %v3288, 16
  %v3294 = vmul.u32 %v3290, %v3292
  %v3295 = vmul.u32 %v3290, %v3293
  %v3296 = vmul.u32 %v3291, %v3292
  %v3297 = vmul.u32 %v3291, %v3293
  %v3298 = vshll.u32 %v3295, 16
  %v3299 = vshrl.u32 %v3295, 16
  %v3300 = vshll.u32 %v3296, 16
  %v3301 = vshrl.u32 %v3296, 16
  %vm3302 = vc.u32 %v3294, %v3298
  %v3303 = vsel %vm3302, 1, 0
  %v3304 = vadd.s32 %v3294, %v3298
  %v3305 = vadd.s32 %v3297, %v3303
  %vm3306 = vc.u32 %v3304, %v3300
  %v3307 = vsel %vm3306, 1, 0
  %v3308 = vadd.s32 %v3304, %v3300
  %v3309 = vadd.s32 %v3305, %v3307
  %v3310 = vadd.s32 %v3309, %v3299
  %v3311 = vadd.s32 %v3310, %v3301
  %v3312 = vand.u32 %v3289, 65535
  %v3313 = vshrl.u32 %v3289, 16
  %v3314 = vand.u32 %v3284, 65535
  %v3315 = vshrl.u32 %v3284, 16
  %v3316 = vmul.u32 %v3312, %v3314
  %v3317 = vmul.u32 %v3312, %v3315
  %v3318 = vmul.u32 %v3313, %v3314
  %v3319 = vmul.u32 %v3313, %v3315
  %v3320 = vshll.u32 %v3317, 16
  %v3321 = vshrl.u32 %v3317, 16
  %v3322 = vshll.u32 %v3318, 16
  %v3323 = vshrl.u32 %v3318, 16
  %vm3324 = vc.u32 %v3316, %v3320
  %v3325 = vsel %vm3324, 1, 0
  %v3326 = vadd.s32 %v3316, %v3320
  %v3327 = vadd.s32 %v3319, %v3325
  %vm3328 = vc.u32 %v3326, %v3322
  %v3329 = vsel %vm3328, 1, 0
  %v3330 = vadd.s32 %v3326, %v3322
  %v3331 = vadd.s32 %v3327, %v3329
  %v3332 = vadd.s32 %v3331, %v3321
  %v3333 = vadd.s32 %v3332, %v3323
  %v3334 = vmul.u32 %v3289, %v3280
  %v3335 = vadd.s32 %v3311, %v3330
  %vm3336 = vc.u32 %v3311, %v3330
  %v3337 = vadd.s32 %v3333, 1
  %v3338 = vsel %vm3336, %v3337, %v3333
  %v3339 = vadd.s32 %v3334, %v3338
  %v3340 = vadd.s32 %v3339, 536870912
  %v3341 = vshrl.u32 %v3340, 30
  %v3342 = vshll.u32 %v3341, 30
  %v3343 = vsub.s32 %v3339, %v3342
  %vm3344 = vcmp.lt.s32.totalorder %v3343, 0
  %v3345 = vsub.s32 0, %v3343
  %v3346 = vsel %vm3344, %v3345, %v3343
  %v3347 = vclz %v3346
  %v3348 = vsub.s32 %v3347, 2
  %vm3349 = vcmp.gt.s32.totalorder 0, %v3348
  %v3350 = vsel %vm3349, 0, %v3348
  %v3351 = vsub.s32 32, %v3350
  %v3352 = vshll.u32 %v3343, %v3350
  %v3353 = vshrl.u32 %v3335, %v3351
  %v3354 = vor.u32 %v3352, %v3353
  %v3355 = vsub.s32 4294967266, %v3350
  %v3356 = vadd.s32 %v3355, 127
  %v3357 = vshll.u32 %v3356, 23
  %v3358 = vor.u32 4788187, %v3357
  %v3359 = vand.u32 2147483647, %v3358
  %v3361 = vcvt.s32.f32 %v3354
  %v3362 = vmul.f32 %v3361, %v3359
  %v3363 = vxor.u32 %v3362, 2147483648
  %v3364 = vsel %vm3243, %v3363, %v3362
  %v3365 = vsub.s32 4, %v3341
  %v3366 = vsel %vm3243, %v3365, %v3341
  %v3367 = vsel %vm3242, %v283, %v3364
  %v3368 = vsel %vm3242, 0, %v3366
  %v3369 = vmul.f32 %v3367, %v3367
  %v3370 = vmul.f32 %v3369, -0.001358992
  %v3371 = vadd.f32 %v3370, 0.041655596
  %v3372 = vmul.f32 %v3369, %v3371
  %v3373 = vadd.f32 %v3372, -0.4999988
  %v3374 = vmul.f32 %v3369, %v3373
  %v3375 = vadd.f32 1.0, %v3374
  %v3376 = vmul.f32 %v3367, %v3367
  %v3377 = vmul.f32 %v3376, -0.00019511016
  %v3378 = vadd.f32 %v3377, 0.008332121
  %v3379 = vmul.f32 %v3376, %v3378
  %v3380 = vadd.f32 %v3379, -0.16666654
  %v3381 = vmul.f32 %v3376, %v3380
  %v3382 = vadd.f32 %v3381, 1.0
  %v3383 = vmul.f32 %v3382, %v3367
  %vm3384 = vweird.f32 %v283
  %v3385 = vadd.s32 %v3368, 3
  %v3386 = vand.u32 %v3385, 3
  %vm3387 = vcmp.lt.s32.totalorder %v3386, 2
  %vm3388 = vcmp.eq.s32.totalorder %v3386, 0
  %v3389 = vxor.u32 %v3383, 2147483648
  %v3390 = vsel %vm3388, %v3375, %v3389
  %vm3391 = vcmp.eq.s32.totalorder %v3386, 2
  %v3392 = vxor.u32 %v3375, 2147483648
  %v3393 = vsel %vm3391, %v3392, %v3383
  %v3394 = vsel %vm3387, %v3390, %v3393
  %v3395 = vsel %vm3384, nan, %v3394
  %v3396 = vand.u32 2147483647, %v284
  %vm3397 = vcmp.le.f32.partialorder %v3396, 0.7853982
  %vm3398 = vcmp.lt.s32.totalorder %v284, 0
  %v3399 = vand.u32 %v284, 2139095040
  %v3400 = vshrl.u32 %v3399, 23
  %v3401 = vsub.s32 %v3400, 127
  %v3402 = vand.u32 2147483647, %v284
  %v3403 = vand.u32 %v3402, 8388607
  %v3404 = vor.u32 %v3403, 8388608
  %v3405 = vsub.s32 0, %v3404
  %v3406 = vadd.s32 %v3401, 1
  %vm3407 = vcmp.gt.s32.totalorder %v3406, 0
  %v3408 = vsel %vm3407, %v3406, 0
  %v3409 = vshrl.u32 %v3408, 5
  %v3410 = vand.u32 %v3408, 31
  %v3411 = vsub.s32 32, %v3410
  %v3412 = vshrl.u32 683565275, %v3411
  %v3413 = vshll.u32 683565275, %v3410
  %v3414 = vshrl.u32 2475754826, %v3411
  %v3415 = vor.u32 %v3413, %v3414
  %v3416 = vshll.u32 2475754826, %v3410
  %v3417 = vshrl.u32 2131351028, %v3411
  %v3418 = vor.u32 %v3416, %v3417
  %v3419 = vshll.u32 2131351028, %v3410
  %v3420 = vshrl.u32 2102212464, %v3411
  %v3421 = vor.u32 %v3419, %v3420
  %v3422 = vshll.u32 2102212464, %v3410
  %v3423 = vshrl.u32 920167782, %v3411
  %v3424 = vor.u32 %v3422, %v3423
  %v3425 = vshll.u32 920167782, %v3410
  %v3426 = vshrl.u32 1326507024, %v3411
  %v3427 = vor.u32 %v3425, %v3426
  %vm3428 = vcmp.lt.s32.totalorder %v3409, 1
  %vm3429 = vcmp.lt.s32.totalorder %v3409, 2
  %vm3430 = vcmp.lt.s32.totalorder %v3409, 3
  %vm3431 = vcmp.lt.s32.totalorder %v3409, 4
  %v3432 = vsel %vm3428, %v3412, %v3415
  %v3433 = vsel %vm3431, %v3421, 2102212464
  %v3434 = vsel %vm3430, %v3418, %v3433
  %v3435 = vsel %vm3429, %v3432, %v3434
  %v3436 = vsel %vm3428, %v3415, %v3418
  %v3437 = vsel %vm3431, %v3424, 920167782
  %v3438 = vsel %vm3430, %v3421, %v3437
  %v3439 = vsel %vm3429, %v3436, %v3438
  %v3440 = vsel %vm3428, %v3418, %v3421
  %v3441 = vsel %vm3431, %v3427, 1326507024
  %v3442 = vsel %vm3430, %v3424, %v3441
  %v3443 = vsel %vm3429, %v3440, %v3442
  %v3444 = vshll.u32 %v3404, 8
  %v3445 = vand.u32 %v3444, 65535
  %v3446 = vshrl.u32 %v3444, 16
  %v3447 = vand.u32 %v3443, 65535
  %v3448 = vshrl.u32 %v3443, 16
  %v3449 = vmul.u32 %v3445, %v3447
  %v3450 = vmul.u32 %v3445, %v3448
  %v3451 = vmul.u32 %v3446, %v3447
  %v3452 = vmul.u32 %v3446, %v3448
  %v3453 = vshll.u32 %v3450, 16
  %v3454 = vshrl.u32 %v3450, 16
  %v3455 = vshll.u32 %v3451, 16
  %v3456 = vshrl.u32 %v3451, 16
  %vm3457 = vc.u32 %v3449, %v3453
  %v3458 = vsel %vm3457, 1, 0
  %v3459 = vadd.s32 %v3449, %v3453
  %v3460 = vadd.s32 %v3452, %v3458
  %vm3461 = vc.u32 %v3459, %v3455
  %v3462 = vsel %vm3461, 1, 0
  %v3463 = vadd.s32 %v3459, %v3455
  %v3464 = vadd.s32 %v3460, %v3462
  %v3465 = vadd.s32 %v3464, %v3454
  %v3466 = vadd.s32 %v3465, %v3456
  %v3467 = vand.u32 %v3444, 65535
  %v3468 = vshrl.u32 %v3444, 16
  %v3469 = vand.u32 %v3439, 65535
  %v3470 = vshrl.u32 %v3439, 16
  %v3471 = vmul.u32 %v3467, %v3469
  %v3472 = vmul.u32 %v3467, %v3470
  %v3473 = vmul.u32 %v3468, %v3469
  %v3474 = vmul.u32 %v3468, %v3470
  %v3475 = vshll.u32 %v3472, 16
  %v3476 = vshrl.u32 %v3472, 16
  %v3477 = vshll.u32 %v3473, 16
  %v3478 = vshrl.u32 %v3473, 16
  %vm3479 = vc.u32 %v3471, %v3475
  %v3480 = vsel %vm3479, 1, 0
  %v3481 = vadd.s32 %v3471, %v3475
  %v3482 = vadd.s32 %v3474, %v3480
  %vm3483 = vc.u32 %v3481, %v3477
  %v3484 = vsel %vm3483, 1, 0
  %v3485 = vadd.s32 %v3481, %v3477
  %v3486 = vadd.s32 %v3482, %v3484
  %v3487 = vadd.s32 %v3486, %v3476
  %v3488 = vadd.s32 %v3487, %v3478
  %v3489 = vmul.u32 %v3444, %v3435
  %v3490 = vadd.s32 %v3466, %v3485
  %vm3491 = vc.u32 %v3466, %v3485
  %v3492 = vadd.s32 %v3488, 1
  %v3493 = vsel %vm3491, %v3492, %v3488
  %v3494 = vadd.s32 %v3489, %v3493
  %v3495 = vadd.s32 %v3494, 536870912
  %v3496 = vshrl.u32 %v3495, 30
  %v3497 = vshll.u32 %v3496, 30
  %v3498 = vsub.s32 %v3494, %v3497
  %vm3499 = vcmp.lt.s32.totalorder %v3498, 0
  %v3500 = vsub.s32 0, %v3498
  %v3501 = vsel %vm3499, %v3500, %v3498
  %v3502 = vclz %v3501
  %v3503 = vsub.s32 %v3502, 2
  %vm3504 = vcmp.gt.s32.totalorder 0, %v3503
  %v3505 = vsel %vm3504, 0, %v3503
  %v3506 = vsub.s32 32, %v3505
  %v3507 = vshll.u32 %v3498, %v3505
  %v3508 = vshrl.u32 %v3490, %v3506
  %v3509 = vor.u32 %v3507, %v3508
  %v3510 = vsub.s32 4294967266, %v3505
  %v3511 = vadd.s32 %v3510, 127
  %v3512 = vshll.u32 %v3511, 23
  %v3513 = vor.u32 4788187, %v3512
  %v3514 = vand.u32 2147483647, %v3513
  %v3516 = vcvt.s32.f32 %v3509
  %v3517 = vmul.f32 %v3516, %v3514
  %v3518 = vxor.u32 %v3517, 2147483648
  %v3519 = vsel %vm3398, %v3518, %v3517
  %v3520 = vsub.s32 4, %v3496
  %v3521 = vsel %vm3398, %v3520, %v3496
  %v3522 = vsel %vm3397, %v284, %v3519
  %v3523 = vsel %vm3397, 0, %v3521
  %v3524 = vmul.f32 %v3522, %v3522
  %v3525 = vmul.f32 %v3524, -0.001358992
  %v3526 = vadd.f32 %v3525, 0.041655596
  %v3527 = vmul.f32 %v3524, %v3526
  %v3528 = vadd.f32 %v3527, -0.4999988
  %v3529 = vmul.f32 %v3524, %v3528
  %v3530 = vadd.f32 1.0, %v3529
  %v3531 = vmul.f32 %v3522, %v3522
  %v3532 = vmul.f32 %v3531, -0.00019511016
  %v3533 = vadd.f32 %v3532, 0.008332121
  %v3534 = vmul.f32 %v3531, %v3533
  %v3535 = vadd.f32 %v3534, -0.16666654
  %v3536 = vmul.f32 %v3531, %v3535
  %v3537 = vadd.f32 %v3536, 1.0
  %v3538 = vmul.f32 %v3537, %v3522
  %vm3539 = vweird.f32 %v284
  %v3540 = vadd.s32 %v3523, 3
  %v3541 = vand.u32 %v3540, 3
  %vm3542 = vcmp.lt.s32.totalorder %v3541, 2
  %vm3543 = vcmp.eq.s32.totalorder %v3541, 0
  %v3544 = vxor.u32 %v3538, 2147483648
  %v3545 = vsel %vm3543, %v3530, %v3544
  %vm3546 = vcmp.eq.s32.totalorder %v3541, 2
  %v3547 = vxor.u32 %v3530, 2147483648
  %v3548 = vsel %vm3546, %v3547, %v3538
  %v3549 = vsel %vm3542, %v3545, %v3548
  %v3550 = vsel %vm3539, nan, %v3549
  %v3551 = vand.u32 2147483647, %v285
  %vm3552 = vcmp.le.f32.partialorder %v3551, 0.7853982
  %vm3553 = vcmp.lt.s32.totalorder %v285, 0
  %v3554 = vand.u32 %v285, 2139095040
  %v3555 = vshrl.u32 %v3554, 23
  %v3556 = vsub.s32 %v3555, 127
  %v3557 = vand.u32 2147483647, %v285
  %v3558 = vand.u32 %v3557, 8388607
  %v3559 = vor.u32 %v3558, 8388608
  %v3560 = vsub.s32 0, %v3559
  %v3561 = vadd.s32 %v3556, 1
  %vm3562 = vcmp.gt.s32.totalorder %v3561, 0
  %v3563 = vsel %vm3562, %v3561, 0
  %v3564 = vshrl.u32 %v3563, 5
  %v3565 = vand.u32 %v3563, 31
  %v3566 = vsub.s32 32, %v3565
  %v3567 = vshrl.u32 683565275, %v3566
  %v3568 = vshll.u32 683565275, %v3565
  %v3569 = vshrl.u32 2475754826, %v3566
  %v3570 = vor.u32 %v3568, %v3569
  %v3571 = vshll.u32 2475754826, %v3565
  %v3572 = vshrl.u32 2131351028, %v3566
  %v3573 = vor.u32 %v3571, %v3572
  %v3574 = vshll.u32 2131351028, %v3565
  %v3575 = vshrl.u32 2102212464, %v3566
  %v3576 = vor.u32 %v3574, %v3575
  %v3577 = vshll.u32 2102212464, %v3565
  %v3578 = vshrl.u32 920167782, %v3566
  %v3579 = vor.u32 %v3577, %v3578
  %v3580 = vshll.u32 920167782, %v3565
  %v3581 = vshrl.u32 1326507024, %v3566
  %v3582 = vor.u32 %v3580, %v3581
  %vm3583 = vcmp.lt.s32.totalorder %v3564, 1
  %vm3584 = vcmp.lt.s32.totalorder %v3564, 2
  %vm3585 = vcmp.lt.s32.totalorder %v3564, 3
  %vm3586 = vcmp.lt.s32.totalorder %v3564, 4
  %v3587 = vsel %vm3583, %v3567, %v3570
  %v3588 = vsel %vm3586, %v3576, 2102212464
  %v3589 = vsel %vm3585, %v3573, %v3588
  %v3590 = vsel %vm3584, %v3587, %v3589
  %v3591 = vsel %vm3583, %v3570, %v3573
  %v3592 = vsel %vm3586, %v3579, 920167782
  %v3593 = vsel %vm3585, %v3576, %v3592
  %v3594 = vsel %vm3584, %v3591, %v3593
  %v3595 = vsel %vm3583, %v3573, %v3576
  %v3596 = vsel %vm3586, %v3582, 1326507024
  %v3597 = vsel %vm3585, %v3579, %v3596
  %v3598 = vsel %vm3584, %v3595, %v3597
  %v3599 = vshll.u32 %v3559, 8
  %v3600 = vand.u32 %v3599, 65535
  %v3601 = vshrl.u32 %v3599, 16
  %v3602 = vand.u32 %v3598, 65535
  %v3603 = vshrl.u32 %v3598, 16
  %v3604 = vmul.u32 %v3600, %v3602
  %v3605 = vmul.u32 %v3600, %v3603
  %v3606 = vmul.u32 %v3601, %v3602
  %v3607 = vmul.u32 %v3601, %v3603
  %v3608 = vshll.u32 %v3605, 16
  %v3609 = vshrl.u32 %v3605, 16
  %v3610 = vshll.u32 %v3606, 16
  %v3611 = vshrl.u32 %v3606, 16
  %vm3612 = vc.u32 %v3604, %v3608
  %v3613 = vsel %vm3612, 1, 0
  %v3614 = vadd.s32 %v3604, %v3608
  %v3615 = vadd.s32 %v3607, %v3613
  %vm3616 = vc.u32 %v3614, %v3610
  %v3617 = vsel %vm3616, 1, 0
  %v3618 = vadd.s32 %v3614, %v3610
  %v3619 = vadd.s32 %v3615, %v3617
  %v3620 = vadd.s32 %v3619, %v3609
  %v3621 = vadd.s32 %v3620, %v3611
  %v3622 = vand.u32 %v3599, 65535
  %v3623 = vshrl.u32 %v3599, 16
  %v3624 = vand.u32 %v3594, 65535
  %v3625 = vshrl.u32 %v3594, 16
  %v3626 = vmul.u32 %v3622, %v3624
  %v3627 = vmul.u32 %v3622, %v3625
  %v3628 = vmul.u32 %v3623, %v3624
  %v3629 = vmul.u32 %v3623, %v3625
  %v3630 = vshll.u32 %v3627, 16
  %v3631 = vshrl.u32 %v3627, 16
  %v3632 = vshll.u32 %v3628, 16
  %v3633 = vshrl.u32 %v3628, 16
  %vm3634 = vc.u32 %v3626, %v3630
  %v3635 = vsel %vm3634, 1, 0
  %v3636 = vadd.s32 %v3626, %v3630
  %v3637 = vadd.s32 %v3629, %v3635
  %vm3638 = vc.u32 %v3636, %v3632
  %v3639 = vsel %vm3638, 1, 0
  %v3640 = vadd.s32 %v3636, %v3632
  %v3641 = vadd.s32 %v3637, %v3639
  %v3642 = vadd.s32 %v3641, %v3631
  %v3643 = vadd.s32 %v3642, %v3633
  %v3644 = vmul.u32 %v3599, %v3590
  %v3645 = vadd.s32 %v3621, %v3640
  %vm3646 = vc.u32 %v3621, %v3640
  %v3647 = vadd.s32 %v3643, 1
  %v3648 = vsel %vm3646, %v3647, %v3643
  %v3649 = vadd.s32 %v3644, %v3648
  %v3650 = vadd.s32 %v3649, 536870912
  %v3651 = vshrl.u32 %v3650, 30
  %v3652 = vshll.u32 %v3651, 30
  %v3653 = vsub.s32 %v3649, %v3652
  %vm3654 = vcmp.lt.s32.totalorder %v3653, 0
  %v3655 = vsub.s32 0, %v3653
  %v3656 = vsel %vm3654, %v3655, %v3653
  %v3657 = vclz %v3656
  %v3658 = vsub.s32 %v3657, 2
  %vm3659 = vcmp.gt.s32.totalorder 0, %v3658
  %v3660 = vsel %vm3659, 0, %v3658
  %v3661 = vsub.s32 32, %v3660
  %v3662 = vshll.u32 %v3653, %v3660
  %v3663 = vshrl.u32 %v3645, %v3661
  %v3664 = vor.u32 %v3662, %v3663
  %v3665 = vsub.s32 4294967266, %v3660
  %v3666 = vadd.s32 %v3665, 127
  %v3667 = vshll.u32 %v3666, 23
  %v3668 = vor.u32 4788187, %v3667
  %v3669 = vand.u32 2147483647, %v3668
  %v3671 = vcvt.s32.f32 %v3664
  %v3672 = vmul.f32 %v3671, %v3669
  %v3673 = vxor.u32 %v3672, 2147483648
  %v3674 = vsel %vm3553, %v3673, %v3672
  %v3675 = vsub.s32 4, %v3651
  %v3676 = vsel %vm3553, %v3675, %v3651
  %v3677 = vsel %vm3552, %v285, %v3674
  %v3678 = vsel %vm3552, 0, %v3676
  %v3679 = vmul.f32 %v3677, %v3677
  %v3680 = vmul.f32 %v3679, -0.001358992
  %v3681 = vadd.f32 %v3680, 0.041655596
  %v3682 = vmul.f32 %v3679, %v3681
  %v3683 = vadd.f32 %v3682, -0.4999988
  %v3684 = vmul.f32 %v3679, %v3683
  %v3685 = vadd.f32 1.0, %v3684
  %v3686 = vmul.f32 %v3677, %v3677
  %v3687 = vmul.f32 %v3686, -0.00019511016
  %v3688 = vadd.f32 %v3687, 0.008332121
  %v3689 = vmul.f32 %v3686, %v3688
  %v3690 = vadd.f32 %v3689, -0.16666654
  %v3691 = vmul.f32 %v3686, %v3690
  %v3692 = vadd.f32 %v3691, 1.0
  %v3693 = vmul.f32 %v3692, %v3677
  %vm3694 = vweird.f32 %v285
  %v3695 = vadd.s32 %v3678, 3
  %v3696 = vand.u32 %v3695, 3
  %vm3697 = vcmp.lt.s32.totalorder %v3696, 2
  %vm3698 = vcmp.eq.s32.totalorder %v3696, 0
  %v3699 = vxor.u32 %v3693, 2147483648
  %v3700 = vsel %vm3698, %v3685, %v3699
  %vm3701 = vcmp.eq.s32.totalorder %v3696, 2
  %v3702 = vxor.u32 %v3685, 2147483648
  %v3703 = vsel %vm3701, %v3702, %v3693
  %v3704 = vsel %vm3697, %v3700, %v3703
  %v3705 = vsel %vm3694, nan, %v3704
  %v3706 = vand.u32 2147483647, %v286
  %vm3707 = vcmp.le.f32.partialorder %v3706, 0.7853982
  %vm3708 = vcmp.lt.s32.totalorder %v286, 0
  %v3709 = vand.u32 %v286, 2139095040
  %v3710 = vshrl.u32 %v3709, 23
  %v3711 = vsub.s32 %v3710, 127
  %v3712 = vand.u32 2147483647, %v286
  %v3713 = vand.u32 %v3712, 8388607
  %v3714 = vor.u32 %v3713, 8388608
  %v3715 = vsub.s32 0, %v3714
  %v3716 = vadd.s32 %v3711, 1
  %vm3717 = vcmp.gt.s32.totalorder %v3716, 0
  %v3718 = vsel %vm3717, %v3716, 0
  %v3719 = vshrl.u32 %v3718, 5
  %v3720 = vand.u32 %v3718, 31
  %v3721 = vsub.s32 32, %v3720
  %v3722 = vshrl.u32 683565275, %v3721
  %v3723 = vshll.u32 683565275, %v3720
  %v3724 = vshrl.u32 2475754826, %v3721
  %v3725 = vor.u32 %v3723, %v3724
  %v3726 = vshll.u32 2475754826, %v3720
  %v3727 = vshrl.u32 2131351028, %v3721
  %v3728 = vor.u32 %v3726, %v3727
  %v3729 = vshll.u32 2131351028, %v3720
  %v3730 = vshrl.u32 2102212464, %v3721
  %v3731 = vor.u32 %v3729, %v3730
  %v3732 = vshll.u32 2102212464, %v3720
  %v3733 = vshrl.u32 920167782, %v3721
  %v3734 = vor.u32 %v3732, %v3733
  %v3735 = vshll.u32 920167782, %v3720
  %v3736 = vshrl.u32 1326507024, %v3721
  %v3737 = vor.u32 %v3735, %v3736
  %vm3738 = vcmp.lt.s32.totalorder %v3719, 1
  %vm3739 = vcmp.lt.s32.totalorder %v3719, 2
  %vm3740 = vcmp.lt.s32.totalorder %v3719, 3
  %vm3741 = vcmp.lt.s32.totalorder %v3719, 4
  %v3742 = vsel %vm3738, %v3722, %v3725
  %v3743 = vsel %vm3741, %v3731, 2102212464
  %v3744 = vsel %vm3740, %v3728, %v3743
  %v3745 = vsel %vm3739, %v3742, %v3744
  %v3746 = vsel %vm3738, %v3725, %v3728
  %v3747 = vsel %vm3741, %v3734, 920167782
  %v3748 = vsel %vm3740, %v3731, %v3747
  %v3749 = vsel %vm3739, %v3746, %v3748
  %v3750 = vsel %vm3738, %v3728, %v3731
  %v3751 = vsel %vm3741, %v3737, 1326507024
  %v3752 = vsel %vm3740, %v3734, %v3751
  %v3753 = vsel %vm3739, %v3750, %v3752
  %v3754 = vshll.u32 %v3714, 8
  %v3755 = vand.u32 %v3754, 65535
  %v3756 = vshrl.u32 %v3754, 16
  %v3757 = vand.u32 %v3753, 65535
  %v3758 = vshrl.u32 %v3753, 16
  %v3759 = vmul.u32 %v3755, %v3757
  %v3760 = vmul.u32 %v3755, %v3758
  %v3761 = vmul.u32 %v3756, %v3757
  %v3762 = vmul.u32 %v3756, %v3758
  %v3763 = vshll.u32 %v3760, 16
  %v3764 = vshrl.u32 %v3760, 16
  %v3765 = vshll.u32 %v3761, 16
  %v3766 = vshrl.u32 %v3761, 16
  %vm3767 = vc.u32 %v3759, %v3763
  %v3768 = vsel %vm3767, 1, 0
  %v3769 = vadd.s32 %v3759, %v3763
  %v3770 = vadd.s32 %v3762, %v3768
  %vm3771 = vc.u32 %v3769, %v3765
  %v3772 = vsel %vm3771, 1, 0
  %v3773 = vadd.s32 %v3769, %v3765
  %v3774 = vadd.s32 %v3770, %v3772
  %v3775 = vadd.s32 %v3774, %v3764
  %v3776 = vadd.s32 %v3775, %v3766
  %v3777 = vand.u32 %v3754, 65535
  %v3778 = vshrl.u32 %v3754, 16
  %v3779 = vand.u32 %v3749, 65535
  %v3780 = vshrl.u32 %v3749, 16
  %v3781 = vmul.u32 %v3777, %v3779
  %v3782 = vmul.u32 %v3777, %v3780
  %v3783 = vmul.u32 %v3778, %v3779
  %v3784 = vmul.u32 %v3778, %v3780
  %v3785 = vshll.u32 %v3782, 16
  %v3786 = vshrl.u32 %v3782, 16
  %v3787 = vshll.u32 %v3783, 16
  %v3788 = vshrl.u32 %v3783, 16
  %vm3789 = vc.u32 %v3781, %v3785
  %v3790 = vsel %vm3789, 1, 0
  %v3791 = vadd.s32 %v3781, %v3785
  %v3792 = vadd.s32 %v3784, %v3790
  %vm3793 = vc.u32 %v3791, %v3787
  %v3794 = vsel %vm3793, 1, 0
  %v3795 = vadd.s32 %v3791, %v3787
  %v3796 = vadd.s32 %v3792, %v3794
  %v3797 = vadd.s32 %v3796, %v3786
  %v3798 = vadd.s32 %v3797, %v3788
  %v3799 = vmul.u32 %v3754, %v3745
  %v3800 = vadd.s32 %v3776, %v3795
  %vm3801 = vc.u32 %v3776, %v3795
  %v3802 = vadd.s32 %v3798, 1
  %v3803 = vsel %vm3801, %v3802, %v3798
  %v3804 = vadd.s32 %v3799, %v3803
  %v3805 = vadd.s32 %v3804, 536870912
  %v3806 = vshrl.u32 %v3805, 30
  %v3807 = vshll.u32 %v3806, 30
  %v3808 = vsub.s32 %v3804, %v3807
  %vm3809 = vcmp.lt.s32.totalorder %v3808, 0
  %v3810 = vsub.s32 0, %v3808
  %v3811 = vsel %vm3809, %v3810, %v3808
  %v3812 = vclz %v3811
  %v3813 = vsub.s32 %v3812, 2
  %vm3814 = vcmp.gt.s32.totalorder 0, %v3813
  %v3815 = vsel %vm3814, 0, %v3813
  %v3816 = vsub.s32 32, %v3815
  %v3817 = vshll.u32 %v3808, %v3815
  %v3818 = vshrl.u32 %v3800, %v3816
  %v3819 = vor.u32 %v3817, %v3818
  %v3820 = vsub.s32 4294967266, %v3815
  %v3821 = vadd.s32 %v3820, 127
  %v3822 = vshll.u32 %v3821, 23
  %v3823 = vor.u32 4788187, %v3822
  %v3824 = vand.u32 2147483647, %v3823
  %v3826 = vcvt.s32.f32 %v3819
  %v3827 = vmul.f32 %v3826, %v3824
  %v3828 = vxor.u32 %v3827, 2147483648
  %v3829 = vsel %vm3708, %v3828, %v3827
  %v3830 = vsub.s32 4, %v3806
  %v3831 = vsel %vm3708, %v3830, %v3806
  %v3832 = vsel %vm3707, %v286, %v3829
  %v3833 = vsel %vm3707, 0, %v3831
  %v3834 = vmul.f32 %v3832, %v3832
  %v3835 = vmul.f32 %v3834, -0.001358992
  %v3836 = vadd.f32 %v3835, 0.041655596
  %v3837 = vmul.f32 %v3834, %v3836
  %v3838 = vadd.f32 %v3837, -0.4999988
  %v3839 = vmul.f32 %v3834, %v3838
  %v3840 = vadd.f32 1.0, %v3839
  %v3841 = vmul.f32 %v3832, %v3832
  %v3842 = vmul.f32 %v3841, -0.00019511016
  %v3843 = vadd.f32 %v3842, 0.008332121
  %v3844 = vmul.f32 %v3841, %v3843
  %v3845 = vadd.f32 %v3844, -0.16666654
  %v3846 = vmul.f32 %v3841, %v3845
  %v3847 = vadd.f32 %v3846, 1.0
  %v3848 = vmul.f32 %v3847, %v3832
  %vm3849 = vweird.f32 %v286
  %v3850 = vadd.s32 %v3833, 3
  %v3851 = vand.u32 %v3850, 3
  %vm3852 = vcmp.lt.s32.totalorder %v3851, 2
  %vm3853 = vcmp.eq.s32.totalorder %v3851, 0
  %v3854 = vxor.u32 %v3848, 2147483648
  %v3855 = vsel %vm3853, %v3840, %v3854
  %vm3856 = vcmp.eq.s32.totalorder %v3851, 2
  %v3857 = vxor.u32 %v3840, 2147483648
  %v3858 = vsel %vm3856, %v3857, %v3848
  %v3859 = vsel %vm3852, %v3855, %v3858
  %v3860 = vsel %vm3849, nan, %v3859
  %v3861 = vand.u32 2147483647, %v287
  %vm3862 = vcmp.le.f32.partialorder %v3861, 0.7853982
  %vm3863 = vcmp.lt.s32.totalorder %v287, 0
  %v3864 = vand.u32 %v287, 2139095040
  %v3865 = vshrl.u32 %v3864, 23
  %v3866 = vsub.s32 %v3865, 127
  %v3867 = vand.u32 2147483647, %v287
  %v3868 = vand.u32 %v3867, 8388607
  %v3869 = vor.u32 %v3868, 8388608
  %v3870 = vsub.s32 0, %v3869
  %v3871 = vadd.s32 %v3866, 1
  %vm3872 = vcmp.gt.s32.totalorder %v3871, 0
  %v3873 = vsel %vm3872, %v3871, 0
  %v3874 = vshrl.u32 %v3873, 5
  %v3875 = vand.u32 %v3873, 31
  %v3876 = vsub.s32 32, %v3875
  %v3877 = vshrl.u32 683565275, %v3876
  %v3878 = vshll.u32 683565275, %v3875
  %v3879 = vshrl.u32 2475754826, %v3876
  %v3880 = vor.u32 %v3878, %v3879
  %v3881 = vshll.u32 2475754826, %v3875
  %v3882 = vshrl.u32 2131351028, %v3876
  %v3883 = vor.u32 %v3881, %v3882
  %v3884 = vshll.u32 2131351028, %v3875
  %v3885 = vshrl.u32 2102212464, %v3876
  %v3886 = vor.u32 %v3884, %v3885
  %v3887 = vshll.u32 2102212464, %v3875
  %v3888 = vshrl.u32 920167782, %v3876
  %v3889 = vor.u32 %v3887, %v3888
  %v3890 = vshll.u32 920167782, %v3875
  %v3891 = vshrl.u32 1326507024, %v3876
  %v3892 = vor.u32 %v3890, %v3891
  %vm3893 = vcmp.lt.s32.totalorder %v3874, 1
  %vm3894 = vcmp.lt.s32.totalorder %v3874, 2
  %vm3895 = vcmp.lt.s32.totalorder %v3874, 3
  %vm3896 = vcmp.lt.s32.totalorder %v3874, 4
  %v3897 = vsel %vm3893, %v3877, %v3880
  %v3898 = vsel %vm3896, %v3886, 2102212464
  %v3899 = vsel %vm3895, %v3883, %v3898
  %v3900 = vsel %vm3894, %v3897, %v3899
  %v3901 = vsel %vm3893, %v3880, %v3883
  %v3902 = vsel %vm3896, %v3889, 920167782
  %v3903 = vsel %vm3895, %v3886, %v3902
  %v3904 = vsel %vm3894, %v3901, %v3903
  %v3905 = vsel %vm3893, %v3883, %v3886
  %v3906 = vsel %vm3896, %v3892, 1326507024
  %v3907 = vsel %vm3895, %v3889, %v3906
  %v3908 = vsel %vm3894, %v3905, %v3907
  %v3909 = vshll.u32 %v3869, 8
  %v3910 = vand.u32 %v3909, 65535
  %v3911 = vshrl.u32 %v3909, 16
  %v3912 = vand.u32 %v3908, 65535
  %v3913 = vshrl.u32 %v3908, 16
  %v3914 = vmul.u32 %v3910, %v3912
  %v3915 = vmul.u32 %v3910, %v3913
  %v3916 = vmul.u32 %v3911, %v3912
  %v3917 = vmul.u32 %v3911, %v3913
  %v3918 = vshll.u32 %v3915, 16
  %v3919 = vshrl.u32 %v3915, 16
  %v3920 = vshll.u32 %v3916, 16
  %v3921 = vshrl.u32 %v3916, 16
  %vm3922 = vc.u32 %v3914, %v3918
  %v3923 = vsel %vm3922, 1, 0
  %v3924 = vadd.s32 %v3914, %v3918
  %v3925 = vadd.s32 %v3917, %v3923
  %vm3926 = vc.u32 %v3924, %v3920
  %v3927 = vsel %vm3926, 1, 0
  %v3928 = vadd.s32 %v3924, %v3920
  %v3929 = vadd.s32 %v3925, %v3927
  %v3930 = vadd.s32 %v3929, %v3919
  %v3931 = vadd.s32 %v3930, %v3921
  %v3932 = vand.u32 %v3909, 65535
  %v3933 = vshrl.u32 %v3909, 16
  %v3934 = vand.u32 %v3904, 65535
  %v3935 = vshrl.u32 %v3904, 16
  %v3936 = vmul.u32 %v3932, %v3934
  %v3937 = vmul.u32 %v3932, %v3935
  %v3938 = vmul.u32 %v3933, %v3934
  %v3939 = vmul.u32 %v3933, %v3935
  %v3940 = vshll.u32 %v3937, 16
  %v3941 = vshrl.u32 %v3937, 16
  %v3942 = vshll.u32 %v3938, 16
  %v3943 = vshrl.u32 %v3938, 16
  %vm3944 = vc.u32 %v3936, %v3940
  %v3945 = vsel %vm3944, 1, 0
  %v3946 = vadd.s32 %v3936, %v3940
  %v3947 = vadd.s32 %v3939, %v3945
  %vm3948 = vc.u32 %v3946, %v3942
  %v3949 = vsel %vm3948, 1, 0
  %v3950 = vadd.s32 %v3946, %v3942
  %v3951 = vadd.s32 %v3947, %v3949
  %v3952 = vadd.s32 %v3951, %v3941
  %v3953 = vadd.s32 %v3952, %v3943
  %v3954 = vmul.u32 %v3909, %v3900
  %v3955 = vadd.s32 %v3931, %v3950
  %vm3956 = vc.u32 %v3931, %v3950
  %v3957 = vadd.s32 %v3953, 1
  %v3958 = vsel %vm3956, %v3957, %v3953
  %v3959 = vadd.s32 %v3954, %v3958
  %v3960 = vadd.s32 %v3959, 536870912
  %v3961 = vshrl.u32 %v3960, 30
  %v3962 = vshll.u32 %v3961, 30
  %v3963 = vsub.s32 %v3959, %v3962
  %vm3964 = vcmp.lt.s32.totalorder %v3963, 0
  %v3965 = vsub.s32 0, %v3963
  %v3966 = vsel %vm3964, %v3965, %v3963
  %v3967 = vclz %v3966
  %v3968 = vsub.s32 %v3967, 2
  %vm3969 = vcmp.gt.s32.totalorder 0, %v3968
  %v3970 = vsel %vm3969, 0, %v3968
  %v3971 = vsub.s32 32, %v3970
  %v3972 = vshll.u32 %v3963, %v3970
  %v3973 = vshrl.u32 %v3955, %v3971
  %v3974 = vor.u32 %v3972, %v3973
  %v3975 = vsub.s32 4294967266, %v3970
  %v3976 = vadd.s32 %v3975, 127
  %v3977 = vshll.u32 %v3976, 23
  %v3978 = vor.u32 4788187, %v3977
  %v3979 = vand.u32 2147483647, %v3978
  %v3981 = vcvt.s32.f32 %v3974
  %v3982 = vmul.f32 %v3981, %v3979
  %v3983 = vxor.u32 %v3982, 2147483648
  %v3984 = vsel %vm3863, %v3983, %v3982
  %v3985 = vsub.s32 4, %v3961
  %v3986 = vsel %vm3863, %v3985, %v3961
  %v3987 = vsel %vm3862, %v287, %v3984
  %v3988 = vsel %vm3862, 0, %v3986
  %v3989 = vmul.f32 %v3987, %v3987
  %v3990 = vmul.f32 %v3989, -0.001358992
  %v3991 = vadd.f32 %v3990, 0.041655596
  %v3992 = vmul.f32 %v3989, %v3991
  %v3993 = vadd.f32 %v3992, -0.4999988
  %v3994 = vmul.f32 %v3989, %v3993
  %v3995 = vadd.f32 1.0, %v3994
  %v3996 = vmul.f32 %v3987, %v3987
  %v3997 = vmul.f32 %v3996, -0.00019511016
  %v3998 = vadd.f32 %v3997, 0.008332121
  %v3999 = vmul.f32 %v3996, %v3998
  %v4000 = vadd.f32 %v3999, -0.16666654
  %v4001 = vmul.f32 %v3996, %v4000
  %v4002 = vadd.f32 %v4001, 1.0
  %v4003 = vmul.f32 %v4002, %v3987
  %vm4004 = vweird.f32 %v287
  %v4005 = vadd.s32 %v3988, 3
  %v4006 = vand.u32 %v4005, 3
  %vm4007 = vcmp.lt.s32.totalorder %v4006, 2
  %vm4008 = vcmp.eq.s32.totalorder %v4006, 0
  %v4009 = vxor.u32 %v4003, 2147483648
  %v4010 = vsel %vm4008, %v3995, %v4009
  %vm4011 = vcmp.eq.s32.totalorder %v4006, 2
  %v4012 = vxor.u32 %v3995, 2147483648
  %v4013 = vsel %vm4011, %v4012, %v4003
  %v4014 = vsel %vm4007, %v4010, %v4013
  %v4015 = vsel %vm4004, nan, %v4014
  %v4016 = vand.u32 2147483647, %v288
  %vm4017 = vcmp.le.f32.partialorder %v4016, 0.7853982
  %vm4018 = vcmp.lt.s32.totalorder %v288, 0
  %v4019 = vand.u32 %v288, 2139095040
  %v4020 = vshrl.u32 %v4019, 23
  %v4021 = vsub.s32 %v4020, 127
  %v4022 = vand.u32 2147483647, %v288
  %v4023 = vand.u32 %v4022, 8388607
  %v4024 = vor.u32 %v4023, 8388608
  %v4025 = vsub.s32 0, %v4024
  %v4026 = vadd.s32 %v4021, 1
  %vm4027 = vcmp.gt.s32.totalorder %v4026, 0
  %v4028 = vsel %vm4027, %v4026, 0
  %v4029 = vshrl.u32 %v4028, 5
  %v4030 = vand.u32 %v4028, 31
  %v4031 = vsub.s32 32, %v4030
  %v4032 = vshrl.u32 683565275, %v4031
  %v4033 = vshll.u32 683565275, %v4030
  %v4034 = vshrl.u32 2475754826, %v4031
  %v4035 = vor.u32 %v4033, %v4034
  %v4036 = vshll.u32 2475754826, %v4030
  %v4037 = vshrl.u32 2131351028, %v4031
  %v4038 = vor.u32 %v4036, %v4037
  %v4039 = vshll.u32 2131351028, %v4030
  %v4040 = vshrl.u32 2102212464, %v4031
  %v4041 = vor.u32 %v4039, %v4040
  %v4042 = vshll.u32 2102212464, %v4030
  %v4043 = vshrl.u32 920167782, %v4031
  %v4044 = vor.u32 %v4042, %v4043
  %v4045 = vshll.u32 920167782, %v4030
  %v4046 = vshrl.u32 1326507024, %v4031
  %v4047 = vor.u32 %v4045, %v4046
  %vm4048 = vcmp.lt.s32.totalorder %v4029, 1
  %vm4049 = vcmp.lt.s32.totalorder %v4029, 2
  %vm4050 = vcmp.lt.s32.totalorder %v4029, 3
  %vm4051 = vcmp.lt.s32.totalorder %v4029, 4
  %v4052 = vsel %vm4048, %v4032, %v4035
  %v4053 = vsel %vm4051, %v4041, 2102212464
  %v4054 = vsel %vm4050, %v4038, %v4053
  %v4055 = vsel %vm4049, %v4052, %v4054
  %v4056 = vsel %vm4048, %v4035, %v4038
  %v4057 = vsel %vm4051, %v4044, 920167782
  %v4058 = vsel %vm4050, %v4041, %v4057
  %v4059 = vsel %vm4049, %v4056, %v4058
  %v4060 = vsel %vm4048, %v4038, %v4041
  %v4061 = vsel %vm4051, %v4047, 1326507024
  %v4062 = vsel %vm4050, %v4044, %v4061
  %v4063 = vsel %vm4049, %v4060, %v4062
  %v4064 = vshll.u32 %v4024, 8
  %v4065 = vand.u32 %v4064, 65535
  %v4066 = vshrl.u32 %v4064, 16
  %v4067 = vand.u32 %v4063, 65535
  %v4068 = vshrl.u32 %v4063, 16
  %v4069 = vmul.u32 %v4065, %v4067
  %v4070 = vmul.u32 %v4065, %v4068
  %v4071 = vmul.u32 %v4066, %v4067
  %v4072 = vmul.u32 %v4066, %v4068
  %v4073 = vshll.u32 %v4070, 16
  %v4074 = vshrl.u32 %v4070, 16
  %v4075 = vshll.u32 %v4071, 16
  %v4076 = vshrl.u32 %v4071, 16
  %vm4077 = vc.u32 %v4069, %v4073
  %v4078 = vsel %vm4077, 1, 0
  %v4079 = vadd.s32 %v4069, %v4073
  %v4080 = vadd.s32 %v4072, %v4078
  %vm4081 = vc.u32 %v4079, %v4075
  %v4082 = vsel %vm4081, 1, 0
  %v4083 = vadd.s32 %v4079, %v4075
  %v4084 = vadd.s32 %v4080, %v4082
  %v4085 = vadd.s32 %v4084, %v4074
  %v4086 = vadd.s32 %v4085, %v4076
  %v4087 = vand.u32 %v4064, 65535
  %v4088 = vshrl.u32 %v4064, 16
  %v4089 = vand.u32 %v4059, 65535
  %v4090 = vshrl.u32 %v4059, 16
  %v4091 = vmul.u32 %v4087, %v4089
  %v4092 = vmul.u32 %v4087, %v4090
  %v4093 = vmul.u32 %v4088, %v4089
  %v4094 = vmul.u32 %v4088, %v4090
  %v4095 = vshll.u32 %v4092, 16
  %v4096 = vshrl.u32 %v4092, 16
  %v4097 = vshll.u32 %v4093, 16
  %v4098 = vshrl.u32 %v4093, 16
  %vm4099 = vc.u32 %v4091, %v4095
  %v4100 = vsel %vm4099, 1, 0
  %v4101 = vadd.s32 %v4091, %v4095
  %v4102 = vadd.s32 %v4094, %v4100
  %vm4103 = vc.u32 %v4101, %v4097
  %v4104 = vsel %vm4103, 1, 0
  %v4105 = vadd.s32 %v4101, %v4097
  %v4106 = vadd.s32 %v4102, %v4104
  %v4107 = vadd.s32 %v4106, %v4096
  %v4108 = vadd.s32 %v4107, %v4098
  %v4109 = vmul.u32 %v4064, %v4055
  %v4110 = vadd.s32 %v4086, %v4105
  %vm4111 = vc.u32 %v4086, %v4105
  %v4112 = vadd.s32 %v4108, 1
  %v4113 = vsel %vm4111, %v4112, %v4108
  %v4114 = vadd.s32 %v4109, %v4113
  %v4115 = vadd.s32 %v4114, 536870912
  %v4116 = vshrl.u32 %v4115, 30
  %v4117 = vshll.u32 %v4116, 30
  %v4118 = vsub.s32 %v4114, %v4117
  %vm4119 = vcmp.lt.s32.totalorder %v4118, 0
  %v4120 = vsub.s32 0, %v4118
  %v4121 = vsel %vm4119, %v4120, %v4118
  %v4122 = vclz %v4121
  %v4123 = vsub.s32 %v4122, 2
  %vm4124 = vcmp.gt.s32.totalorder 0, %v4123
  %v4125 = vsel %vm4124, 0, %v4123
  %v4126 = vsub.s32 32, %v4125
  %v4127 = vshll.u32 %v4118, %v4125
  %v4128 = vshrl.u32 %v4110, %v4126
  %v4129 = vor.u32 %v4127, %v4128
  %v4130 = vsub.s32 4294967266, %v4125
  %v4131 = vadd.s32 %v4130, 127
  %v4132 = vshll.u32 %v4131, 23
  %v4133 = vor.u32 4788187, %v4132
  %v4134 = vand.u32 2147483647, %v4133
  %v4136 = vcvt.s32.f32 %v4129
  %v4137 = vmul.f32 %v4136, %v4134
  %v4138 = vxor.u32 %v4137, 2147483648
  %v4139 = vsel %vm4018, %v4138, %v4137
  %v4140 = vsub.s32 4, %v4116
  %v4141 = vsel %vm4018, %v4140, %v4116
  %v4142 = vsel %vm4017, %v288, %v4139
  %v4143 = vsel %vm4017, 0, %v4141
  %v4144 = vmul.f32 %v4142, %v4142
  %v4145 = vmul.f32 %v4144, -0.001358992
  %v4146 = vadd.f32 %v4145, 0.041655596
  %v4147 = vmul.f32 %v4144, %v4146
  %v4148 = vadd.f32 %v4147, -0.4999988
  %v4149 = vmul.f32 %v4144, %v4148
  %v4150 = vadd.f32 1.0, %v4149
  %v4151 = vmul.f32 %v4142, %v4142
  %v4152 = vmul.f32 %v4151, -0.00019511016
  %v4153 = vadd.f32 %v4152, 0.008332121
  %v4154 = vmul.f32 %v4151, %v4153
  %v4155 = vadd.f32 %v4154, -0.16666654
  %v4156 = vmul.f32 %v4151, %v4155
  %v4157 = vadd.f32 %v4156, 1.0
  %v4158 = vmul.f32 %v4157, %v4142
  %vm4159 = vweird.f32 %v288
  %v4160 = vadd.s32 %v4143, 3
  %v4161 = vand.u32 %v4160, 3
  %vm4162 = vcmp.lt.s32.totalorder %v4161, 2
  %vm4163 = vcmp.eq.s32.totalorder %v4161, 0
  %v4164 = vxor.u32 %v4158, 2147483648
  %v4165 = vsel %vm4163, %v4150, %v4164
  %vm4166 = vcmp.eq.s32.totalorder %v4161, 2
  %v4167 = vxor.u32 %v4150, 2147483648
  %v4168 = vsel %vm4166, %v4167, %v4158
  %v4169 = vsel %vm4162, %v4165, %v4168
  %v4170 = vsel %vm4159, nan, %v4169
  %v4171 = vand.u32 2147483647, %v289
  %vm4172 = vcmp.le.f32.partialorder %v4171, 0.7853982
  %vm4173 = vcmp.lt.s32.totalorder %v289, 0
  %v4174 = vand.u32 %v289, 2139095040
  %v4175 = vshrl.u32 %v4174, 23
  %v4176 = vsub.s32 %v4175, 127
  %v4177 = vand.u32 2147483647, %v289
  %v4178 = vand.u32 %v4177, 8388607
  %v4179 = vor.u32 %v4178, 8388608
  %v4180 = vsub.s32 0, %v4179
  %v4181 = vadd.s32 %v4176, 1
  %vm4182 = vcmp.gt.s32.totalorder %v4181, 0
  %v4183 = vsel %vm4182, %v4181, 0
  %v4184 = vshrl.u32 %v4183, 5
  %v4185 = vand.u32 %v4183, 31
  %v4186 = vsub.s32 32, %v4185
  %v4187 = vshrl.u32 683565275, %v4186
  %v4188 = vshll.u32 683565275, %v4185
  %v4189 = vshrl.u32 2475754826, %v4186
  %v4190 = vor.u32 %v4188, %v4189
  %v4191 = vshll.u32 2475754826, %v4185
  %v4192 = vshrl.u32 2131351028, %v4186
  %v4193 = vor.u32 %v4191, %v4192
  %v4194 = vshll.u32 2131351028, %v4185
  %v4195 = vshrl.u32 2102212464, %v4186
  %v4196 = vor.u32 %v4194, %v4195
  %v4197 = vshll.u32 2102212464, %v4185
  %v4198 = vshrl.u32 920167782, %v4186
  %v4199 = vor.u32 %v4197, %v4198
  %v4200 = vshll.u32 920167782, %v4185
  %v4201 = vshrl.u32 1326507024, %v4186
  %v4202 = vor.u32 %v4200, %v4201
  %vm4203 = vcmp.lt.s32.totalorder %v4184, 1
  %vm4204 = vcmp.lt.s32.totalorder %v4184, 2
  %vm4205 = vcmp.lt.s32.totalorder %v4184, 3
  %vm4206 = vcmp.lt.s32.totalorder %v4184, 4
  %v4207 = vsel %vm4203, %v4187, %v4190
  %v4208 = vsel %vm4206, %v4196, 2102212464
  %v4209 = vsel %vm4205, %v4193, %v4208
  %v4210 = vsel %vm4204, %v4207, %v4209
  %v4211 = vsel %vm4203, %v4190, %v4193
  %v4212 = vsel %vm4206, %v4199, 920167782
  %v4213 = vsel %vm4205, %v4196, %v4212
  %v4214 = vsel %vm4204, %v4211, %v4213
  %v4215 = vsel %vm4203, %v4193, %v4196
  %v4216 = vsel %vm4206, %v4202, 1326507024
  %v4217 = vsel %vm4205, %v4199, %v4216
  %v4218 = vsel %vm4204, %v4215, %v4217
  %v4219 = vshll.u32 %v4179, 8
  %v4220 = vand.u32 %v4219, 65535
  %v4221 = vshrl.u32 %v4219, 16
  %v4222 = vand.u32 %v4218, 65535
  %v4223 = vshrl.u32 %v4218, 16
  %v4224 = vmul.u32 %v4220, %v4222
  %v4225 = vmul.u32 %v4220, %v4223
  %v4226 = vmul.u32 %v4221, %v4222
  %v4227 = vmul.u32 %v4221, %v4223
  %v4228 = vshll.u32 %v4225, 16
  %v4229 = vshrl.u32 %v4225, 16
  %v4230 = vshll.u32 %v4226, 16
  %v4231 = vshrl.u32 %v4226, 16
  %vm4232 = vc.u32 %v4224, %v4228
  %v4233 = vsel %vm4232, 1, 0
  %v4234 = vadd.s32 %v4224, %v4228
  %v4235 = vadd.s32 %v4227, %v4233
  %vm4236 = vc.u32 %v4234, %v4230
  %v4237 = vsel %vm4236, 1, 0
  %v4238 = vadd.s32 %v4234, %v4230
  %v4239 = vadd.s32 %v4235, %v4237
  %v4240 = vadd.s32 %v4239, %v4229
  %v4241 = vadd.s32 %v4240, %v4231
  %v4242 = vand.u32 %v4219, 65535
  %v4243 = vshrl.u32 %v4219, 16
  %v4244 = vand.u32 %v4214, 65535
  %v4245 = vshrl.u32 %v4214, 16
  %v4246 = vmul.u32 %v4242, %v4244
  %v4247 = vmul.u32 %v4242, %v4245
  %v4248 = vmul.u32 %v4243, %v4244
  %v4249 = vmul.u32 %v4243, %v4245
  %v4250 = vshll.u32 %v4247, 16
  %v4251 = vshrl.u32 %v4247, 16
  %v4252 = vshll.u32 %v4248, 16
  %v4253 = vshrl.u32 %v4248, 16
  %vm4254 = vc.u32 %v4246, %v4250
  %v4255 = vsel %vm4254, 1, 0
  %v4256 = vadd.s32 %v4246, %v4250
  %v4257 = vadd.s32 %v4249, %v4255
  %vm4258 = vc.u32 %v4256, %v4252
  %v4259 = vsel %vm4258, 1, 0
  %v4260 = vadd.s32 %v4256, %v4252
  %v4261 = vadd.s32 %v4257, %v4259
  %v4262 = vadd.s32 %v4261, %v4251
  %v4263 = vadd.s32 %v4262, %v4253
  %v4264 = vmul.u32 %v4219, %v4210
  %v4265 = vadd.s32 %v4241, %v4260
  %vm4266 = vc.u32 %v4241, %v4260
  %v4267 = vadd.s32 %v4263, 1
  %v4268 = vsel %vm4266, %v4267, %v4263
  %v4269 = vadd.s32 %v4264, %v4268
  %v4270 = vadd.s32 %v4269, 536870912
  %v4271 = vshrl.u32 %v4270, 30
  %v4272 = vshll.u32 %v4271, 30
  %v4273 = vsub.s32 %v4269, %v4272
  %vm4274 = vcmp.lt.s32.totalorder %v4273, 0
  %v4275 = vsub.s32 0, %v4273
  %v4276 = vsel %vm4274, %v4275, %v4273
  %v4277 = vclz %v4276
  %v4278 = vsub.s32 %v4277, 2
  %vm4279 = vcmp.gt.s32.totalorder 0, %v4278
  %v4280 = vsel %vm4279, 0, %v4278
  %v4281 = vsub.s32 32, %v4280
  %v4282 = vshll.u32 %v4273, %v4280
  %v4283 = vshrl.u32 %v4265, %v4281
  %v4284 = vor.u32 %v4282, %v4283
  %v4285 = vsub.s32 4294967266, %v4280
  %v4286 = vadd.s32 %v4285, 127
  %v4287 = vshll.u32 %v4286, 23
  %v4288 = vor.u32 4788187, %v4287
  %v4289 = vand.u32 2147483647, %v4288
  %v4291 = vcvt.s32.f32 %v4284
  %v4292 = vmul.f32 %v4291, %v4289
  %v4293 = vxor.u32 %v4292, 2147483648
  %v4294 = vsel %vm4173, %v4293, %v4292
  %v4295 = vsub.s32 4, %v4271
  %v4296 = vsel %vm4173, %v4295, %v4271
  %v4297 = vsel %vm4172, %v289, %v4294
  %v4298 = vsel %vm4172, 0, %v4296
  %v4299 = vmul.f32 %v4297, %v4297
  %v4300 = vmul.f32 %v4299, -0.001358992
  %v4301 = vadd.f32 %v4300, 0.041655596
  %v4302 = vmul.f32 %v4299, %v4301
  %v4303 = vadd.f32 %v4302, -0.4999988
  %v4304 = vmul.f32 %v4299, %v4303
  %v4305 = vadd.f32 1.0, %v4304
  %v4306 = vmul.f32 %v4297, %v4297
  %v4307 = vmul.f32 %v4306, -0.00019511016
  %v4308 = vadd.f32 %v4307, 0.008332121
  %v4309 = vmul.f32 %v4306, %v4308
  %v4310 = vadd.f32 %v4309, -0.16666654
  %v4311 = vmul.f32 %v4306, %v4310
  %v4312 = vadd.f32 %v4311, 1.0
  %v4313 = vmul.f32 %v4312, %v4297
  %vm4314 = vweird.f32 %v289
  %v4315 = vadd.s32 %v4298, 3
  %v4316 = vand.u32 %v4315, 3
  %vm4317 = vcmp.lt.s32.totalorder %v4316, 2
  %vm4318 = vcmp.eq.s32.totalorder %v4316, 0
  %v4319 = vxor.u32 %v4313, 2147483648
  %v4320 = vsel %vm4318, %v4305, %v4319
  %vm4321 = vcmp.eq.s32.totalorder %v4316, 2
  %v4322 = vxor.u32 %v4305, 2147483648
  %v4323 = vsel %vm4321, %v4322, %v4313
  %v4324 = vsel %vm4317, %v4320, %v4323
  %v4325 = vsel %vm4314, nan, %v4324
  %v4326 = vand.u32 2147483647, %v290
  %vm4327 = vcmp.le.f32.partialorder %v4326, 0.7853982
  %vm4328 = vcmp.lt.s32.totalorder %v290, 0
  %v4329 = vand.u32 %v290, 2139095040
  %v4330 = vshrl.u32 %v4329, 23
  %v4331 = vsub.s32 %v4330, 127
  %v4332 = vand.u32 2147483647, %v290
  %v4333 = vand.u32 %v4332, 8388607
  %v4334 = vor.u32 %v4333, 8388608
  %v4335 = vsub.s32 0, %v4334
  %v4336 = vadd.s32 %v4331, 1
  %vm4337 = vcmp.gt.s32.totalorder %v4336, 0
  %v4338 = vsel %vm4337, %v4336, 0
  %v4339 = vshrl.u32 %v4338, 5
  %v4340 = vand.u32 %v4338, 31
  %v4341 = vsub.s32 32, %v4340
  %v4342 = vshrl.u32 683565275, %v4341
  %v4343 = vshll.u32 683565275, %v4340
  %v4344 = vshrl.u32 2475754826, %v4341
  %v4345 = vor.u32 %v4343, %v4344
  %v4346 = vshll.u32 2475754826, %v4340
  %v4347 = vshrl.u32 2131351028, %v4341
  %v4348 = vor.u32 %v4346, %v4347
  %v4349 = vshll.u32 2131351028, %v4340
  %v4350 = vshrl.u32 2102212464, %v4341
  %v4351 = vor.u32 %v4349, %v4350
  %v4352 = vshll.u32 2102212464, %v4340
  %v4353 = vshrl.u32 920167782, %v4341
  %v4354 = vor.u32 %v4352, %v4353
  %v4355 = vshll.u32 920167782, %v4340
  %v4356 = vshrl.u32 1326507024, %v4341
  %v4357 = vor.u32 %v4355, %v4356
  %vm4358 = vcmp.lt.s32.totalorder %v4339, 1
  %vm4359 = vcmp.lt.s32.totalorder %v4339, 2
  %vm4360 = vcmp.lt.s32.totalorder %v4339, 3
  %vm4361 = vcmp.lt.s32.totalorder %v4339, 4
  %v4362 = vsel %vm4358, %v4342, %v4345
  %v4363 = vsel %vm4361, %v4351, 2102212464
  %v4364 = vsel %vm4360, %v4348, %v4363
  %v4365 = vsel %vm4359, %v4362, %v4364
  %v4366 = vsel %vm4358, %v4345, %v4348
  %v4367 = vsel %vm4361, %v4354, 920167782
  %v4368 = vsel %vm4360, %v4351, %v4367
  %v4369 = vsel %vm4359, %v4366, %v4368
  %v4370 = vsel %vm4358, %v4348, %v4351
  %v4371 = vsel %vm4361, %v4357, 1326507024
  %v4372 = vsel %vm4360, %v4354, %v4371
  %v4373 = vsel %vm4359, %v4370, %v4372
  %v4374 = vshll.u32 %v4334, 8
  %v4375 = vand.u32 %v4374, 65535
  %v4376 = vshrl.u32 %v4374, 16
  %v4377 = vand.u32 %v4373, 65535
  %v4378 = vshrl.u32 %v4373, 16
  %v4379 = vmul.u32 %v4375, %v4377
  %v4380 = vmul.u32 %v4375, %v4378
  %v4381 = vmul.u32 %v4376, %v4377
  %v4382 = vmul.u32 %v4376, %v4378
  %v4383 = vshll.u32 %v4380, 16
  %v4384 = vshrl.u32 %v4380, 16
  %v4385 = vshll.u32 %v4381, 16
  %v4386 = vshrl.u32 %v4381, 16
  %vm4387 = vc.u32 %v4379, %v4383
  %v4388 = vsel %vm4387, 1, 0
  %v4389 = vadd.s32 %v4379, %v4383
  %v4390 = vadd.s32 %v4382, %v4388
  %vm4391 = vc.u32 %v4389, %v4385
  %v4392 = vsel %vm4391, 1, 0
  %v4393 = vadd.s32 %v4389, %v4385
  %v4394 = vadd.s32 %v4390, %v4392
  %v4395 = vadd.s32 %v4394, %v4384
  %v4396 = vadd.s32 %v4395, %v4386
  %v4397 = vand.u32 %v4374, 65535
  %v4398 = vshrl.u32 %v4374, 16
  %v4399 = vand.u32 %v4369, 65535
  %v4400 = vshrl.u32 %v4369, 16
  %v4401 = vmul.u32 %v4397, %v4399
  %v4402 = vmul.u32 %v4397, %v4400
  %v4403 = vmul.u32 %v4398, %v4399
  %v4404 = vmul.u32 %v4398, %v4400
  %v4405 = vshll.u32 %v4402, 16
  %v4406 = vshrl.u32 %v4402, 16
  %v4407 = vshll.u32 %v4403, 16
  %v4408 = vshrl.u32 %v4403, 16
  %vm4409 = vc.u32 %v4401, %v4405
  %v4410 = vsel %vm4409, 1, 0
  %v4411 = vadd.s32 %v4401, %v4405
  %v4412 = vadd.s32 %v4404, %v4410
  %vm4413 = vc.u32 %v4411, %v4407
  %v4414 = vsel %vm4413, 1, 0
  %v4415 = vadd.s32 %v4411, %v4407
  %v4416 = vadd.s32 %v4412, %v4414
  %v4417 = vadd.s32 %v4416, %v4406
  %v4418 = vadd.s32 %v4417, %v4408
  %v4419 = vmul.u32 %v4374, %v4365
  %v4420 = vadd.s32 %v4396, %v4415
  %vm4421 = vc.u32 %v4396, %v4415
  %v4422 = vadd.s32 %v4418, 1
  %v4423 = vsel %vm4421, %v4422, %v4418
  %v4424 = vadd.s32 %v4419, %v4423
  %v4425 = vadd.s32 %v4424, 536870912
  %v4426 = vshrl.u32 %v4425, 30
  %v4427 = vshll.u32 %v4426, 30
  %v4428 = vsub.s32 %v4424, %v4427
  %vm4429 = vcmp.lt.s32.totalorder %v4428, 0
  %v4430 = vsub.s32 0, %v4428
  %v4431 = vsel %vm4429, %v4430, %v4428
  %v4432 = vclz %v4431
  %v4433 = vsub.s32 %v4432, 2
  %vm4434 = vcmp.gt.s32.totalorder 0, %v4433
  %v4435 = vsel %vm4434, 0, %v4433
  %v4436 = vsub.s32 32, %v4435
  %v4437 = vshll.u32 %v4428, %v4435
  %v4438 = vshrl.u32 %v4420, %v4436
  %v4439 = vor.u32 %v4437, %v4438
  %v4440 = vsub.s32 4294967266, %v4435
  %v4441 = vadd.s32 %v4440, 127
  %v4442 = vshll.u32 %v4441, 23
  %v4443 = vor.u32 4788187, %v4442
  %v4444 = vand.u32 2147483647, %v4443
  %v4446 = vcvt.s32.f32 %v4439
  %v4447 = vmul.f32 %v4446, %v4444
  %v4448 = vxor.u32 %v4447, 2147483648
  %v4449 = vsel %vm4328, %v4448, %v4447
  %v4450 = vsub.s32 4, %v4426
  %v4451 = vsel %vm4328, %v4450, %v4426
  %v4452 = vsel %vm4327, %v290, %v4449
  %v4453 = vsel %vm4327, 0, %v4451
  %v4454 = vmul.f32 %v4452, %v4452
  %v4455 = vmul.f32 %v4454, -0.001358992
  %v4456 = vadd.f32 %v4455, 0.041655596
  %v4457 = vmul.f32 %v4454, %v4456
  %v4458 = vadd.f32 %v4457, -0.4999988
  %v4459 = vmul.f32 %v4454, %v4458
  %v4460 = vadd.f32 1.0, %v4459
  %v4461 = vmul.f32 %v4452, %v4452
  %v4462 = vmul.f32 %v4461, -0.00019511016
  %v4463 = vadd.f32 %v4462, 0.008332121
  %v4464 = vmul.f32 %v4461, %v4463
  %v4465 = vadd.f32 %v4464, -0.16666654
  %v4466 = vmul.f32 %v4461, %v4465
  %v4467 = vadd.f32 %v4466, 1.0
  %v4468 = vmul.f32 %v4467, %v4452
  %vm4469 = vweird.f32 %v290
  %v4470 = vadd.s32 %v4453, 3
  %v4471 = vand.u32 %v4470, 3
  %vm4472 = vcmp.lt.s32.totalorder %v4471, 2
  %vm4473 = vcmp.eq.s32.totalorder %v4471, 0
  %v4474 = vxor.u32 %v4468, 2147483648
  %v4475 = vsel %vm4473, %v4460, %v4474
  %vm4476 = vcmp.eq.s32.totalorder %v4471, 2
  %v4477 = vxor.u32 %v4460, 2147483648
  %v4478 = vsel %vm4476, %v4477, %v4468
  %v4479 = vsel %vm4472, %v4475, %v4478
  %v4480 = vsel %vm4469, nan, %v4479
  %v4481 = vand.u32 2147483647, %v291
  %vm4482 = vcmp.le.f32.partialorder %v4481, 0.7853982
  %vm4483 = vcmp.lt.s32.totalorder %v291, 0
  %v4484 = vand.u32 %v291, 2139095040
  %v4485 = vshrl.u32 %v4484, 23
  %v4486 = vsub.s32 %v4485, 127
  %v4487 = vand.u32 2147483647, %v291
  %v4488 = vand.u32 %v4487, 8388607
  %v4489 = vor.u32 %v4488, 8388608
  %v4490 = vsub.s32 0, %v4489
  %v4491 = vadd.s32 %v4486, 1
  %vm4492 = vcmp.gt.s32.totalorder %v4491, 0
  %v4493 = vsel %vm4492, %v4491, 0
  %v4494 = vshrl.u32 %v4493, 5
  %v4495 = vand.u32 %v4493, 31
  %v4496 = vsub.s32 32, %v4495
  %v4497 = vshrl.u32 683565275, %v4496
  %v4498 = vshll.u32 683565275, %v4495
  %v4499 = vshrl.u32 2475754826, %v4496
  %v4500 = vor.u32 %v4498, %v4499
  %v4501 = vshll.u32 2475754826, %v4495
  %v4502 = vshrl.u32 2131351028, %v4496
  %v4503 = vor.u32 %v4501, %v4502
  %v4504 = vshll.u32 2131351028, %v4495
  %v4505 = vshrl.u32 2102212464, %v4496
  %v4506 = vor.u32 %v4504, %v4505
  %v4507 = vshll.u32 2102212464, %v4495
  %v4508 = vshrl.u32 920167782, %v4496
  %v4509 = vor.u32 %v4507, %v4508
  %v4510 = vshll.u32 920167782, %v4495
  %v4511 = vshrl.u32 1326507024, %v4496
  %v4512 = vor.u32 %v4510, %v4511
  %vm4513 = vcmp.lt.s32.totalorder %v4494, 1
  %vm4514 = vcmp.lt.s32.totalorder %v4494, 2
  %vm4515 = vcmp.lt.s32.totalorder %v4494, 3
  %vm4516 = vcmp.lt.s32.totalorder %v4494, 4
  %v4517 = vsel %vm4513, %v4497, %v4500
  %v4518 = vsel %vm4516, %v4506, 2102212464
  %v4519 = vsel %vm4515, %v4503, %v4518
  %v4520 = vsel %vm4514, %v4517, %v4519
  %v4521 = vsel %vm4513, %v4500, %v4503
  %v4522 = vsel %vm4516, %v4509, 920167782
  %v4523 = vsel %vm4515, %v4506, %v4522
  %v4524 = vsel %vm4514, %v4521, %v4523
  %v4525 = vsel %vm4513, %v4503, %v4506
  %v4526 = vsel %vm4516, %v4512, 1326507024
  %v4527 = vsel %vm4515, %v4509, %v4526
  %v4528 = vsel %vm4514, %v4525, %v4527
  %v4529 = vshll.u32 %v4489, 8
  %v4530 = vand.u32 %v4529, 65535
  %v4531 = vshrl.u32 %v4529, 16
  %v4532 = vand.u32 %v4528, 65535
  %v4533 = vshrl.u32 %v4528, 16
  %v4534 = vmul.u32 %v4530, %v4532
  %v4535 = vmul.u32 %v4530, %v4533
  %v4536 = vmul.u32 %v4531, %v4532
  %v4537 = vmul.u32 %v4531, %v4533
  %v4538 = vshll.u32 %v4535, 16
  %v4539 = vshrl.u32 %v4535, 16
  %v4540 = vshll.u32 %v4536, 16
  %v4541 = vshrl.u32 %v4536, 16
  %vm4542 = vc.u32 %v4534, %v4538
  %v4543 = vsel %vm4542, 1, 0
  %v4544 = vadd.s32 %v4534, %v4538
  %v4545 = vadd.s32 %v4537, %v4543
  %vm4546 = vc.u32 %v4544, %v4540
  %v4547 = vsel %vm4546, 1, 0
  %v4548 = vadd.s32 %v4544, %v4540
  %v4549 = vadd.s32 %v4545, %v4547
  %v4550 = vadd.s32 %v4549, %v4539
  %v4551 = vadd.s32 %v4550, %v4541
  %v4552 = vand.u32 %v4529, 65535
  %v4553 = vshrl.u32 %v4529, 16
  %v4554 = vand.u32 %v4524, 65535
  %v4555 = vshrl.u32 %v4524, 16
  %v4556 = vmul.u32 %v4552, %v4554
  %v4557 = vmul.u32 %v4552, %v4555
  %v4558 = vmul.u32 %v4553, %v4554
  %v4559 = vmul.u32 %v4553, %v4555
  %v4560 = vshll.u32 %v4557, 16
  %v4561 = vshrl.u32 %v4557, 16
  %v4562 = vshll.u32 %v4558, 16
  %v4563 = vshrl.u32 %v4558, 16
  %vm4564 = vc.u32 %v4556, %v4560
  %v4565 = vsel %vm4564, 1, 0
  %v4566 = vadd.s32 %v4556, %v4560
  %v4567 = vadd.s32 %v4559, %v4565
  %vm4568 = vc.u32 %v4566, %v4562
  %v4569 = vsel %vm4568, 1, 0
  %v4570 = vadd.s32 %v4566, %v4562
  %v4571 = vadd.s32 %v4567, %v4569
  %v4572 = vadd.s32 %v4571, %v4561
  %v4573 = vadd.s32 %v4572, %v4563
  %v4574 = vmul.u32 %v4529, %v4520
  %v4575 = vadd.s32 %v4551, %v4570
  %vm4576 = vc.u32 %v4551, %v4570
  %v4577 = vadd.s32 %v4573, 1
  %v4578 = vsel %vm4576, %v4577, %v4573
  %v4579 = vadd.s32 %v4574, %v4578
  %v4580 = vadd.s32 %v4579, 536870912
  %v4581 = vshrl.u32 %v4580, 30
  %v4582 = vshll.u32 %v4581, 30
  %v4583 = vsub.s32 %v4579, %v4582
  %vm4584 = vcmp.lt.s32.totalorder %v4583, 0
  %v4585 = vsub.s32 0, %v4583
  %v4586 = vsel %vm4584, %v4585, %v4583
  %v4587 = vclz %v4586
  %v4588 = vsub.s32 %v4587, 2
  %vm4589 = vcmp.gt.s32.totalorder 0, %v4588
  %v4590 = vsel %vm4589, 0, %v4588
  %v4591 = vsub.s32 32, %v4590
  %v4592 = vshll.u32 %v4583, %v4590
  %v4593 = vshrl.u32 %v4575, %v4591
  %v4594 = vor.u32 %v4592, %v4593
  %v4595 = vsub.s32 4294967266, %v4590
  %v4596 = vadd.s32 %v4595, 127
  %v4597 = vshll.u32 %v4596, 23
  %v4598 = vor.u32 4788187, %v4597
  %v4599 = vand.u32 2147483647, %v4598
  %v4601 = vcvt.s32.f32 %v4594
  %v4602 = vmul.f32 %v4601, %v4599
  %v4603 = vxor.u32 %v4602, 2147483648
  %v4604 = vsel %vm4483, %v4603, %v4602
  %v4605 = vsub.s32 4, %v4581
  %v4606 = vsel %vm4483, %v4605, %v4581
  %v4607 = vsel %vm4482, %v291, %v4604
  %v4608 = vsel %vm4482, 0, %v4606
  %v4609 = vmul.f32 %v4607, %v4607
  %v4610 = vmul.f32 %v4609, -0.001358992
  %v4611 = vadd.f32 %v4610, 0.041655596
  %v4612 = vmul.f32 %v4609, %v4611
  %v4613 = vadd.f32 %v4612, -0.4999988
  %v4614 = vmul.f32 %v4609, %v4613
  %v4615 = vadd.f32 1.0, %v4614
  %v4616 = vmul.f32 %v4607, %v4607
  %v4617 = vmul.f32 %v4616, -0.00019511016
  %v4618 = vadd.f32 %v4617, 0.008332121
  %v4619 = vmul.f32 %v4616, %v4618
  %v4620 = vadd.f32 %v4619, -0.16666654
  %v4621 = vmul.f32 %v4616, %v4620
  %v4622 = vadd.f32 %v4621, 1.0
  %v4623 = vmul.f32 %v4622, %v4607
  %vm4624 = vweird.f32 %v291
  %v4625 = vadd.s32 %v4608, 3
  %v4626 = vand.u32 %v4625, 3
  %vm4627 = vcmp.lt.s32.totalorder %v4626, 2
  %vm4628 = vcmp.eq.s32.totalorder %v4626, 0
  %v4629 = vxor.u32 %v4623, 2147483648
  %v4630 = vsel %vm4628, %v4615, %v4629
  %vm4631 = vcmp.eq.s32.totalorder %v4626, 2
  %v4632 = vxor.u32 %v4615, 2147483648
  %v4633 = vsel %vm4631, %v4632, %v4623
  %v4634 = vsel %vm4627, %v4630, %v4633
  %v4635 = vsel %vm4624, nan, %v4634
  %v4636 = vand.u32 2147483647, %v292
  %vm4637 = vcmp.le.f32.partialorder %v4636, 0.7853982
  %vm4638 = vcmp.lt.s32.totalorder %v292, 0
  %v4639 = vand.u32 %v292, 2139095040
  %v4640 = vshrl.u32 %v4639, 23
  %v4641 = vsub.s32 %v4640, 127
  %v4642 = vand.u32 2147483647, %v292
  %v4643 = vand.u32 %v4642, 8388607
  %v4644 = vor.u32 %v4643, 8388608
  %v4645 = vsub.s32 0, %v4644
  %v4646 = vadd.s32 %v4641, 1
  %vm4647 = vcmp.gt.s32.totalorder %v4646, 0
  %v4648 = vsel %vm4647, %v4646, 0
  %v4649 = vshrl.u32 %v4648, 5
  %v4650 = vand.u32 %v4648, 31
  %v4651 = vsub.s32 32, %v4650
  %v4652 = vshrl.u32 683565275, %v4651
  %v4653 = vshll.u32 683565275, %v4650
  %v4654 = vshrl.u32 2475754826, %v4651
  %v4655 = vor.u32 %v4653, %v4654
  %v4656 = vshll.u32 2475754826, %v4650
  %v4657 = vshrl.u32 2131351028, %v4651
  %v4658 = vor.u32 %v4656, %v4657
  %v4659 = vshll.u32 2131351028, %v4650
  %v4660 = vshrl.u32 2102212464, %v4651
  %v4661 = vor.u32 %v4659, %v4660
  %v4662 = vshll.u32 2102212464, %v4650
  %v4663 = vshrl.u32 920167782, %v4651
  %v4664 = vor.u32 %v4662, %v4663
  %v4665 = vshll.u32 920167782, %v4650
  %v4666 = vshrl.u32 1326507024, %v4651
  %v4667 = vor.u32 %v4665, %v4666
  %vm4668 = vcmp.lt.s32.totalorder %v4649, 1
  %vm4669 = vcmp.lt.s32.totalorder %v4649, 2
  %vm4670 = vcmp.lt.s32.totalorder %v4649, 3
  %vm4671 = vcmp.lt.s32.totalorder %v4649, 4
  %v4672 = vsel %vm4668, %v4652, %v4655
  %v4673 = vsel %vm4671, %v4661, 2102212464
  %v4674 = vsel %vm4670, %v4658, %v4673
  %v4675 = vsel %vm4669, %v4672, %v4674
  %v4676 = vsel %vm4668, %v4655, %v4658
  %v4677 = vsel %vm4671, %v4664, 920167782
  %v4678 = vsel %vm4670, %v4661, %v4677
  %v4679 = vsel %vm4669, %v4676, %v4678
  %v4680 = vsel %vm4668, %v4658, %v4661
  %v4681 = vsel %vm4671, %v4667, 1326507024
  %v4682 = vsel %vm4670, %v4664, %v4681
  %v4683 = vsel %vm4669, %v4680, %v4682
  %v4684 = vshll.u32 %v4644, 8
  %v4685 = vand.u32 %v4684, 65535
  %v4686 = vshrl.u32 %v4684, 16
  %v4687 = vand.u32 %v4683, 65535
  %v4688 = vshrl.u32 %v4683, 16
  %v4689 = vmul.u32 %v4685, %v4687
  %v4690 = vmul.u32 %v4685, %v4688
  %v4691 = vmul.u32 %v4686, %v4687
  %v4692 = vmul.u32 %v4686, %v4688
  %v4693 = vshll.u32 %v4690, 16
  %v4694 = vshrl.u32 %v4690, 16
  %v4695 = vshll.u32 %v4691, 16
  %v4696 = vshrl.u32 %v4691, 16
  %vm4697 = vc.u32 %v4689, %v4693
  %v4698 = vsel %vm4697, 1, 0
  %v4699 = vadd.s32 %v4689, %v4693
  %v4700 = vadd.s32 %v4692, %v4698
  %vm4701 = vc.u32 %v4699, %v4695
  %v4702 = vsel %vm4701, 1, 0
  %v4703 = vadd.s32 %v4699, %v4695
  %v4704 = vadd.s32 %v4700, %v4702
  %v4705 = vadd.s32 %v4704, %v4694
  %v4706 = vadd.s32 %v4705, %v4696
  %v4707 = vand.u32 %v4684, 65535
  %v4708 = vshrl.u32 %v4684, 16
  %v4709 = vand.u32 %v4679, 65535
  %v4710 = vshrl.u32 %v4679, 16
  %v4711 = vmul.u32 %v4707, %v4709
  %v4712 = vmul.u32 %v4707, %v4710
  %v4713 = vmul.u32 %v4708, %v4709
  %v4714 = vmul.u32 %v4708, %v4710
  %v4715 = vshll.u32 %v4712, 16
  %v4716 = vshrl.u32 %v4712, 16
  %v4717 = vshll.u32 %v4713, 16
  %v4718 = vshrl.u32 %v4713, 16
  %vm4719 = vc.u32 %v4711, %v4715
  %v4720 = vsel %vm4719, 1, 0
  %v4721 = vadd.s32 %v4711, %v4715
  %v4722 = vadd.s32 %v4714, %v4720
  %vm4723 = vc.u32 %v4721, %v4717
  %v4724 = vsel %vm4723, 1, 0
  %v4725 = vadd.s32 %v4721, %v4717
  %v4726 = vadd.s32 %v4722, %v4724
  %v4727 = vadd.s32 %v4726, %v4716
  %v4728 = vadd.s32 %v4727, %v4718
  %v4729 = vmul.u32 %v4684, %v4675
  %v4730 = vadd.s32 %v4706, %v4725
  %vm4731 = vc.u32 %v4706, %v4725
  %v4732 = vadd.s32 %v4728, 1
  %v4733 = vsel %vm4731, %v4732, %v4728
  %v4734 = vadd.s32 %v4729, %v4733
  %v4735 = vadd.s32 %v4734, 536870912
  %v4736 = vshrl.u32 %v4735, 30
  %v4737 = vshll.u32 %v4736, 30
  %v4738 = vsub.s32 %v4734, %v4737
  %vm4739 = vcmp.lt.s32.totalorder %v4738, 0
  %v4740 = vsub.s32 0, %v4738
  %v4741 = vsel %vm4739, %v4740, %v4738
  %v4742 = vclz %v4741
  %v4743 = vsub.s32 %v4742, 2
  %vm4744 = vcmp.gt.s32.totalorder 0, %v4743
  %v4745 = vsel %vm4744, 0, %v4743
  %v4746 = vsub.s32 32, %v4745
  %v4747 = vshll.u32 %v4738, %v4745
  %v4748 = vshrl.u32 %v4730, %v4746
  %v4749 = vor.u32 %v4747, %v4748
  %v4750 = vsub.s32 4294967266, %v4745
  %v4751 = vadd.s32 %v4750, 127
  %v4752 = vshll.u32 %v4751, 23
  %v4753 = vor.u32 4788187, %v4752
  %v4754 = vand.u32 2147483647, %v4753
  %v4756 = vcvt.s32.f32 %v4749
  %v4757 = vmul.f32 %v4756, %v4754
  %v4758 = vxor.u32 %v4757, 2147483648
  %v4759 = vsel %vm4638, %v4758, %v4757
  %v4760 = vsub.s32 4, %v4736
  %v4761 = vsel %vm4638, %v4760, %v4736
  %v4762 = vsel %vm4637, %v292, %v4759
  %v4763 = vsel %vm4637, 0, %v4761
  %v4764 = vmul.f32 %v4762, %v4762
  %v4765 = vmul.f32 %v4764, -0.001358992
  %v4766 = vadd.f32 %v4765, 0.041655596
  %v4767 = vmul.f32 %v4764, %v4766
  %v4768 = vadd.f32 %v4767, -0.4999988
  %v4769 = vmul.f32 %v4764, %v4768
  %v4770 = vadd.f32 1.0, %v4769
  %v4771 = vmul.f32 %v4762, %v4762
  %v4772 = vmul.f32 %v4771, -0.00019511016
  %v4773 = vadd.f32 %v4772, 0.008332121
  %v4774 = vmul.f32 %v4771, %v4773
  %v4775 = vadd.f32 %v4774, -0.16666654
  %v4776 = vmul.f32 %v4771, %v4775
  %v4777 = vadd.f32 %v4776, 1.0
  %v4778 = vmul.f32 %v4777, %v4762
  %vm4779 = vweird.f32 %v292
  %v4780 = vadd.s32 %v4763, 3
  %v4781 = vand.u32 %v4780, 3
  %vm4782 = vcmp.lt.s32.totalorder %v4781, 2
  %vm4783 = vcmp.eq.s32.totalorder %v4781, 0
  %v4784 = vxor.u32 %v4778, 2147483648
  %v4785 = vsel %vm4783, %v4770, %v4784
  %vm4786 = vcmp.eq.s32.totalorder %v4781, 2
  %v4787 = vxor.u32 %v4770, 2147483648
  %v4788 = vsel %vm4786, %v4787, %v4778
  %v4789 = vsel %vm4782, %v4785, %v4788
  %v4790 = vsel %vm4779, nan, %v4789
  %v4791 = vand.u32 2147483647, %v293
  %vm4792 = vcmp.le.f32.partialorder %v4791, 0.7853982
  %vm4793 = vcmp.lt.s32.totalorder %v293, 0
  %v4794 = vand.u32 %v293, 2139095040
  %v4795 = vshrl.u32 %v4794, 23
  %v4796 = vsub.s32 %v4795, 127
  %v4797 = vand.u32 2147483647, %v293
  %v4798 = vand.u32 %v4797, 8388607
  %v4799 = vor.u32 %v4798, 8388608
  %v4800 = vsub.s32 0, %v4799
  %v4801 = vadd.s32 %v4796, 1
  %vm4802 = vcmp.gt.s32.totalorder %v4801, 0
  %v4803 = vsel %vm4802, %v4801, 0
  %v4804 = vshrl.u32 %v4803, 5
  %v4805 = vand.u32 %v4803, 31
  %v4806 = vsub.s32 32, %v4805
  %v4807 = vshrl.u32 683565275, %v4806
  %v4808 = vshll.u32 683565275, %v4805
  %v4809 = vshrl.u32 2475754826, %v4806
  %v4810 = vor.u32 %v4808, %v4809
  %v4811 = vshll.u32 2475754826, %v4805
  %v4812 = vshrl.u32 2131351028, %v4806
  %v4813 = vor.u32 %v4811, %v4812
  %v4814 = vshll.u32 2131351028, %v4805
  %v4815 = vshrl.u32 2102212464, %v4806
  %v4816 = vor.u32 %v4814, %v4815
  %v4817 = vshll.u32 2102212464, %v4805
  %v4818 = vshrl.u32 920167782, %v4806
  %v4819 = vor.u32 %v4817, %v4818
  %v4820 = vshll.u32 920167782, %v4805
  %v4821 = vshrl.u32 1326507024, %v4806
  %v4822 = vor.u32 %v4820, %v4821
  %vm4823 = vcmp.lt.s32.totalorder %v4804, 1
  %vm4824 = vcmp.lt.s32.totalorder %v4804, 2
  %vm4825 = vcmp.lt.s32.totalorder %v4804, 3
  %vm4826 = vcmp.lt.s32.totalorder %v4804, 4
  %v4827 = vsel %vm4823, %v4807, %v4810
  %v4828 = vsel %vm4826, %v4816, 2102212464
  %v4829 = vsel %vm4825, %v4813, %v4828
  %v4830 = vsel %vm4824, %v4827, %v4829
  %v4831 = vsel %vm4823, %v4810, %v4813
  %v4832 = vsel %vm4826, %v4819, 920167782
  %v4833 = vsel %vm4825, %v4816, %v4832
  %v4834 = vsel %vm4824, %v4831, %v4833
  %v4835 = vsel %vm4823, %v4813, %v4816
  %v4836 = vsel %vm4826, %v4822, 1326507024
  %v4837 = vsel %vm4825, %v4819, %v4836
  %v4838 = vsel %vm4824, %v4835, %v4837
  %v4839 = vshll.u32 %v4799, 8
  %v4840 = vand.u32 %v4839, 65535
  %v4841 = vshrl.u32 %v4839, 16
  %v4842 = vand.u32 %v4838, 65535
  %v4843 = vshrl.u32 %v4838, 16
  %v4844 = vmul.u32 %v4840, %v4842
  %v4845 = vmul.u32 %v4840, %v4843
  %v4846 = vmul.u32 %v4841, %v4842
  %v4847 = vmul.u32 %v4841, %v4843
  %v4848 = vshll.u32 %v4845, 16
  %v4849 = vshrl.u32 %v4845, 16
  %v4850 = vshll.u32 %v4846, 16
  %v4851 = vshrl.u32 %v4846, 16
  %vm4852 = vc.u32 %v4844, %v4848
  %v4853 = vsel %vm4852, 1, 0
  %v4854 = vadd.s32 %v4844, %v4848
  %v4855 = vadd.s32 %v4847, %v4853
  %vm4856 = vc.u32 %v4854, %v4850
  %v4857 = vsel %vm4856, 1, 0
  %v4858 = vadd.s32 %v4854, %v4850
  %v4859 = vadd.s32 %v4855, %v4857
  %v4860 = vadd.s32 %v4859, %v4849
  %v4861 = vadd.s32 %v4860, %v4851
  %v4862 = vand.u32 %v4839, 65535
  %v4863 = vshrl.u32 %v4839, 16
  %v4864 = vand.u32 %v4834, 65535
  %v4865 = vshrl.u32 %v4834, 16
  %v4866 = vmul.u32 %v4862, %v4864
  %v4867 = vmul.u32 %v4862, %v4865
  %v4868 = vmul.u32 %v4863, %v4864
  %v4869 = vmul.u32 %v4863, %v4865
  %v4870 = vshll.u32 %v4867, 16
  %v4871 = vshrl.u32 %v4867, 16
  %v4872 = vshll.u32 %v4868, 16
  %v4873 = vshrl.u32 %v4868, 16
  %vm4874 = vc.u32 %v4866, %v4870
  %v4875 = vsel %vm4874, 1, 0
  %v4876 = vadd.s32 %v4866, %v4870
  %v4877 = vadd.s32 %v4869, %v4875
  %vm4878 = vc.u32 %v4876, %v4872
  %v4879 = vsel %vm4878, 1, 0
  %v4880 = vadd.s32 %v4876, %v4872
  %v4881 = vadd.s32 %v4877, %v4879
  %v4882 = vadd.s32 %v4881, %v4871
  %v4883 = vadd.s32 %v4882, %v4873
  %v4884 = vmul.u32 %v4839, %v4830
  %v4885 = vadd.s32 %v4861, %v4880
  %vm4886 = vc.u32 %v4861, %v4880
  %v4887 = vadd.s32 %v4883, 1
  %v4888 = vsel %vm4886, %v4887, %v4883
  %v4889 = vadd.s32 %v4884, %v4888
  %v4890 = vadd.s32 %v4889, 536870912
  %v4891 = vshrl.u32 %v4890, 30
  %v4892 = vshll.u32 %v4891, 30
  %v4893 = vsub.s32 %v4889, %v4892
  %vm4894 = vcmp.lt.s32.totalorder %v4893, 0
  %v4895 = vsub.s32 0, %v4893
  %v4896 = vsel %vm4894, %v4895, %v4893
  %v4897 = vclz %v4896
  %v4898 = vsub.s32 %v4897, 2
  %vm4899 = vcmp.gt.s32.totalorder 0, %v4898
  %v4900 = vsel %vm4899, 0, %v4898
  %v4901 = vsub.s32 32, %v4900
  %v4902 = vshll.u32 %v4893, %v4900
  %v4903 = vshrl.u32 %v4885, %v4901
  %v4904 = vor.u32 %v4902, %v4903
  %v4905 = vsub.s32 4294967266, %v4900
  %v4906 = vadd.s32 %v4905, 127
  %v4907 = vshll.u32 %v4906, 23
  %v4908 = vor.u32 4788187, %v4907
  %v4909 = vand.u32 2147483647, %v4908
  %v4911 = vcvt.s32.f32 %v4904
  %v4912 = vmul.f32 %v4911, %v4909
  %v4913 = vxor.u32 %v4912, 2147483648
  %v4914 = vsel %vm4793, %v4913, %v4912
  %v4915 = vsub.s32 4, %v4891
  %v4916 = vsel %vm4793, %v4915, %v4891
  %v4917 = vsel %vm4792, %v293, %v4914
  %v4918 = vsel %vm4792, 0, %v4916
  %v4919 = vmul.f32 %v4917, %v4917
  %v4920 = vmul.f32 %v4919, -0.001358992
  %v4921 = vadd.f32 %v4920, 0.041655596
  %v4922 = vmul.f32 %v4919, %v4921
  %v4923 = vadd.f32 %v4922, -0.4999988
  %v4924 = vmul.f32 %v4919, %v4923
  %v4925 = vadd.f32 1.0, %v4924
  %v4926 = vmul.f32 %v4917, %v4917
  %v4927 = vmul.f32 %v4926, -0.00019511016
  %v4928 = vadd.f32 %v4927, 0.008332121
  %v4929 = vmul.f32 %v4926, %v4928
  %v4930 = vadd.f32 %v4929, -0.16666654
  %v4931 = vmul.f32 %v4926, %v4930
  %v4932 = vadd.f32 %v4931, 1.0
  %v4933 = vmul.f32 %v4932, %v4917
  %vm4934 = vweird.f32 %v293
  %v4935 = vadd.s32 %v4918, 3
  %v4936 = vand.u32 %v4935, 3
  %vm4937 = vcmp.lt.s32.totalorder %v4936, 2
  %vm4938 = vcmp.eq.s32.totalorder %v4936, 0
  %v4939 = vxor.u32 %v4933, 2147483648
  %v4940 = vsel %vm4938, %v4925, %v4939
  %vm4941 = vcmp.eq.s32.totalorder %v4936, 2
  %v4942 = vxor.u32 %v4925, 2147483648
  %v4943 = vsel %vm4941, %v4942, %v4933
  %v4944 = vsel %vm4937, %v4940, %v4943
  %v4945 = vsel %vm4934, nan, %v4944
  %v4946 = vand.u32 2147483647, %v294
  %vm4947 = vcmp.le.f32.partialorder %v4946, 0.7853982
  %vm4948 = vcmp.lt.s32.totalorder %v294, 0
  %v4949 = vand.u32 %v294, 2139095040
  %v4950 = vshrl.u32 %v4949, 23
  %v4951 = vsub.s32 %v4950, 127
  %v4952 = vand.u32 2147483647, %v294
  %v4953 = vand.u32 %v4952, 8388607
  %v4954 = vor.u32 %v4953, 8388608
  %v4955 = vsub.s32 0, %v4954
  %v4956 = vadd.s32 %v4951, 1
  %vm4957 = vcmp.gt.s32.totalorder %v4956, 0
  %v4958 = vsel %vm4957, %v4956, 0
  %v4959 = vshrl.u32 %v4958, 5
  %v4960 = vand.u32 %v4958, 31
  %v4961 = vsub.s32 32, %v4960
  %v4962 = vshrl.u32 683565275, %v4961
  %v4963 = vshll.u32 683565275, %v4960
  %v4964 = vshrl.u32 2475754826, %v4961
  %v4965 = vor.u32 %v4963, %v4964
  %v4966 = vshll.u32 2475754826, %v4960
  %v4967 = vshrl.u32 2131351028, %v4961
  %v4968 = vor.u32 %v4966, %v4967
  %v4969 = vshll.u32 2131351028, %v4960
  %v4970 = vshrl.u32 2102212464, %v4961
  %v4971 = vor.u32 %v4969, %v4970
  %v4972 = vshll.u32 2102212464, %v4960
  %v4973 = vshrl.u32 920167782, %v4961
  %v4974 = vor.u32 %v4972, %v4973
  %v4975 = vshll.u32 920167782, %v4960
  %v4976 = vshrl.u32 1326507024, %v4961
  %v4977 = vor.u32 %v4975, %v4976
  %vm4978 = vcmp.lt.s32.totalorder %v4959, 1
  %vm4979 = vcmp.lt.s32.totalorder %v4959, 2
  %vm4980 = vcmp.lt.s32.totalorder %v4959, 3
  %vm4981 = vcmp.lt.s32.totalorder %v4959, 4
  %v4982 = vsel %vm4978, %v4962, %v4965
  %v4983 = vsel %vm4981, %v4971, 2102212464
  %v4984 = vsel %vm4980, %v4968, %v4983
  %v4985 = vsel %vm4979, %v4982, %v4984
  %v4986 = vsel %vm4978, %v4965, %v4968
  %v4987 = vsel %vm4981, %v4974, 920167782
  %v4988 = vsel %vm4980, %v4971, %v4987
  %v4989 = vsel %vm4979, %v4986, %v4988
  %v4990 = vsel %vm4978, %v4968, %v4971
  %v4991 = vsel %vm4981, %v4977, 1326507024
  %v4992 = vsel %vm4980, %v4974, %v4991
  %v4993 = vsel %vm4979, %v4990, %v4992
  %v4994 = vshll.u32 %v4954, 8
  %v4995 = vand.u32 %v4994, 65535
  %v4996 = vshrl.u32 %v4994, 16
  %v4997 = vand.u32 %v4993, 65535
  %v4998 = vshrl.u32 %v4993, 16
  %v4999 = vmul.u32 %v4995, %v4997
  %v5000 = vmul.u32 %v4995, %v4998
  %v5001 = vmul.u32 %v4996, %v4997
  %v5002 = vmul.u32 %v4996, %v4998
  %v5003 = vshll.u32 %v5000, 16
  %v5004 = vshrl.u32 %v5000, 16
  %v5005 = vshll.u32 %v5001, 16
  %v5006 = vshrl.u32 %v5001, 16
  %vm5007 = vc.u32 %v4999, %v5003
  %v5008 = vsel %vm5007, 1, 0
  %v5009 = vadd.s32 %v4999, %v5003
  %v5010 = vadd.s32 %v5002, %v5008
  %vm5011 = vc.u32 %v5009, %v5005
  %v5012 = vsel %vm5011, 1, 0
  %v5013 = vadd.s32 %v5009, %v5005
  %v5014 = vadd.s32 %v5010, %v5012
  %v5015 = vadd.s32 %v5014, %v5004
  %v5016 = vadd.s32 %v5015, %v5006
  %v5017 = vand.u32 %v4994, 65535
  %v5018 = vshrl.u32 %v4994, 16
  %v5019 = vand.u32 %v4989, 65535
  %v5020 = vshrl.u32 %v4989, 16
  %v5021 = vmul.u32 %v5017, %v5019
  %v5022 = vmul.u32 %v5017, %v5020
  %v5023 = vmul.u32 %v5018, %v5019
  %v5024 = vmul.u32 %v5018, %v5020
  %v5025 = vshll.u32 %v5022, 16
  %v5026 = vshrl.u32 %v5022, 16
  %v5027 = vshll.u32 %v5023, 16
  %v5028 = vshrl.u32 %v5023, 16
  %vm5029 = vc.u32 %v5021, %v5025
  %v5030 = vsel %vm5029, 1, 0
  %v5031 = vadd.s32 %v5021, %v5025
  %v5032 = vadd.s32 %v5024, %v5030
  %vm5033 = vc.u32 %v5031, %v5027
  %v5034 = vsel %vm5033, 1, 0
  %v5035 = vadd.s32 %v5031, %v5027
  %v5036 = vadd.s32 %v5032, %v5034
  %v5037 = vadd.s32 %v5036, %v5026
  %v5038 = vadd.s32 %v5037, %v5028
  %v5039 = vmul.u32 %v4994, %v4985
  %v5040 = vadd.s32 %v5016, %v5035
  %vm5041 = vc.u32 %v5016, %v5035
  %v5042 = vadd.s32 %v5038, 1
  %v5043 = vsel %vm5041, %v5042, %v5038
  %v5044 = vadd.s32 %v5039, %v5043
  %v5045 = vadd.s32 %v5044, 536870912
  %v5046 = vshrl.u32 %v5045, 30
  %v5047 = vshll.u32 %v5046, 30
  %v5048 = vsub.s32 %v5044, %v5047
  %vm5049 = vcmp.lt.s32.totalorder %v5048, 0
  %v5050 = vsub.s32 0, %v5048
  %v5051 = vsel %vm5049, %v5050, %v5048
  %v5052 = vclz %v5051
  %v5053 = vsub.s32 %v5052, 2
  %vm5054 = vcmp.gt.s32.totalorder 0, %v5053
  %v5055 = vsel %vm5054, 0, %v5053
  %v5056 = vsub.s32 32, %v5055
  %v5057 = vshll.u32 %v5048, %v5055
  %v5058 = vshrl.u32 %v5040, %v5056
  %v5059 = vor.u32 %v5057, %v5058
  %v5060 = vsub.s32 4294967266, %v5055
  %v5061 = vadd.s32 %v5060, 127
  %v5062 = vshll.u32 %v5061, 23
  %v5063 = vor.u32 4788187, %v5062
  %v5064 = vand.u32 2147483647, %v5063
  %v5066 = vcvt.s32.f32 %v5059
  %v5067 = vmul.f32 %v5066, %v5064
  %v5068 = vxor.u32 %v5067, 2147483648
  %v5069 = vsel %vm4948, %v5068, %v5067
  %v5070 = vsub.s32 4, %v5046
  %v5071 = vsel %vm4948, %v5070, %v5046
  %v5072 = vsel %vm4947, %v294, %v5069
  %v5073 = vsel %vm4947, 0, %v5071
  %v5074 = vmul.f32 %v5072, %v5072
  %v5075 = vmul.f32 %v5074, -0.001358992
  %v5076 = vadd.f32 %v5075, 0.041655596
  %v5077 = vmul.f32 %v5074, %v5076
  %v5078 = vadd.f32 %v5077, -0.4999988
  %v5079 = vmul.f32 %v5074, %v5078
  %v5080 = vadd.f32 1.0, %v5079
  %v5081 = vmul.f32 %v5072, %v5072
  %v5082 = vmul.f32 %v5081, -0.00019511016
  %v5083 = vadd.f32 %v5082, 0.008332121
  %v5084 = vmul.f32 %v5081, %v5083
  %v5085 = vadd.f32 %v5084, -0.16666654
  %v5086 = vmul.f32 %v5081, %v5085
  %v5087 = vadd.f32 %v5086, 1.0
  %v5088 = vmul.f32 %v5087, %v5072
  %vm5089 = vweird.f32 %v294
  %v5090 = vadd.s32 %v5073, 3
  %v5091 = vand.u32 %v5090, 3
  %vm5092 = vcmp.lt.s32.totalorder %v5091, 2
  %vm5093 = vcmp.eq.s32.totalorder %v5091, 0
  %v5094 = vxor.u32 %v5088, 2147483648
  %v5095 = vsel %vm5093, %v5080, %v5094
  %vm5096 = vcmp.eq.s32.totalorder %v5091, 2
  %v5097 = vxor.u32 %v5080, 2147483648
  %v5098 = vsel %vm5096, %v5097, %v5088
  %v5099 = vsel %vm5092, %v5095, %v5098
  %v5100 = vsel %vm5089, nan, %v5099
  %v5101 = vand.u32 2147483647, %v295
  %vm5102 = vcmp.le.f32.partialorder %v5101, 0.7853982
  %vm5103 = vcmp.lt.s32.totalorder %v295, 0
  %v5104 = vand.u32 %v295, 2139095040
  %v5105 = vshrl.u32 %v5104, 23
  %v5106 = vsub.s32 %v5105, 127
  %v5107 = vand.u32 2147483647, %v295
  %v5108 = vand.u32 %v5107, 8388607
  %v5109 = vor.u32 %v5108, 8388608
  %v5110 = vsub.s32 0, %v5109
  %v5111 = vadd.s32 %v5106, 1
  %vm5112 = vcmp.gt.s32.totalorder %v5111, 0
  %v5113 = vsel %vm5112, %v5111, 0
  %v5114 = vshrl.u32 %v5113, 5
  %v5115 = vand.u32 %v5113, 31
  %v5116 = vsub.s32 32, %v5115
  %v5117 = vshrl.u32 683565275, %v5116
  %v5118 = vshll.u32 683565275, %v5115
  %v5119 = vshrl.u32 2475754826, %v5116
  %v5120 = vor.u32 %v5118, %v5119
  %v5121 = vshll.u32 2475754826, %v5115
  %v5122 = vshrl.u32 2131351028, %v5116
  %v5123 = vor.u32 %v5121, %v5122
  %v5124 = vshll.u32 2131351028, %v5115
  %v5125 = vshrl.u32 2102212464, %v5116
  %v5126 = vor.u32 %v5124, %v5125
  %v5127 = vshll.u32 2102212464, %v5115
  %v5128 = vshrl.u32 920167782, %v5116
  %v5129 = vor.u32 %v5127, %v5128
  %v5130 = vshll.u32 920167782, %v5115
  %v5131 = vshrl.u32 1326507024, %v5116
  %v5132 = vor.u32 %v5130, %v5131
  %vm5133 = vcmp.lt.s32.totalorder %v5114, 1
  %vm5134 = vcmp.lt.s32.totalorder %v5114, 2
  %vm5135 = vcmp.lt.s32.totalorder %v5114, 3
  %vm5136 = vcmp.lt.s32.totalorder %v5114, 4
  %v5137 = vsel %vm5133, %v5117, %v5120
  %v5138 = vsel %vm5136, %v5126, 2102212464
  %v5139 = vsel %vm5135, %v5123, %v5138
  %v5140 = vsel %vm5134, %v5137, %v5139
  %v5141 = vsel %vm5133, %v5120, %v5123
  %v5142 = vsel %vm5136, %v5129, 920167782
  %v5143 = vsel %vm5135, %v5126, %v5142
  %v5144 = vsel %vm5134, %v5141, %v5143
  %v5145 = vsel %vm5133, %v5123, %v5126
  %v5146 = vsel %vm5136, %v5132, 1326507024
  %v5147 = vsel %vm5135, %v5129, %v5146
  %v5148 = vsel %vm5134, %v5145, %v5147
  %v5149 = vshll.u32 %v5109, 8
  %v5150 = vand.u32 %v5149, 65535
  %v5151 = vshrl.u32 %v5149, 16
  %v5152 = vand.u32 %v5148, 65535
  %v5153 = vshrl.u32 %v5148, 16
  %v5154 = vmul.u32 %v5150, %v5152
  %v5155 = vmul.u32 %v5150, %v5153
  %v5156 = vmul.u32 %v5151, %v5152
  %v5157 = vmul.u32 %v5151, %v5153
  %v5158 = vshll.u32 %v5155, 16
  %v5159 = vshrl.u32 %v5155, 16
  %v5160 = vshll.u32 %v5156, 16
  %v5161 = vshrl.u32 %v5156, 16
  %vm5162 = vc.u32 %v5154, %v5158
  %v5163 = vsel %vm5162, 1, 0
  %v5164 = vadd.s32 %v5154, %v5158
  %v5165 = vadd.s32 %v5157, %v5163
  %vm5166 = vc.u32 %v5164, %v5160
  %v5167 = vsel %vm5166, 1, 0
  %v5168 = vadd.s32 %v5164, %v5160
  %v5169 = vadd.s32 %v5165, %v5167
  %v5170 = vadd.s32 %v5169, %v5159
  %v5171 = vadd.s32 %v5170, %v5161
  %v5172 = vand.u32 %v5149, 65535
  %v5173 = vshrl.u32 %v5149, 16
  %v5174 = vand.u32 %v5144, 65535
  %v5175 = vshrl.u32 %v5144, 16
  %v5176 = vmul.u32 %v5172, %v5174
  %v5177 = vmul.u32 %v5172, %v5175
  %v5178 = vmul.u32 %v5173, %v5174
  %v5179 = vmul.u32 %v5173, %v5175
  %v5180 = vshll.u32 %v5177, 16
  %v5181 = vshrl.u32 %v5177, 16
  %v5182 = vshll.u32 %v5178, 16
  %v5183 = vshrl.u32 %v5178, 16
  %vm5184 = vc.u32 %v5176, %v5180
  %v5185 = vsel %vm5184, 1, 0
  %v5186 = vadd.s32 %v5176, %v5180
  %v5187 = vadd.s32 %v5179, %v5185
  %vm5188 = vc.u32 %v5186, %v5182
  %v5189 = vsel %vm5188, 1, 0
  %v5190 = vadd.s32 %v5186, %v5182
  %v5191 = vadd.s32 %v5187, %v5189
  %v5192 = vadd.s32 %v5191, %v5181
  %v5193 = vadd.s32 %v5192, %v5183
  %v5194 = vmul.u32 %v5149, %v5140
  %v5195 = vadd.s32 %v5171, %v5190
  %vm5196 = vc.u32 %v5171, %v5190
  %v5197 = vadd.s32 %v5193, 1
  %v5198 = vsel %vm5196, %v5197, %v5193
  %v5199 = vadd.s32 %v5194, %v5198
  %v5200 = vadd.s32 %v5199, 536870912
  %v5201 = vshrl.u32 %v5200, 30
  %v5202 = vshll.u32 %v5201, 30
  %v5203 = vsub.s32 %v5199, %v5202
  %vm5204 = vcmp.lt.s32.totalorder %v5203, 0
  %v5205 = vsub.s32 0, %v5203
  %v5206 = vsel %vm5204, %v5205, %v5203
  %v5207 = vclz %v5206
  %v5208 = vsub.s32 %v5207, 2
  %vm5209 = vcmp.gt.s32.totalorder 0, %v5208
  %v5210 = vsel %vm5209, 0, %v5208
  %v5211 = vsub.s32 32, %v5210
  %v5212 = vshll.u32 %v5203, %v5210
  %v5213 = vshrl.u32 %v5195, %v5211
  %v5214 = vor.u32 %v5212, %v5213
  %v5215 = vsub.s32 4294967266, %v5210
  %v5216 = vadd.s32 %v5215, 127
  %v5217 = vshll.u32 %v5216, 23
  %v5218 = vor.u32 4788187, %v5217
  %v5219 = vand.u32 2147483647, %v5218
  %v5221 = vcvt.s32.f32 %v5214
  %v5222 = vmul.f32 %v5221, %v5219
  %v5223 = vxor.u32 %v5222, 2147483648
  %v5224 = vsel %vm5103, %v5223, %v5222
  %v5225 = vsub.s32 4, %v5201
  %v5226 = vsel %vm5103, %v5225, %v5201
  %v5227 = vsel %vm5102, %v295, %v5224
  %v5228 = vsel %vm5102, 0, %v5226
  %v5229 = vmul.f32 %v5227, %v5227
  %v5230 = vmul.f32 %v5229, -0.001358992
  %v5231 = vadd.f32 %v5230, 0.041655596
  %v5232 = vmul.f32 %v5229, %v5231
  %v5233 = vadd.f32 %v5232, -0.4999988
  %v5234 = vmul.f32 %v5229, %v5233
  %v5235 = vadd.f32 1.0, %v5234
  %v5236 = vmul.f32 %v5227, %v5227
  %v5237 = vmul.f32 %v5236, -0.00019511016
  %v5238 = vadd.f32 %v5237, 0.008332121
  %v5239 = vmul.f32 %v5236, %v5238
  %v5240 = vadd.f32 %v5239, -0.16666654
  %v5241 = vmul.f32 %v5236, %v5240
  %v5242 = vadd.f32 %v5241, 1.0
  %v5243 = vmul.f32 %v5242, %v5227
  %vm5244 = vweird.f32 %v295
  %v5245 = vadd.s32 %v5228, 3
  %v5246 = vand.u32 %v5245, 3
  %vm5247 = vcmp.lt.s32.totalorder %v5246, 2
  %vm5248 = vcmp.eq.s32.totalorder %v5246, 0
  %v5249 = vxor.u32 %v5243, 2147483648
  %v5250 = vsel %vm5248, %v5235, %v5249
  %vm5251 = vcmp.eq.s32.totalorder %v5246, 2
  %v5252 = vxor.u32 %v5235, 2147483648
  %v5253 = vsel %vm5251, %v5252, %v5243
  %v5254 = vsel %vm5247, %v5250, %v5253
  %v5255 = vsel %vm5244, nan, %v5254
  %vm5256 = vcmask 523264
  %5257 = vst.msk [vmem:[%s3] sm:$0xff] %vm5256, %v450
  %5258 = vst.msk [vmem:[%s3 + $0x8] sm:$0xff] %vm5256, %v605
  %5259 = vst.msk [vmem:[%s3 + $0x10] sm:$0xff] %vm5256, %v760
  %5260 = vst.msk [vmem:[%s3 + $0x18] sm:$0xff] %vm5256, %v915
  %5261 = vst.msk [vmem:[%s3 + $0x20] sm:$0xff] %vm5256, %v1070
  %5262 = vst.msk [vmem:[%s3 + $0x28] sm:$0xff] %vm5256, %v1225
  %5263 = vst.msk [vmem:[%s3 + $0x30] sm:$0xff] %vm5256, %v1380
  %5264 = vst.msk [vmem:[%s3 + $0x38] sm:$0xff] %vm5256, %v1535
  %5265 = vst.msk [vmem:[%s3 + $0x40] sm:$0xff] %vm5256, %v1690
  %5266 = vst.msk [vmem:[%s3 + $0x48] sm:$0xff] %vm5256, %v1845
  %5267 = vst.msk [vmem:[%s3 + $0x50] sm:$0xff] %vm5256, %v2000
  %5268 = vst.msk [vmem:[%s3 + $0x58] sm:$0xff] %vm5256, %v2155
  %5269 = vst.msk [vmem:[%s3 + $0x60] sm:$0xff] %vm5256, %v2310
  %5270 = vst.msk [vmem:[%s3 + $0x68] sm:$0xff] %vm5256, %v2465
  %5271 = vst.msk [vmem:[%s3 + $0x70] sm:$0xff] %vm5256, %v2620
  %5272 = vst.msk [vmem:[%s3 + $0x78] sm:$0xff] %vm5256, %v2775
  %5273 = vst.msk [vmem:[%s3 + $0x80] sm:$0xff] %vm5256, %v2930
  %5274 = vst.msk [vmem:[%s3 + $0x88] sm:$0xff] %vm5256, %v3085
  %5275 = vst.msk [vmem:[%s3 + $0x90] sm:$0xff] %vm5256, %v3240
  %5276 = vst.msk [vmem:[%s3 + $0x98] sm:$0xff] %vm5256, %v3395
  %5277 = vst.msk [vmem:[%s3 + $0xa0] sm:$0xff] %vm5256, %v3550
  %5278 = vst.msk [vmem:[%s3 + $0xa8] sm:$0xff] %vm5256, %v3705
  %5279 = vst.msk [vmem:[%s3 + $0xb0] sm:$0xff] %vm5256, %v3860
  %5280 = vst.msk [vmem:[%s3 + $0xb8] sm:$0xff] %vm5256, %v4015
  %5281 = vst.msk [vmem:[%s3 + $0xc0] sm:$0xff] %vm5256, %v4170
  %5282 = vst.msk [vmem:[%s3 + $0xc8] sm:$0xff] %vm5256, %v4325
  %5283 = vst.msk [vmem:[%s3 + $0xd0] sm:$0xff] %vm5256, %v4480
  %5284 = vst.msk [vmem:[%s3 + $0xd8] sm:$0xff] %vm5256, %v4635
  %5285 = vst.msk [vmem:[%s3 + $0xe0] sm:$0xff] %vm5256, %v4790
  %5286 = vst.msk [vmem:[%s3 + $0xe8] sm:$0xff] %vm5256, %v4945
  %5287 = vst.msk [vmem:[%s3 + $0xf0] sm:$0xff] %vm5256, %v5100
  %5288 = vst.msk [vmem:[%s3 + $0xf8] sm:$0xff] %vm5256, %v5255
  // Predicated region
  $region14: #{tpu_custom_call.1} parent=0 // pred_check
    _
  $region15: #{tpu_custom_call.1} parent=0 // pred_check_branch
    %5290 = sbr.rel (0) target = $region17
  $region16: #{tpu_custom_call.1} parent=0 // pred_region
    _
  $region17: #{tpu_custom_call.1} parent=0 // pred_fallthru
    _
  // Predicated region
  $region18: #{tpu_custom_call.1} parent=0 // pred_check
    _
  $region19: #{tpu_custom_call.1} parent=0 // pred_check_branch
    %5292 = sbr.rel (0) target = $region21
  $region20: #{tpu_custom_call.1} parent=0 // pred_region
    _
  $region21: #{tpu_custom_call.1} parent=0 // pred_fallthru
    _

</llo_original>
